<compile_context>
chip_gen: v6e
topology: v6e:2x2x1
jax: 0.10.0
libtpu: 0.0.40
codegen_flags: <defaults>
</compile_context>

<pallas_src>
import functools

import jax
import jax.numpy as jnp
from jax import lax
from jax.experimental import pallas as pl
from jax.experimental.pallas import tpu as pltpu

EPS = 1e-5            # torch.nn.InstanceNorm2d default
LRELU_SLOPE = 0.01    # torch.nn.LeakyReLU() default negative_slope
LANE = 128
SUBLANE_BF16 = 16     # bf16 min tile is (16, 128)


def _round_up(x, m):
    return (x + m - 1) // m * m


@functools.lru_cache(maxsize=None)
def _vmem_limit_bytes():
    """Scoped VMEM request ~= 3/4 of physical (96 MiB v5e/v6e, 48 MiB v7x)."""
    try:
        cap = pltpu.get_tpu_info().vmem_capacity_bytes
    except Exception:
        cap = 64 * 1024 * 1024
    return int(cap * 3 // 4)


def _spatial_tiling(p, tp_target):
    """Balanced spatial tiling: tile count for ~tp_target rows, tile size a
    multiple of the bf16 sublane pack (16)."""
    n_pt = max(1, -(-p // tp_target))
    tp = _round_up(-(-p // n_pt), SUBLANE_BF16)
    return tp, tp * n_pt, n_pt


# ----------------------------------------------------------------------------
# Pallas kernels
# ----------------------------------------------------------------------------
def _plain_kernel(p_ref, w_ref, b_ref, o_ref, *, slope):
    """Matmul + bias + LeakyReLU for one (TP, KKC) patch tile (conv1)."""
    y = jnp.dot(p_ref[...], w_ref[...], preferred_element_type=jnp.float32)
    y = y + b_ref[...]
    y = jnp.where(y > 0, y, slope * y)
    o_ref[...] = y.astype(o_ref.dtype)


def _norm_kernel(*refs, p_valid, tp, n_pt, slope, fuse_head, mask_last):
    """Two-phase grid (per image): phase 0 (g < n_pt) does the matmul and
    accumulates single-pass InstanceNorm statistics; phase 1 (g >= n_pt)
    normalizes + affine + LeakyReLU (+ fused 1x1 conv5) per tile and writes
    the per-tile output block."""
    if fuse_head:
        (p_ref, w_ref, g_ref, be_ref, w5_ref, b5_ref,
         o_ref, acc_ref, sum_ref, ssq_ref) = refs
    else:
        (p_ref, w_ref, g_ref, be_ref,
         o_ref, acc_ref, sum_ref, ssq_ref) = refs
        w5_ref = b5_ref = None

    g = pl.program_id(1)

    # ---------------- phase 0: matmul + statistics --------------------------
    @pl.when(g < n_pt)
    def _():
        t = g

        @pl.when(t == 0)
        def _():
            sum_ref[...] = jnp.zeros_like(sum_ref)
            ssq_ref[...] = jnp.zeros_like(ssq_ref)

        # bf16 MXU inputs, f32 accumulation.  Conv bias is omitted: a
        # per-channel constant before InstanceNorm cancels exactly.
        y = jnp.dot(p_ref[...], w_ref[...], preferred_element_type=jnp.float32)

        # Keep the raw activations resident (bf16) for the finalize phase.
        start = pl.multiple_of(t * tp, SUBLANE_BF16)
        acc_ref[pl.ds(start, tp), :] = y.astype(acc_ref.dtype)

        # Sublane-partial accumulators (8, C): per-tile work stays on the VPU;
        # the single cross-sublane reduce is amortized to the finalize phase.
        def accum(v):
            vr = v.reshape(tp // 8, 8, v.shape[-1])
            sum_ref[...] += jnp.sum(vr, axis=0)
            ssq_ref[...] += jnp.sum(vr * vr, axis=0)

        if mask_last:
            @pl.when(t < n_pt - 1)
            def _():
                accum(y)

            @pl.when(t == n_pt - 1)
            def _():
                row = t * tp + lax.broadcasted_iota(jnp.int32, (tp, 1), 0)
                accum(jnp.where(row < p_valid, y, 0.0))
        else:
            accum(y)

    # ---------------- phase 1: per-tile normalize / activation --------------
    @pl.when(g >= n_pt)
    def _():
        t = g - n_pt
        inv_p = 1.0 / p_valid
        mean = jnp.sum(sum_ref[...], axis=0, keepdims=True) * inv_p
        var = jnp.sum(ssq_ref[...], axis=0, keepdims=True) * inv_p - mean * mean
        # TODO(synk): E[y^2]-mean^2 in f32 can lose precision when |mean|>>std;
        # switch to a shifted accumulation if tolerance tests demand it.
        inv = lax.rsqrt(jnp.maximum(var, 0.0) + EPS)

        start = pl.multiple_of(t * tp, SUBLANE_BF16)
        yy = (acc_ref[pl.ds(start, tp), :].astype(jnp.float32) - mean) * inv
        yy = yy * g_ref[...] + be_ref[...]
        yy = jnp.where(yy > 0, yy, slope * yy)
        if fuse_head:
            # Fused 1x1 conv5 epilogue (no norm, no activation).
            yy = jnp.dot(yy.astype(w5_ref.dtype), w5_ref[...],
                         preferred_element_type=jnp.float32) + b5_ref[...]
        o_ref[...] = yy.astype(o_ref.dtype)


# ----------------------------------------------------------------------------
# Glue: reflection padding + im2col on NHWC (layout plumbing, plain JAX, bf16)
# ----------------------------------------------------------------------------
def _im2col_nhwc(x, k, stride):
    """x: (N, H, W, C) -> patches (N, Ho*Wo, k*k*C), feature order (kh, kw, c).

    TODO(synk): fuse into the Pallas kernel (k*k shifted-slice dots reading
    the padded NHWC tile directly) to kill the k*k HBM read amplification.
    """
    N, H, W, C = x.shape
    Ho = (H - k) // stride + 1
    Wo = (W - k) // stride + 1
    cols = []
    for i in range(k):
        for j in range(k):
            cols.append(x[:, i:i + stride * Ho:stride,
                          j:j + stride * Wo:stride, :])
    p = jnp.stack(cols, axis=3)                       # (N, Ho, Wo, k*k, C)
    return p.reshape(N, Ho * Wo, k * k * C), Ho, Wo


def _conv_block(x_nhwc, params, *, k, stride, reflect_pad, use_norm,
                head=None, tp_target=512):
    """x_nhwc: (N, H, W, Cin) bf16 -> (N, Ho, Wo, Cout_eff) bf16."""
    w, b, gamma, beta = params
    Cout = w.shape[0]

    if reflect_pad > 0:
        x_nhwc = jnp.pad(x_nhwc, ((0, 0), (reflect_pad, reflect_pad),
                                  (reflect_pad, reflect_pad), (0, 0)),
                         mode="reflect")
    patches, Ho, Wo = _im2col_nhwc(x_nhwc, k, stride)
    N, P, KKC = patches.shape

    C_pad = _round_up(Cout, LANE)                 # lane-dense outputs
    TP, P_pad, n_pt = _spatial_tiling(P, tp_target)

    # Contraction dim left unpadded (full-extent block is layout-legal).
    patches = jnp.pad(patches, ((0, 0), (0, P_pad - P), (0, 0)))

    # PyTorch conv weight (Cout, Cin, kh, kw) -> (kh*kw*Cin, C_pad), bf16,
    # matching the (kh, kw, c) patch feature order.
    w_flat = jnp.transpose(w, (2, 3, 1, 0)).reshape(KKC, Cout)
    w_flat = jnp.pad(w_flat, ((0, 0), (0, C_pad - Cout))).astype(jnp.bfloat16)

    vmem_limit = _vmem_limit_bytes()

    if not use_norm:
        b_p = jnp.pad(b, (0, C_pad - Cout)).reshape(1, C_pad).astype(jnp.float32)
        out = pl.pallas_call(
            functools.partial(_plain_kernel, slope=LRELU_SLOPE),
            out_shape=jax.ShapeDtypeStruct((N, P_pad, C_pad), jnp.bfloat16),
            grid=(N, n_pt),
            in_specs=[
                pl.BlockSpec((pl.Squeezed(), TP, KKC), lambda n, t: (n, t, 0)),
                pl.BlockSpec((KKC, C_pad), lambda n, t: (0, 0)),
                pl.BlockSpec((1, C_pad), lambda n, t: (0, 0)),
            ],
            out_specs=pl.BlockSpec((pl.Squeezed(), TP, C_pad),
                                   lambda n, t: (n, t, 0)),
            compiler_params=pltpu.CompilerParams(
                dimension_semantics=("parallel", "parallel"),
                vmem_limit_bytes=vmem_limit),
        )(patches, w_flat, b_p)
        cout_eff = Cout
    else:
        gamma_p = jnp.pad(gamma, (0, C_pad - Cout)).reshape(1, C_pad).astype(jnp.float32)
        beta_p = jnp.pad(beta, (0, C_pad - Cout)).reshape(1, C_pad).astype(jnp.float32)
        # Conv bias intentionally not plumbed in (cancelled by the IN mean).

        fuse_head = head is not None
        if fuse_head:
            w5, b5 = head                         # conv5: (1, Cout, 1, 1), (1,)
            C5 = w5.shape[0]
            C5_pad = _round_up(C5, LANE)
            w5_flat = jnp.pad(w5.reshape(C5, Cout).T,
                              ((0, C_pad - Cout), (0, C5_pad - C5))
                              ).astype(jnp.bfloat16)
            b5_p = jnp.pad(b5, (0, C5_pad - C5)).reshape(1, C5_pad).astype(jnp.float32)
            extra_in = [w5_flat, b5_p]
            extra_specs = [pl.BlockSpec((C_pad, C5_pad), lambda n, g: (0, 0)),
                           pl.BlockSpec((1, C5_pad), lambda n, g: (0, 0))]
            cout_eff, C_out_pad = C5, C5_pad
        else:
            extra_in, extra_specs = [], []
            cout_eff, C_out_pad = Cout, C_pad

        mask_last = (P_pad != P)
        kernel = functools.partial(_norm_kernel, p_valid=P, tp=TP, n_pt=n_pt,
                                   slope=LRELU_SLOPE, fuse_head=fuse_head,
                                   mask_last=mask_last)

        # Phase 0 steps (g < n_pt) stream patch tiles; phase 1 steps revisit
        # the last patch block (no extra DMA) and write one output tile each.
        def patch_idx(n, g):
            return (n, jnp.minimum(g, n_pt - 1), 0)

        def out_idx(n, g):
            return (n, jnp.maximum(g - n_pt, 0), 0)

        out = pl.pallas_call(
            kernel,
            out_shape=jax.ShapeDtypeStruct((N, P_pad, C_out_pad), jnp.bfloat16),
            grid=(N, 2 * n_pt),
            in_specs=[
                pl.BlockSpec((pl.Squeezed(), TP, KKC), patch_idx),
                pl.BlockSpec((KKC, C_pad), lambda n, g: (0, 0)),
                pl.BlockSpec((1, C_pad), lambda n, g: (0, 0)),
                pl.BlockSpec((1, C_pad), lambda n, g: (0, 0)),
            ] + extra_specs,
            out_specs=pl.BlockSpec((pl.Squeezed(), TP, C_out_pad), out_idx),
            scratch_shapes=[pltpu.VMEM((P_pad, C_pad), jnp.bfloat16),  # raw acts
                            pltpu.VMEM((8, C_pad), jnp.float32),       # sum
                            pltpu.VMEM((8, C_pad), jnp.float32)],      # sum sq
            compiler_params=pltpu.CompilerParams(
                dimension_semantics=("parallel", "arbitrary"),
                vmem_limit_bytes=vmem_limit),
        )(patches, w_flat, gamma_p, beta_p, *extra_in)

    # (N, P_pad, C_out_pad) -> (N, Ho, Wo, Cout_eff), channels-last for the
    # next layer (no transpose needed).
    y = out[:, :P, :cout_eff]
    return y.reshape(N, Ho, Wo, cout_eff)


# ----------------------------------------------------------------------------
# Parameters (deterministic, synthetic)
# ----------------------------------------------------------------------------
def init_params(key, num_channels=8):
    specs = [
        # (Cin, Cout, k)
        (2, num_channels, 4),
        (num_channels, num_channels * 2, 4),
        (num_channels * 2, num_channels * 4, 4),
        (num_channels * 4, num_channels * 8, 4),
        (num_channels * 8, 1, 1),
    ]
    params = []
    for cin, cout, k in specs:
        key, kw, kb = jax.random.split(key, 3)
        scale = 1.0 / jnp.sqrt(cin * k * k)
        w = jax.random.uniform(kw, (cout, cin, k, k), jnp.float32, -scale, scale)
        b = jax.random.uniform(kb, (cout,), jnp.float32, -scale, scale)
        gamma = jnp.ones((cout,), jnp.float32)   # InstanceNorm2d(affine=True) weight
        beta = jnp.zeros((cout,), jnp.float32)   # InstanceNorm2d(affine=True) bias
        params.append((w, b, gamma, beta))
    return params


def discriminator_forward(x, params):
    # Single NCHW -> NHWC transpose at the input; everything stays
    # channels-last (lane-dense) afterwards.
    y = jnp.transpose(x, (0, 2, 3, 1)).astype(jnp.bfloat16)
    # conv1 (padding=False) + lrelu
    y = _conv_block(y, params[0], k=4, stride=2, reflect_pad=0, use_norm=False,
                    tp_target=1024)
    # conv2 + in2 + lrelu   (ReflectionPad2d(k // 2) = 2)
    y = _conv_block(y, params[1], k=4, stride=2, reflect_pad=2, use_norm=True)
    # conv3 + in3 + lrelu
    y = _conv_block(y, params[2], k=4, stride=2, reflect_pad=2, use_norm=True)
    # conv4 + in4 + lrelu with conv5 (1x1, no norm/activation) fused as epilogue
    w5, b5, _, _ = params[4]
    y = _conv_block(y, params[3], k=4, stride=1, reflect_pad=2, use_norm=True,
                    head=(w5, b5))
    # head: (N, Ho, Wo, 1) bf16 -> (N, 1, Ho, Wo) f32
    return jnp.transpose(y.astype(jnp.float32), (0, 3, 1, 2))


if __name__ == "__main__":
    key = jax.random.PRNGKey(0)
    k_x, k_p = jax.random.split(key)
    # Small synthetic shapes: batch=2, 2 input channels, 32x32 spatial,
    # num_channels=8 (stand-in for the default 64).
    x = jax.random.normal(k_x, (2, 2, 32, 32), jnp.float32)
    params = init_params(k_p, num_channels=8)

    fwd = jax.jit(discriminator_forward)
    out = jax.block_until_ready(fwd(x, params))
    assert out.shape == (2, 1, 6, 6), out.shape
    assert jnp.all(jnp.isfinite(out))
    print("KERNEL_OK")
</pallas_src>

<mosaic_0001>
module attributes {stable_mosaic.version = 11 : i64} {
  func.func @_plain_kernel(%arg0: i32, %arg1: i32, %arg2: memref<1x240x32xbf16, #tpu.memory_space<vmem>>, %arg3: memref<32x128xbf16, #tpu.memory_space<vmem>>, %arg4: memref<1x128xf32, #tpu.memory_space<vmem>>, %arg5: memref<1x240x128xbf16, #tpu.memory_space<vmem>>) attributes {dimension_semantics = [#tpu.dimension_semantics<parallel>, #tpu.dimension_semantics<parallel>], iteration_bounds = array<i64: 2, 1>, scalar_prefetch = 0 : i64, scratch_operands = 0 : i64, tpu.core_type = #tpu.core_type<tc>, window_params = [{transform_indices = @transform_0, window_bounds = array<i64: 1, 240, 32>}, {pipeline_mode = #tpu.pipeline_mode<synchronous>, transform_indices = @transform_1, window_bounds = array<i64: 32, 128>}, {pipeline_mode = #tpu.pipeline_mode<synchronous>, transform_indices = @transform_2, window_bounds = array<i64: 1, 128>}, {transform_indices = @transform_3, window_bounds = array<i64: 1, 240, 128>}]} {
    %c0 = arith.constant 0 : index
    %c0_0 = arith.constant 0 : index
    %c0_1 = arith.constant 0 : index
    %0 = vector.load %arg2[%c0, %c0_0, %c0_1] : memref<1x240x32xbf16, #tpu.memory_space<vmem>>, vector<1x240x32xbf16>
    %1 = vector.shape_cast %0 : vector<1x240x32xbf16> to vector<240x32xbf16>
    %c0_2 = arith.constant 0 : index
    %c0_3 = arith.constant 0 : index
    %2 = vector.load %arg3[%c0_2, %c0_3] : memref<32x128xbf16, #tpu.memory_space<vmem>>, vector<32x128xbf16>
    %cst = arith.constant dense<0.000000e+00> : vector<240x128xf32>
    %3 = tpu.matmul %1, %2, %cst {dimension_numbers = #tpu.dot_dimension_numbers<[1], [0], [0], [1], [0, 0, 1, 1], [], []>} : vector<240x32xbf16>, vector<32x128xbf16>, vector<240x128xf32> -> vector<240x128xf32>
    %c0_4 = arith.constant 0 : index
    %c0_5 = arith.constant 0 : index
    %4 = vector.load %arg4[%c0_4, %c0_5] : memref<1x128xf32, #tpu.memory_space<vmem>>, vector<1x128xf32>
    %5 = vector.broadcast %4 : vector<1x128xf32> to vector<240x128xf32>
    %6 = arith.addf %3, %5 : vector<240x128xf32>
    %cst_6 = arith.constant 0.000000e+00 : f32
    %7 = vector.broadcast %cst_6 : f32 to vector<240x128xf32>
    %8 = arith.cmpf ogt, %6, %7 : vector<240x128xf32>
    %cst_7 = arith.constant 0.00999999977 : f32
    %9 = vector.broadcast %cst_7 : f32 to vector<240x128xf32>
    %10 = arith.mulf %9, %6 : vector<240x128xf32>
    %11 = arith.select %8, %6, %10 : vector<240x128xi1>, vector<240x128xf32>
    %12 = arith.truncf %11 : vector<240x128xf32> to vector<240x128xbf16>
    %c0_8 = arith.constant 0 : index
    %c0_9 = arith.constant 0 : index
    %c0_10 = arith.constant 0 : index
    %13 = vector.load %arg5[%c0_8, %c0_9, %c0_10] : memref<1x240x128xbf16, #tpu.memory_space<vmem>>, vector<1x240x128xbf16>
    %14 = vector.shape_cast %13 : vector<1x240x128xbf16> to vector<240x128xbf16>
    %15 = vector.shape_cast %12 : vector<240x128xbf16> to vector<1x240x128xbf16>
    tpu.vector_store %arg5[%c0_8, %c0_9, %c0_10], %15 {strides = array<i32>} : memref<1x240x128xbf16, #tpu.memory_space<vmem>>, vector<1x240x128xbf16>,
    return
  }
  func.func @transform_0(%arg0: i32, %arg1: i32) -> (i32, i32, i32) {
    %c0_i32 = arith.constant 0 : i32
    %c0_i32_0 = arith.constant 0 : i32
    return %arg0, %arg1, %c0_i32 : i32, i32, i32
  }
  func.func @transform_1(%arg0: i32, %arg1: i32) -> (i32, i32) {
    %c0_i32 = arith.constant 0 : i32
    %c0_i32_0 = arith.constant 0 : i32
    %c0_i32_1 = arith.constant 0 : i32
    return %c0_i32, %c0_i32_0 : i32, i32
  }
  func.func @transform_2(%arg0: i32, %arg1: i32) -> (i32, i32) {
    %c0_i32 = arith.constant 0 : i32
    %c0_i32_0 = arith.constant 0 : i32
    %c0_i32_1 = arith.constant 0 : i32
    return %c0_i32, %c0_i32_0 : i32, i32
  }
  func.func @transform_3(%arg0: i32, %arg1: i32) -> (i32, i32, i32) {
    %c0_i32 = arith.constant 0 : i32
    %c0_i32_0 = arith.constant 0 : i32
    return %arg0, %arg1, %c0_i32 : i32, i32, i32
  }
}

module attributes {stable_mosaic.version = 11 : i64} {
  func.func @_norm_kernel(%arg0: i32, %arg1: i32, %arg2: memref<1x64x128xbf16, #tpu.memory_space<vmem>>, %arg3: memref<128x128xbf16, #tpu.memory_space<vmem>>, %arg4: memref<1x128xf32, #tpu.memory_space<vmem>>, %arg5: memref<1x128xf32, #tpu.memory_space<vmem>>, %arg6: memref<1x64x128xbf16, #tpu.memory_space<vmem>>, %arg7: memref<64x128xbf16, #tpu.memory_space<vmem>>, %arg8: memref<8x128xf32, #tpu.memory_space<vmem>>, %arg9: memref<8x128xf32, #tpu.memory_space<vmem>>) attributes {dimension_semantics = [#tpu.dimension_semantics<parallel>, #tpu.dimension_semantics<arbitrary>], iteration_bounds = array<i64: 2, 2>, scalar_prefetch = 0 : i64, scratch_operands = 3 : i64, tpu.core_type = #tpu.core_type<tc>, window_params = [{transform_indices = @transform_0, window_bounds = array<i64: 1, 64, 128>}, {pipeline_mode = #tpu.pipeline_mode<synchronous>, transform_indices = @transform_1, window_bounds = array<i64: 128, 128>}, {pipeline_mode = #tpu.pipeline_mode<synchronous>, transform_indices = @transform_2, window_bounds = array<i64: 1, 128>}, {pipeline_mode = #tpu.pipeline_mode<synchronous>, transform_indices = @transform_3, window_bounds = array<i64: 1, 128>}, {transform_indices = @transform_4, window_bounds = array<i64: 1, 64, 128>}]} {
    %c1_i32 = arith.constant 1 : i32
    %0 = arith.cmpi slt, %arg1, %c1_i32 : i32
    %1 = arith.extui %0 : i1 to i32
    %c0_i32 = arith.constant 0 : i32
    %2 = arith.cmpi ne, %1, %c0_i32 : i32
    scf.if %2 {
      %c0_i32_2 = arith.constant 0 : i32
      %6 = arith.cmpi eq, %arg1, %c0_i32_2 : i32
      %7 = arith.extui %6 : i1 to i32
      %c0_i32_3 = arith.constant 0 : i32
      %8 = arith.cmpi ne, %7, %c0_i32_3 : i32
      scf.if %8 {
        %cst_19 = arith.constant 0.000000e+00 : f32
        %28 = vector.broadcast %cst_19 : f32 to vector<8x128xf32>
        %c0_20 = arith.constant 0 : index
        %c0_21 = arith.constant 0 : index
        %29 = vector.load %arg8[%c0_20, %c0_21] : memref<8x128xf32, #tpu.memory_space<vmem>>, vector<8x128xf32>
        tpu.vector_store %arg8[%c0_20, %c0_21], %28 {strides = array<i32>} : memref<8x128xf32, #tpu.memory_space<vmem>>, vector<8x128xf32>,
        %cst_22 = arith.constant 0.000000e+00 : f32
        %30 = vector.broadcast %cst_22 : f32 to vector<8x128xf32>
        %c0_23 = arith.constant 0 : index
        %c0_24 = arith.constant 0 : index
        %31 = vector.load %arg9[%c0_23, %c0_24] : memref<8x128xf32, #tpu.memory_space<vmem>>, vector<8x128xf32>
        tpu.vector_store %arg9[%c0_23, %c0_24], %30 {strides = array<i32>} : memref<8x128xf32, #tpu.memory_space<vmem>>, vector<8x128xf32>,
      } else {
      }
      %c0 = arith.constant 0 : index
      %c0_4 = arith.constant 0 : index
      %c0_5 = arith.constant 0 : index
      %9 = vector.load %arg2[%c0, %c0_4, %c0_5] : memref<1x64x128xbf16, #tpu.memory_space<vmem>>, vector<1x64x128xbf16>
      %10 = vector.shape_cast %9 : vector<1x64x128xbf16> to vector<64x128xbf16>
      %c0_6 = arith.constant 0 : index
      %c0_7 = arith.constant 0 : index
      %11 = vector.load %arg3[%c0_6, %c0_7] : memref<128x128xbf16, #tpu.memory_space<vmem>>, vector<128x128xbf16>
      %cst = arith.constant dense<0.000000e+00> : vector<64x128xf32>
      %12 = tpu.matmul %10, %11, %cst {dimension_numbers = #tpu.dot_dimension_numbers<[1], [0], [0], [1], [0, 0, 1, 1], [], []>} : vector<64x128xbf16>, vector<128x128xbf16>, vector<64x128xf32> -> vector<64x128xf32>
      %c64_i32 = arith.constant 64 : i32
      %13 = arith.muli %arg1, %c64_i32 : i32
      %14 = tpu.assume_multiple %13, 16 : i32
      %15 = arith.truncf %12 : vector<64x128xf32> to vector<64x128xbf16>
      %16 = arith.index_cast %14 : i32 to index
      %c0_8 = arith.constant 0 : index
      %17 = vector.load %arg7[%16, %c0_8] : memref<64x128xbf16, #tpu.memory_space<vmem>>, vector<64x128xbf16>
      tpu.vector_store %arg7[%16, %c0_8], %15 {strides = array<i32>} : memref<64x128xbf16, #tpu.memory_space<vmem>>, vector<64x128xbf16>,
      %18 = vector.shape_cast %12 : vector<64x128xf32> to vector<8x8x128xf32>
      %c0_9 = arith.constant 0 : index
      %c0_10 = arith.constant 0 : index
      %19 = vector.load %arg8[%c0_9, %c0_10] : memref<8x128xf32, #tpu.memory_space<vmem>>, vector<8x128xf32>
      %cst_11 = arith.constant dense<0.000000e+00> : vector<8x128xf32>
      %20 = vector.multi_reduction <add>, %18, %cst_11 [0] : vector<8x8x128xf32> to vector<8x128xf32>
      %21 = arith.addf %19, %20 : vector<8x128xf32>
      %c0_12 = arith.constant 0 : index
      %c0_13 = arith.constant 0 : index
      %22 = vector.load %arg8[%c0_12, %c0_13] : memref<8x128xf32, #tpu.memory_space<vmem>>, vector<8x128xf32>
      tpu.vector_store %arg8[%c0_12, %c0_13], %21 {strides = array<i32>} : memref<8x128xf32, #tpu.memory_space<vmem>>, vector<8x128xf32>,
      %c0_14 = arith.constant 0 : index
      %c0_15 = arith.constant 0 : index
      %23 = vector.load %arg9[%c0_14, %c0_15] : memref<8x128xf32, #tpu.memory_space<vmem>>, vector<8x128xf32>
      %24 = arith.mulf %18, %18 : vector<8x8x128xf32>
      %cst_16 = arith.constant dense<0.000000e+00> : vector<8x128xf32>
      %25 = vector.multi_reduction <add>, %24, %cst_16 [0] : vector<8x8x128xf32> to vector<8x128xf32>
      %26 = arith.addf %23, %25 : vector<8x128xf32>
      %c0_17 = arith.constant 0 : index
      %c0_18 = arith.constant 0 : index
      %27 = vector.load %arg9[%c0_17, %c0_18] : memref<8x128xf32, #tpu.memory_space<vmem>>, vector<8x128xf32>
      tpu.vector_store %arg9[%c0_17, %c0_18], %26 {strides = array<i32>} : memref<8x128xf32, #tpu.memory_space<vmem>>, vector<8x128xf32>,
    } else {
    }
    %c1_i32_0 = arith.constant 1 : i32
    %3 = arith.cmpi sge, %arg1, %c1_i32_0 : i32
    %4 = arith.extui %3 : i1 to i32
    %c0_i32_1 = arith.constant 0 : i32
    %5 = arith.cmpi ne, %4, %c0_i32_1 : i32
    scf.if %5 {
      %c1_i32_2 = arith.constant 1 : i32
      %6 = arith.subi %arg1, %c1_i32_2 : i32
      %c0 = arith.constant 0 : index
      %c0_3 = arith.constant 0 : index
      %7 = vector.load %arg8[%c0, %c0_3] : memref<8x128xf32, #tpu.memory_space<vmem>>, vector<8x128xf32>
      %cst = arith.constant dense<0.000000e+00> : vector<128xf32>
      %8 = vector.multi_reduction <add>, %7, %cst [0] : vector<8x128xf32> to vector<128xf32>
      %9 = vector.shape_cast %8 : vector<128xf32> to vector<1x128xf32>
      %cst_4 = arith.constant 1.562500e-02 : f32
      %10 = vector.broadcast %cst_4 : f32 to vector<1x128xf32>
      %11 = arith.mulf %9, %10 : vector<1x128xf32>
      %c0_5 = arith.constant 0 : index
      %c0_6 = arith.constant 0 : index
      %12 = vector.load %arg9[%c0_5, %c0_6] : memref<8x128xf32, #tpu.memory_space<vmem>>, vector<8x128xf32>
      %cst_7 = arith.constant dense<0.000000e+00> : vector<128xf32>
      %13 = vector.multi_reduction <add>, %12, %cst_7 [0] : vector<8x128xf32> to vector<128xf32>
      %14 = vector.shape_cast %13 : vector<128xf32> to vector<1x128xf32>
      %cst_8 = arith.constant 1.562500e-02 : f32
      %15 = vector.broadcast %cst_8 : f32 to vector<1x128xf32>
      %16 = arith.mulf %14, %15 : vector<1x128xf32>
      %17 = arith.mulf %11, %11 : vector<1x128xf32>
      %18 = arith.subf %16, %17 : vector<1x128xf32>
      %cst_9 = arith.constant 0.000000e+00 : f32
      %19 = vector.broadcast %cst_9 : f32 to vector<1x128xf32>
      %20 = arith.maximumf %18, %19 : vector<1x128xf32>
      %cst_10 = arith.constant 9.99999974E-6 : f32
      %21 = vector.broadcast %cst_10 : f32 to vector<1x128xf32>
      %22 = arith.addf %20, %21 : vector<1x128xf32>
      %23 = math.rsqrt %22 : vector<1x128xf32>
      %c64_i32 = arith.constant 64 : i32
      %24 = arith.muli %6, %c64_i32 : i32
      %25 = tpu.assume_multiple %24, 16 : i32
      %26 = arith.index_cast %25 : i32 to index
      %c0_11 = arith.constant 0 : index
      %27 = vector.load %arg7[%26, %c0_11] : memref<64x128xbf16, #tpu.memory_space<vmem>>, vector<64x128xbf16>
      %28 = arith.extf %27 : vector<64x128xbf16> to vector<64x128xf32>
      %29 = vector.broadcast %11 : vector<1x128xf32> to vector<64x128xf32>
      %30 = arith.subf %28, %29 : vector<64x128xf32>
      %31 = vector.broadcast %23 : vector<1x128xf32> to vector<64x128xf32>
      %32 = arith.mulf %30, %31 : vector<64x128xf32>
      %c0_12 = arith.constant 0 : index
      %c0_13 = arith.constant 0 : index
      %33 = vector.load %arg4[%c0_12, %c0_13] : memref<1x128xf32, #tpu.memory_space<vmem>>, vector<1x128xf32>
      %34 = vector.broadcast %33 : vector<1x128xf32> to vector<64x128xf32>
      %35 = arith.mulf %32, %34 : vector<64x128xf32>
      %c0_14 = arith.constant 0 : index
      %c0_15 = arith.constant 0 : index
      %36 = vector.load %arg5[%c0_14, %c0_15] : memref<1x128xf32, #tpu.memory_space<vmem>>, vector<1x128xf32>
      %37 = vector.broadcast %36 : vector<1x128xf32> to vector<64x128xf32>
      %38 = arith.addf %35, %37 : vector<64x128xf32>
      %cst_16 = arith.constant 0.000000e+00 : f32
      %39 = vector.broadcast %cst_16 : f32 to vector<64x128xf32>
      %40 = arith.cmpf ogt, %38, %39 : vector<64x128xf32>
      %cst_17 = arith.constant 0.00999999977 : f32
      %41 = vector.broadcast %cst_17 : f32 to vector<64x128xf32>
      %42 = arith.mulf %41, %38 : vector<64x128xf32>
      %43 = arith.select %40, %38, %42 : vector<64x128xi1>, vector<64x128xf32>
      %44 = arith.truncf %43 : vector<64x128xf32> to vector<64x128xbf16>
      %c0_18 = arith.constant 0 : index
      %c0_19 = arith.constant 0 : index
      %c0_20 = arith.constant 0 : index
      %45 = vector.load %arg6[%c0_18, %c0_19, %c0_20] : memref<1x64x128xbf16, #tpu.memory_space<vmem>>, vector<1x64x128xbf16>
      %46 = vector.shape_cast %45 : vector<1x64x128xbf16> to vector<64x128xbf16>
      %47 = vector.shape_cast %44 : vector<64x128xbf16> to vector<1x64x128xbf16>
      tpu.vector_store %arg6[%c0_18, %c0_19, %c0_20], %47 {strides = array<i32>} : memref<1x64x128xbf16, #tpu.memory_space<vmem>>, vector<1x64x128xbf16>,
    } else {
    }
    return
  }
  func.func @transform_0(%arg0: i32, %arg1: i32) -> (i32, i32, i32) {
    %c0_i32 = arith.constant 0 : i32
    %0 = arith.minsi %arg1, %c0_i32 : i32
    %c0_i32_0 = arith.constant 0 : i32
    %c0_i32_1 = arith.constant 0 : i32
    return %arg0, %0, %c0_i32_0 : i32, i32, i32
  }
  func.func @transform_1(%arg0: i32, %arg1: i32) -> (i32, i32) {
    %c0_i32 = arith.constant 0 : i32
    %c0_i32_0 = arith.constant 0 : i32
    %c0_i32_1 = arith.constant 0 : i32
    return %c0_i32, %c0_i32_0 : i32, i32
  }
  func.func @transform_2(%arg0: i32, %arg1: i32) -> (i32, i32) {
    %c0_i32 = arith.constant 0 : i32
    %c0_i32_0 = arith.constant 0 : i32
    %c0_i32_1 = arith.constant 0 : i32
    return %c0_i32, %c0_i32_0 : i32, i32
  }
  func.func @transform_3(%arg0: i32, %arg1: i32) -> (i32, i32) {
    %c0_i32 = arith.constant 0 : i32
    %c0_i32_0 = arith.constant 0 : i32
    %c0_i32_1 = arith.constant 0 : i32
    return %c0_i32, %c0_i32_0 : i32, i32
  }
  func.func @transform_4(%arg0: i32, %arg1: i32) -> (i32, i32, i32) {
    %c1_i32 = arith.constant 1 : i32
    %0 = arith.subi %arg1, %c1_i32 : i32
    %c0_i32 = arith.constant 0 : i32
    %1 = arith.maxsi %0, %c0_i32 : i32
    %c0_i32_0 = arith.constant 0 : i32
    %c0_i32_1 = arith.constant 0 : i32
    return %arg0, %1, %c0_i32_0 : i32, i32, i32
  }
}

module attributes {stable_mosaic.version = 11 : i64} {
  func.func @_norm_kernel(%arg0: i32, %arg1: i32, %arg2: memref<1x32x256xbf16, #tpu.memory_space<vmem>>, %arg3: memref<256x128xbf16, #tpu.memory_space<vmem>>, %arg4: memref<1x128xf32, #tpu.memory_space<vmem>>, %arg5: memref<1x128xf32, #tpu.memory_space<vmem>>, %arg6: memref<1x32x128xbf16, #tpu.memory_space<vmem>>, %arg7: memref<32x128xbf16, #tpu.memory_space<vmem>>, %arg8: memref<8x128xf32, #tpu.memory_space<vmem>>, %arg9: memref<8x128xf32, #tpu.memory_space<vmem>>) attributes {dimension_semantics = [#tpu.dimension_semantics<parallel>, #tpu.dimension_semantics<arbitrary>], iteration_bounds = array<i64: 2, 2>, scalar_prefetch = 0 : i64, scratch_operands = 3 : i64, tpu.core_type = #tpu.core_type<tc>, window_params = [{transform_indices = @transform_0, window_bounds = array<i64: 1, 32, 256>}, {pipeline_mode = #tpu.pipeline_mode<synchronous>, transform_indices = @transform_1, window_bounds = array<i64: 256, 128>}, {pipeline_mode = #tpu.pipeline_mode<synchronous>, transform_indices = @transform_2, window_bounds = array<i64: 1, 128>}, {pipeline_mode = #tpu.pipeline_mode<synchronous>, transform_indices = @transform_3, window_bounds = array<i64: 1, 128>}, {transform_indices = @transform_4, window_bounds = array<i64: 1, 32, 128>}]} {
    %c1_i32 = arith.constant 1 : i32
    %0 = arith.cmpi slt, %arg1, %c1_i32 : i32
    %1 = arith.extui %0 : i1 to i32
    %c0_i32 = arith.constant 0 : i32
    %2 = arith.cmpi ne, %1, %c0_i32 : i32
    scf.if %2 {
      %c0_i32_2 = arith.constant 0 : i32
      %6 = arith.cmpi eq, %arg1, %c0_i32_2 : i32
      %7 = arith.extui %6 : i1 to i32
      %c0_i32_3 = arith.constant 0 : i32
      %8 = arith.cmpi ne, %7, %c0_i32_3 : i32
      scf.if %8 {
        %cst_13 = arith.constant 0.000000e+00 : f32
        %24 = vector.broadcast %cst_13 : f32 to vector<8x128xf32>
        %c0_14 = arith.constant 0 : index
        %c0_15 = arith.constant 0 : index
        %25 = vector.load %arg8[%c0_14, %c0_15] : memref<8x128xf32, #tpu.memory_space<vmem>>, vector<8x128xf32>
        tpu.vector_store %arg8[%c0_14, %c0_15], %24 {strides = array<i32>} : memref<8x128xf32, #tpu.memory_space<vmem>>, vector<8x128xf32>,
        %cst_16 = arith.constant 0.000000e+00 : f32
        %26 = vector.broadcast %cst_16 : f32 to vector<8x128xf32>
        %c0_17 = arith.constant 0 : index
        %c0_18 = arith.constant 0 : index
        %27 = vector.load %arg9[%c0_17, %c0_18] : memref<8x128xf32, #tpu.memory_space<vmem>>, vector<8x128xf32>
        tpu.vector_store %arg9[%c0_17, %c0_18], %26 {strides = array<i32>} : memref<8x128xf32, #tpu.memory_space<vmem>>, vector<8x128xf32>,
      } else {
      }
      %c0 = arith.constant 0 : index
      %c0_4 = arith.constant 0 : index
      %c0_5 = arith.constant 0 : index
      %9 = vector.load %arg2[%c0, %c0_4, %c0_5] : memref<1x32x256xbf16, #tpu.memory_space<vmem>>, vector<1x32x256xbf16>
      %10 = vector.shape_cast %9 : vector<1x32x256xbf16> to vector<32x256xbf16>
      %c0_6 = arith.constant 0 : index
      %c0_7 = arith.constant 0 : index
      %11 = vector.load %arg3[%c0_6, %c0_7] : memref<256x128xbf16, #tpu.memory_space<vmem>>, vector<256x128xbf16>
      %cst = arith.constant dense<0.000000e+00> : vector<32x128xf32>
      %12 = tpu.matmul %10, %11, %cst {dimension_numbers = #tpu.dot_dimension_numbers<[1], [0], [0], [1], [0, 0, 1, 1], [], []>} : vector<32x256xbf16>, vector<256x128xbf16>, vector<32x128xf32> -> vector<32x128xf32>
      %c32_i32 = arith.constant 32 : i32
      %13 = arith.muli %arg1, %c32_i32 : i32
      %14 = tpu.assume_multiple %13, 16 : i32
      %15 = arith.truncf %12 : vector<32x128xf32> to vector<32x128xbf16>
      %16 = arith.index_cast %14 : i32 to index
      %c0_8 = arith.constant 0 : index
      %17 = vector.load %arg7[%16, %c0_8] : memref<32x128xbf16, #tpu.memory_space<vmem>>, vector<32x128xbf16>
      tpu.vector_store %arg7[%16, %c0_8], %15 {strides = array<i32>} : memref<32x128xbf16, #tpu.memory_space<vmem>>, vector<32x128xbf16>,
      %c0_i32_9 = arith.constant 0 : i32
      %18 = arith.cmpi slt, %arg1, %c0_i32_9 : i32
      %19 = arith.extui %18 : i1 to i32
      %c0_i32_10 = arith.constant 0 : i32
      %20 = arith.cmpi ne, %19, %c0_i32_10 : i32
      scf.if %20 {
        %24 = vector.shape_cast %12 : vector<32x128xf32> to vector<4x8x128xf32>
        %c0_13 = arith.constant 0 : index
        %c0_14 = arith.constant 0 : index
        %25 = vector.load %arg8[%c0_13, %c0_14] : memref<8x128xf32, #tpu.memory_space<vmem>>, vector<8x128xf32>
        %cst_15 = arith.constant dense<0.000000e+00> : vector<8x128xf32>
        %26 = vector.multi_reduction <add>, %24, %cst_15 [0] : vector<4x8x128xf32> to vector<8x128xf32>
        %27 = arith.addf %25, %26 : vector<8x128xf32>
        %c0_16 = arith.constant 0 : index
        %c0_17 = arith.constant 0 : index
        %28 = vector.load %arg8[%c0_16, %c0_17] : memref<8x128xf32, #tpu.memory_space<vmem>>, vector<8x128xf32>
        tpu.vector_store %arg8[%c0_16, %c0_17], %27 {strides = array<i32>} : memref<8x128xf32, #tpu.memory_space<vmem>>, vector<8x128xf32>,
        %c0_18 = arith.constant 0 : index
        %c0_19 = arith.constant 0 : index
        %29 = vector.load %arg9[%c0_18, %c0_19] : memref<8x128xf32, #tpu.memory_space<vmem>>, vector<8x128xf32>
        %30 = arith.mulf %24, %24 : vector<4x8x128xf32>
        %cst_20 = arith.constant dense<0.000000e+00> : vector<8x128xf32>
        %31 = vector.multi_reduction <add>, %30, %cst_20 [0] : vector<4x8x128xf32> to vector<8x128xf32>
        %32 = arith.addf %29, %31 : vector<8x128xf32>
        %c0_21 = arith.constant 0 : index
        %c0_22 = arith.constant 0 : index
        %33 = vector.load %arg9[%c0_21, %c0_22] : memref<8x128xf32, #tpu.memory_space<vmem>>, vector<8x128xf32>
        tpu.vector_store %arg9[%c0_21, %c0_22], %32 {strides = array<i32>} : memref<8x128xf32, #tpu.memory_space<vmem>>, vector<8x128xf32>,
      } else {
      }
      %c0_i32_11 = arith.constant 0 : i32
      %21 = arith.cmpi eq, %arg1, %c0_i32_11 : i32
      %22 = arith.extui %21 : i1 to i32
      %c0_i32_12 = arith.constant 0 : i32
      %23 = arith.cmpi ne, %22, %c0_i32_12 : i32
      scf.if %23 {
        %c32_i32_13 = arith.constant 32 : i32
        %24 = arith.muli %arg1, %c32_i32_13 : i32
        %25 = tpu.iota {dimensions = array<i32: 0>} : vector<32x1xi32>
        %26 = vector.broadcast %24 : i32 to vector<32x1xi32>
        %27 = arith.addi %26, %25 : vector<32x1xi32>
        %c25_i32 = arith.constant 25 : i32
        %28 = vector.broadcast %c25_i32 : i32 to vector<32x1xi32>
        %29 = arith.cmpi slt, %27, %28 : vector<32x1xi32>
        %cst_14 = arith.constant 0.000000e+00 : f32
        %30 = vector.shape_cast %29 : vector<32x1xi1> to vector<32x1xi1>
        %31 = vector.broadcast %30 : vector<32x1xi1> to vector<32x128xi1>
        %32 = vector.broadcast %cst_14 : f32 to vector<32x128xf32>
        %33 = arith.select %31, %12, %32 : vector<32x128xi1>, vector<32x128xf32>
        %34 = vector.shape_cast %33 : vector<32x128xf32> to vector<4x8x128xf32>
        %c0_15 = arith.constant 0 : index
        %c0_16 = arith.constant 0 : index
        %35 = vector.load %arg8[%c0_15, %c0_16] : memref<8x128xf32, #tpu.memory_space<vmem>>, vector<8x128xf32>
        %cst_17 = arith.constant dense<0.000000e+00> : vector<8x128xf32>
        %36 = vector.multi_reduction <add>, %34, %cst_17 [0] : vector<4x8x128xf32> to vector<8x128xf32>
        %37 = arith.addf %35, %36 : vector<8x128xf32>
        %c0_18 = arith.constant 0 : index
        %c0_19 = arith.constant 0 : index
        %38 = vector.load %arg8[%c0_18, %c0_19] : memref<8x128xf32, #tpu.memory_space<vmem>>, vector<8x128xf32>
        tpu.vector_store %arg8[%c0_18, %c0_19], %37 {strides = array<i32>} : memref<8x128xf32, #tpu.memory_space<vmem>>, vector<8x128xf32>,
        %c0_20 = arith.constant 0 : index
        %c0_21 = arith.constant 0 : index
        %39 = vector.load %arg9[%c0_20, %c0_21] : memref<8x128xf32, #tpu.memory_space<vmem>>, vector<8x128xf32>
        %40 = arith.mulf %34, %34 : vector<4x8x128xf32>
        %cst_22 = arith.constant dense<0.000000e+00> : vector<8x128xf32>
        %41 = vector.multi_reduction <add>, %40, %cst_22 [0] : vector<4x8x128xf32> to vector<8x128xf32>
        %42 = arith.addf %39, %41 : vector<8x128xf32>
        %c0_23 = arith.constant 0 : index
        %c0_24 = arith.constant 0 : index
        %43 = vector.load %arg9[%c0_23, %c0_24] : memref<8x128xf32, #tpu.memory_space<vmem>>, vector<8x128xf32>
        tpu.vector_store %arg9[%c0_23, %c0_24], %42 {strides = array<i32>} : memref<8x128xf32, #tpu.memory_space<vmem>>, vector<8x128xf32>,
      } else {
      }
    } else {
    }
    %c1_i32_0 = arith.constant 1 : i32
    %3 = arith.cmpi sge, %arg1, %c1_i32_0 : i32
    %4 = arith.extui %3 : i1 to i32
    %c0_i32_1 = arith.constant 0 : i32
    %5 = arith.cmpi ne, %4, %c0_i32_1 : i32
    scf.if %5 {
      %c1_i32_2 = arith.constant 1 : i32
      %6 = arith.subi %arg1, %c1_i32_2 : i32
      %c0 = arith.constant 0 : index
      %c0_3 = arith.constant 0 : index
      %7 = vector.load %arg8[%c0, %c0_3] : memref<8x128xf32, #tpu.memory_space<vmem>>, vector<8x128xf32>
      %cst = arith.constant dense<0.000000e+00> : vector<128xf32>
      %8 = vector.multi_reduction <add>, %7, %cst [0] : vector<8x128xf32> to vector<128xf32>
      %9 = vector.shape_cast %8 : vector<128xf32> to vector<1x128xf32>
      %cst_4 = arith.constant 4.000000e-02 : f32
      %10 = vector.broadcast %cst_4 : f32 to vector<1x128xf32>
      %11 = arith.mulf %9, %10 : vector<1x128xf32>
      %c0_5 = arith.constant 0 : index
      %c0_6 = arith.constant 0 : index
      %12 = vector.load %arg9[%c0_5, %c0_6] : memref<8x128xf32, #tpu.memory_space<vmem>>, vector<8x128xf32>
      %cst_7 = arith.constant dense<0.000000e+00> : vector<128xf32>
      %13 = vector.multi_reduction <add>, %12, %cst_7 [0] : vector<8x128xf32> to vector<128xf32>
      %14 = vector.shape_cast %13 : vector<128xf32> to vector<1x128xf32>
      %cst_8 = arith.constant 4.000000e-02 : f32
      %15 = vector.broadcast %cst_8 : f32 to vector<1x128xf32>
      %16 = arith.mulf %14, %15 : vector<1x128xf32>
      %17 = arith.mulf %11, %11 : vector<1x128xf32>
      %18 = arith.subf %16, %17 : vector<1x128xf32>
      %cst_9 = arith.constant 0.000000e+00 : f32
      %19 = vector.broadcast %cst_9 : f32 to vector<1x128xf32>
      %20 = arith.maximumf %18, %19 : vector<1x128xf32>
      %cst_10 = arith.constant 9.99999974E-6 : f32
      %21 = vector.broadcast %cst_10 : f32 to vector<1x128xf32>
      %22 = arith.addf %20, %21 : vector<1x128xf32>
      %23 = math.rsqrt %22 : vector<1x128xf32>
      %c32_i32 = arith.constant 32 : i32
      %24 = arith.muli %6, %c32_i32 : i32
      %25 = tpu.assume_multiple %24, 16 : i32
      %26 = arith.index_cast %25 : i32 to index
      %c0_11 = arith.constant 0 : index
      %27 = vector.load %arg7[%26, %c0_11] : memref<32x128xbf16, #tpu.memory_space<vmem>>, vector<32x128xbf16>
      %28 = arith.extf %27 : vector<32x128xbf16> to vector<32x128xf32>
      %29 = vector.broadcast %11 : vector<1x128xf32> to vector<32x128xf32>
      %30 = arith.subf %28, %29 : vector<32x128xf32>
      %31 = vector.broadcast %23 : vector<1x128xf32> to vector<32x128xf32>
      %32 = arith.mulf %30, %31 : vector<32x128xf32>
      %c0_12 = arith.constant 0 : index
      %c0_13 = arith.constant 0 : index
      %33 = vector.load %arg4[%c0_12, %c0_13] : memref<1x128xf32, #tpu.memory_space<vmem>>, vector<1x128xf32>
      %34 = vector.broadcast %33 : vector<1x128xf32> to vector<32x128xf32>
      %35 = arith.mulf %32, %34 : vector<32x128xf32>
      %c0_14 = arith.constant 0 : index
      %c0_15 = arith.constant 0 : index
      %36 = vector.load %arg5[%c0_14, %c0_15] : memref<1x128xf32, #tpu.memory_space<vmem>>, vector<1x128xf32>
      %37 = vector.broadcast %36 : vector<1x128xf32> to vector<32x128xf32>
      %38 = arith.addf %35, %37 : vector<32x128xf32>
      %cst_16 = arith.constant 0.000000e+00 : f32
      %39 = vector.broadcast %cst_16 : f32 to vector<32x128xf32>
      %40 = arith.cmpf ogt, %38, %39 : vector<32x128xf32>
      %cst_17 = arith.constant 0.00999999977 : f32
      %41 = vector.broadcast %cst_17 : f32 to vector<32x128xf32>
      %42 = arith.mulf %41, %38 : vector<32x128xf32>
      %43 = arith.select %40, %38, %42 : vector<32x128xi1>, vector<32x128xf32>
      %44 = arith.truncf %43 : vector<32x128xf32> to vector<32x128xbf16>
      %c0_18 = arith.constant 0 : index
      %c0_19 = arith.constant 0 : index
      %c0_20 = arith.constant 0 : index
      %45 = vector.load %arg6[%c0_18, %c0_19, %c0_20] : memref<1x32x128xbf16, #tpu.memory_space<vmem>>, vector<1x32x128xbf16>
      %46 = vector.shape_cast %45 : vector<1x32x128xbf16> to vector<32x128xbf16>
      %47 = vector.shape_cast %44 : vector<32x128xbf16> to vector<1x32x128xbf16>
      tpu.vector_store %arg6[%c0_18, %c0_19, %c0_20], %47 {strides = array<i32>} : memref<1x32x128xbf16, #tpu.memory_space<vmem>>, vector<1x32x128xbf16>,
    } else {
    }
    return
  }
  func.func @transform_0(%arg0: i32, %arg1: i32) -> (i32, i32, i32) {
    %c0_i32 = arith.constant 0 : i32
    %0 = arith.minsi %arg1, %c0_i32 : i32
    %c0_i32_0 = arith.constant 0 : i32
    %c0_i32_1 = arith.constant 0 : i32
    return %arg0, %0, %c0_i32_0 : i32, i32, i32
  }
  func.func @transform_1(%arg0: i32, %arg1: i32) -> (i32, i32) {
    %c0_i32 = arith.constant 0 : i32
    %c0_i32_0 = arith.constant 0 : i32
    %c0_i32_1 = arith.constant 0 : i32
    return %c0_i32, %c0_i32_0 : i32, i32
  }
  func.func @transform_2(%arg0: i32, %arg1: i32) -> (i32, i32) {
    %c0_i32 = arith.constant 0 : i32
    %c0_i32_0 = arith.constant 0 : i32
    %c0_i32_1 = arith.constant 0 : i32
    return %c0_i32, %c0_i32_0 : i32, i32
  }
  func.func @transform_3(%arg0: i32, %arg1: i32) -> (i32, i32) {
    %c0_i32 = arith.constant 0 : i32
    %c0_i32_0 = arith.constant 0 : i32
    %c0_i32_1 = arith.constant 0 : i32
    return %c0_i32, %c0_i32_0 : i32, i32
  }
  func.func @transform_4(%arg0: i32, %arg1: i32) -> (i32, i32, i32) {
    %c1_i32 = arith.constant 1 : i32
    %0 = arith.subi %arg1, %c1_i32 : i32
    %c0_i32 = arith.constant 0 : i32
    %1 = arith.maxsi %0, %c0_i32 : i32
    %c0_i32_0 = arith.constant 0 : i32
    %c0_i32_1 = arith.constant 0 : i32
    return %arg0, %1, %c0_i32_0 : i32, i32, i32
  }
}

module attributes {stable_mosaic.version = 11 : i64} {
  func.func @_norm_kernel(%arg0: i32, %arg1: i32, %arg2: memref<1x48x512xbf16, #tpu.memory_space<vmem>>, %arg3: memref<512x128xbf16, #tpu.memory_space<vmem>>, %arg4: memref<1x128xf32, #tpu.memory_space<vmem>>, %arg5: memref<1x128xf32, #tpu.memory_space<vmem>>, %arg6: memref<128x128xbf16, #tpu.memory_space<vmem>>, %arg7: memref<1x128xf32, #tpu.memory_space<vmem>>, %arg8: memref<1x48x128xbf16, #tpu.memory_space<vmem>>, %arg9: memref<48x128xbf16, #tpu.memory_space<vmem>>, %arg10: memref<8x128xf32, #tpu.memory_space<vmem>>, %arg11: memref<8x128xf32, #tpu.memory_space<vmem>>) attributes {dimension_semantics = [#tpu.dimension_semantics<parallel>, #tpu.dimension_semantics<arbitrary>], iteration_bounds = array<i64: 2, 2>, scalar_prefetch = 0 : i64, scratch_operands = 3 : i64, tpu.core_type = #tpu.core_type<tc>, window_params = [{transform_indices = @transform_0, window_bounds = array<i64: 1, 48, 512>}, {pipeline_mode = #tpu.pipeline_mode<synchronous>, transform_indices = @transform_1, window_bounds = array<i64: 512, 128>}, {pipeline_mode = #tpu.pipeline_mode<synchronous>, transform_indices = @transform_2, window_bounds = array<i64: 1, 128>}, {pipeline_mode = #tpu.pipeline_mode<synchronous>, transform_indices = @transform_3, window_bounds = array<i64: 1, 128>}, {pipeline_mode = #tpu.pipeline_mode<synchronous>, transform_indices = @transform_4, window_bounds = array<i64: 128, 128>}, {pipeline_mode = #tpu.pipeline_mode<synchronous>, transform_indices = @transform_5, window_bounds = array<i64: 1, 128>}, {transform_indices = @transform_6, window_bounds = array<i64: 1, 48, 128>}]} {
    %c1_i32 = arith.constant 1 : i32
    %0 = arith.cmpi slt, %arg1, %c1_i32 : i32
    %1 = arith.extui %0 : i1 to i32
    %c0_i32 = arith.constant 0 : i32
    %2 = arith.cmpi ne, %1, %c0_i32 : i32
    scf.if %2 {
      %c0_i32_2 = arith.constant 0 : i32
      %6 = arith.cmpi eq, %arg1, %c0_i32_2 : i32
      %7 = arith.extui %6 : i1 to i32
      %c0_i32_3 = arith.constant 0 : i32
      %8 = arith.cmpi ne, %7, %c0_i32_3 : i32
      scf.if %8 {
        %cst_13 = arith.constant 0.000000e+00 : f32
        %24 = vector.broadcast %cst_13 : f32 to vector<8x128xf32>
        %c0_14 = arith.constant 0 : index
        %c0_15 = arith.constant 0 : index
        %25 = vector.load %arg10[%c0_14, %c0_15] : memref<8x128xf32, #tpu.memory_space<vmem>>, vector<8x128xf32>
        tpu.vector_store %arg10[%c0_14, %c0_15], %24 {strides = array<i32>} : memref<8x128xf32, #tpu.memory_space<vmem>>, vector<8x128xf32>,
        %cst_16 = arith.constant 0.000000e+00 : f32
        %26 = vector.broadcast %cst_16 : f32 to vector<8x128xf32>
        %c0_17 = arith.constant 0 : index
        %c0_18 = arith.constant 0 : index
        %27 = vector.load %arg11[%c0_17, %c0_18] : memref<8x128xf32, #tpu.memory_space<vmem>>, vector<8x128xf32>
        tpu.vector_store %arg11[%c0_17, %c0_18], %26 {strides = array<i32>} : memref<8x128xf32, #tpu.memory_space<vmem>>, vector<8x128xf32>,
      } else {
      }
      %c0 = arith.constant 0 : index
      %c0_4 = arith.constant 0 : index
      %c0_5 = arith.constant 0 : index
      %9 = vector.load %arg2[%c0, %c0_4, %c0_5] : memref<1x48x512xbf16, #tpu.memory_space<vmem>>, vector<1x48x512xbf16>
      %10 = vector.shape_cast %9 : vector<1x48x512xbf16> to vector<48x512xbf16>
      %c0_6 = arith.constant 0 : index
      %c0_7 = arith.constant 0 : index
      %11 = vector.load %arg3[%c0_6, %c0_7] : memref<512x128xbf16, #tpu.memory_space<vmem>>, vector<512x128xbf16>
      %cst = arith.constant dense<0.000000e+00> : vector<48x128xf32>
      %12 = tpu.matmul %10, %11, %cst {dimension_numbers = #tpu.dot_dimension_numbers<[1], [0], [0], [1], [0, 0, 1, 1], [], []>} : vector<48x512xbf16>, vector<512x128xbf16>, vector<48x128xf32> -> vector<48x128xf32>
      %c48_i32 = arith.constant 48 : i32
      %13 = arith.muli %arg1, %c48_i32 : i32
      %14 = tpu.assume_multiple %13, 16 : i32
      %15 = arith.truncf %12 : vector<48x128xf32> to vector<48x128xbf16>
      %16 = arith.index_cast %14 : i32 to index
      %c0_8 = arith.constant 0 : index
      %17 = vector.load %arg9[%16, %c0_8] : memref<48x128xbf16, #tpu.memory_space<vmem>>, vector<48x128xbf16>
      tpu.vector_store %arg9[%16, %c0_8], %15 {strides = array<i32>} : memref<48x128xbf16, #tpu.memory_space<vmem>>, vector<48x128xbf16>,
      %c0_i32_9 = arith.constant 0 : i32
      %18 = arith.cmpi slt, %arg1, %c0_i32_9 : i32
      %19 = arith.extui %18 : i1 to i32
      %c0_i32_10 = arith.constant 0 : i32
      %20 = arith.cmpi ne, %19, %c0_i32_10 : i32
      scf.if %20 {
        %24 = vector.shape_cast %12 : vector<48x128xf32> to vector<6x8x128xf32>
        %c0_13 = arith.constant 0 : index
        %c0_14 = arith.constant 0 : index
        %25 = vector.load %arg10[%c0_13, %c0_14] : memref<8x128xf32, #tpu.memory_space<vmem>>, vector<8x128xf32>
        %cst_15 = arith.constant dense<0.000000e+00> : vector<8x128xf32>
        %26 = vector.multi_reduction <add>, %24, %cst_15 [0] : vector<6x8x128xf32> to vector<8x128xf32>
        %27 = arith.addf %25, %26 : vector<8x128xf32>
        %c0_16 = arith.constant 0 : index
        %c0_17 = arith.constant 0 : index
        %28 = vector.load %arg10[%c0_16, %c0_17] : memref<8x128xf32, #tpu.memory_space<vmem>>, vector<8x128xf32>
        tpu.vector_store %arg10[%c0_16, %c0_17], %27 {strides = array<i32>} : memref<8x128xf32, #tpu.memory_space<vmem>>, vector<8x128xf32>,
        %c0_18 = arith.constant 0 : index
        %c0_19 = arith.constant 0 : index
        %29 = vector.load %arg11[%c0_18, %c0_19] : memref<8x128xf32, #tpu.memory_space<vmem>>, vector<8x128xf32>
        %30 = arith.mulf %24, %24 : vector<6x8x128xf32>
        %cst_20 = arith.constant dense<0.000000e+00> : vector<8x128xf32>
        %31 = vector.multi_reduction <add>, %30, %cst_20 [0] : vector<6x8x128xf32> to vector<8x128xf32>
        %32 = arith.addf %29, %31 : vector<8x128xf32>
        %c0_21 = arith.constant 0 : index
        %c0_22 = arith.constant 0 : index
        %33 = vector.load %arg11[%c0_21, %c0_22] : memref<8x128xf32, #tpu.memory_space<vmem>>, vector<8x128xf32>
        tpu.vector_store %arg11[%c0_21, %c0_22], %32 {strides = array<i32>} : memref<8x128xf32, #tpu.memory_space<vmem>>, vector<8x128xf32>,
      } else {
      }
      %c0_i32_11 = arith.constant 0 : i32
      %21 = arith.cmpi eq, %arg1, %c0_i32_11 : i32
      %22 = arith.extui %21 : i1 to i32
      %c0_i32_12 = arith.constant 0 : i32
      %23 = arith.cmpi ne, %22, %c0_i32_12 : i32
      scf.if %23 {
        %c48_i32_13 = arith.constant 48 : i32
        %24 = arith.muli %arg1, %c48_i32_13 : i32
        %25 = tpu.iota {dimensions = array<i32: 0>} : vector<48x1xi32>
        %26 = vector.broadcast %24 : i32 to vector<48x1xi32>
        %27 = arith.addi %26, %25 : vector<48x1xi32>
        %c36_i32 = arith.constant 36 : i32
        %28 = vector.broadcast %c36_i32 : i32 to vector<48x1xi32>
        %29 = arith.cmpi slt, %27, %28 : vector<48x1xi32>
        %cst_14 = arith.constant 0.000000e+00 : f32
        %30 = vector.shape_cast %29 : vector<48x1xi1> to vector<48x1xi1>
        %31 = vector.broadcast %30 : vector<48x1xi1> to vector<48x128xi1>
        %32 = vector.broadcast %cst_14 : f32 to vector<48x128xf32>
        %33 = arith.select %31, %12, %32 : vector<48x128xi1>, vector<48x128xf32>
        %34 = vector.shape_cast %33 : vector<48x128xf32> to vector<6x8x128xf32>
        %c0_15 = arith.constant 0 : index
        %c0_16 = arith.constant 0 : index
        %35 = vector.load %arg10[%c0_15, %c0_16] : memref<8x128xf32, #tpu.memory_space<vmem>>, vector<8x128xf32>
        %cst_17 = arith.constant dense<0.000000e+00> : vector<8x128xf32>
        %36 = vector.multi_reduction <add>, %34, %cst_17 [0] : vector<6x8x128xf32> to vector<8x128xf32>
        %37 = arith.addf %35, %36 : vector<8x128xf32>
        %c0_18 = arith.constant 0 : index
        %c0_19 = arith.constant 0 : index
        %38 = vector.load %arg10[%c0_18, %c0_19] : memref<8x128xf32, #tpu.memory_space<vmem>>, vector<8x128xf32>
        tpu.vector_store %arg10[%c0_18, %c0_19], %37 {strides = array<i32>} : memref<8x128xf32, #tpu.memory_space<vmem>>, vector<8x128xf32>,
        %c0_20 = arith.constant 0 : index
        %c0_21 = arith.constant 0 : index
        %39 = vector.load %arg11[%c0_20, %c0_21] : memref<8x128xf32, #tpu.memory_space<vmem>>, vector<8x128xf32>
        %40 = arith.mulf %34, %34 : vector<6x8x128xf32>
        %cst_22 = arith.constant dense<0.000000e+00> : vector<8x128xf32>
        %41 = vector.multi_reduction <add>, %40, %cst_22 [0] : vector<6x8x128xf32> to vector<8x128xf32>
        %42 = arith.addf %39, %41 : vector<8x128xf32>
        %c0_23 = arith.constant 0 : index
        %c0_24 = arith.constant 0 : index
        %43 = vector.load %arg11[%c0_23, %c0_24] : memref<8x128xf32, #tpu.memory_space<vmem>>, vector<8x128xf32>
        tpu.vector_store %arg11[%c0_23, %c0_24], %42 {strides = array<i32>} : memref<8x128xf32, #tpu.memory_space<vmem>>, vector<8x128xf32>,
      } else {
      }
    } else {
    }
    %c1_i32_0 = arith.constant 1 : i32
    %3 = arith.cmpi sge, %arg1, %c1_i32_0 : i32
    %4 = arith.extui %3 : i1 to i32
    %c0_i32_1 = arith.constant 0 : i32
    %5 = arith.cmpi ne, %4, %c0_i32_1 : i32
    scf.if %5 {
      %c1_i32_2 = arith.constant 1 : i32
      %6 = arith.subi %arg1, %c1_i32_2 : i32
      %c0 = arith.constant 0 : index
      %c0_3 = arith.constant 0 : index
      %7 = vector.load %arg10[%c0, %c0_3] : memref<8x128xf32, #tpu.memory_space<vmem>>, vector<8x128xf32>
      %cst = arith.constant dense<0.000000e+00> : vector<128xf32>
      %8 = vector.multi_reduction <add>, %7, %cst [0] : vector<8x128xf32> to vector<128xf32>
      %9 = vector.shape_cast %8 : vector<128xf32> to vector<1x128xf32>
      %cst_4 = arith.constant 0.027777778 : f32
      %10 = vector.broadcast %cst_4 : f32 to vector<1x128xf32>
      %11 = arith.mulf %9, %10 : vector<1x128xf32>
      %c0_5 = arith.constant 0 : index
      %c0_6 = arith.constant 0 : index
      %12 = vector.load %arg11[%c0_5, %c0_6] : memref<8x128xf32, #tpu.memory_space<vmem>>, vector<8x128xf32>
      %cst_7 = arith.constant dense<0.000000e+00> : vector<128xf32>
      %13 = vector.multi_reduction <add>, %12, %cst_7 [0] : vector<8x128xf32> to vector<128xf32>
      %14 = vector.shape_cast %13 : vector<128xf32> to vector<1x128xf32>
      %cst_8 = arith.constant 0.027777778 : f32
      %15 = vector.broadcast %cst_8 : f32 to vector<1x128xf32>
      %16 = arith.mulf %14, %15 : vector<1x128xf32>
      %17 = arith.mulf %11, %11 : vector<1x128xf32>
      %18 = arith.subf %16, %17 : vector<1x128xf32>
      %cst_9 = arith.constant 0.000000e+00 : f32
      %19 = vector.broadcast %cst_9 : f32 to vector<1x128xf32>
      %20 = arith.maximumf %18, %19 : vector<1x128xf32>
      %cst_10 = arith.constant 9.99999974E-6 : f32
      %21 = vector.broadcast %cst_10 : f32 to vector<1x128xf32>
      %22 = arith.addf %20, %21 : vector<1x128xf32>
      %23 = math.rsqrt %22 : vector<1x128xf32>
      %c48_i32 = arith.constant 48 : i32
      %24 = arith.muli %6, %c48_i32 : i32
      %25 = tpu.assume_multiple %24, 16 : i32
      %26 = arith.index_cast %25 : i32 to index
      %c0_11 = arith.constant 0 : index
      %27 = vector.load %arg9[%26, %c0_11] : memref<48x128xbf16, #tpu.memory_space<vmem>>, vector<48x128xbf16>
      %28 = arith.extf %27 : vector<48x128xbf16> to vector<48x128xf32>
      %29 = vector.broadcast %11 : vector<1x128xf32> to vector<48x128xf32>
      %30 = arith.subf %28, %29 : vector<48x128xf32>
      %31 = vector.broadcast %23 : vector<1x128xf32> to vector<48x128xf32>
      %32 = arith.mulf %30, %31 : vector<48x128xf32>
      %c0_12 = arith.constant 0 : index
      %c0_13 = arith.constant 0 : index
      %33 = vector.load %arg4[%c0_12, %c0_13] : memref<1x128xf32, #tpu.memory_space<vmem>>, vector<1x128xf32>
      %34 = vector.broadcast %33 : vector<1x128xf32> to vector<48x128xf32>
      %35 = arith.mulf %32, %34 : vector<48x128xf32>
      %c0_14 = arith.constant 0 : index
      %c0_15 = arith.constant 0 : index
      %36 = vector.load %arg5[%c0_14, %c0_15] : memref<1x128xf32, #tpu.memory_space<vmem>>, vector<1x128xf32>
      %37 = vector.broadcast %36 : vector<1x128xf32> to vector<48x128xf32>
      %38 = arith.addf %35, %37 : vector<48x128xf32>
      %cst_16 = arith.constant 0.000000e+00 : f32
      %39 = vector.broadcast %cst_16 : f32 to vector<48x128xf32>
      %40 = arith.cmpf ogt, %38, %39 : vector<48x128xf32>
      %cst_17 = arith.constant 0.00999999977 : f32
      %41 = vector.broadcast %cst_17 : f32 to vector<48x128xf32>
      %42 = arith.mulf %41, %38 : vector<48x128xf32>
      %43 = arith.select %40, %38, %42 : vector<48x128xi1>, vector<48x128xf32>
      %44 = arith.truncf %43 : vector<48x128xf32> to vector<48x128xbf16>
      %c0_18 = arith.constant 0 : index
      %c0_19 = arith.constant 0 : index
      %45 = vector.load %arg6[%c0_18, %c0_19] : memref<128x128xbf16, #tpu.memory_space<vmem>>, vector<128x128xbf16>
      %cst_20 = arith.constant dense<0.000000e+00> : vector<48x128xf32>
      %46 = tpu.matmul %44, %45, %cst_20 {dimension_numbers = #tpu.dot_dimension_numbers<[1], [0], [0], [1], [0, 0, 1, 1], [], []>} : vector<48x128xbf16>, vector<128x128xbf16>, vector<48x128xf32> -> vector<48x128xf32>
      %c0_21 = arith.constant 0 : index
      %c0_22 = arith.constant 0 : index
      %47 = vector.load %arg7[%c0_21, %c0_22] : memref<1x128xf32, #tpu.memory_space<vmem>>, vector<1x128xf32>
      %48 = vector.broadcast %47 : vector<1x128xf32> to vector<48x128xf32>
      %49 = arith.addf %46, %48 : vector<48x128xf32>
      %50 = arith.truncf %49 : vector<48x128xf32> to vector<48x128xbf16>
      %c0_23 = arith.constant 0 : index
      %c0_24 = arith.constant 0 : index
      %c0_25 = arith.constant 0 : index
      %51 = vector.load %arg8[%c0_23, %c0_24, %c0_25] : memref<1x48x128xbf16, #tpu.memory_space<vmem>>, vector<1x48x128xbf16>
      %52 = vector.shape_cast %51 : vector<1x48x128xbf16> to vector<48x128xbf16>
      %53 = vector.shape_cast %50 : vector<48x128xbf16> to vector<1x48x128xbf16>
      tpu.vector_store %arg8[%c0_23, %c0_24, %c0_25], %53 {strides = array<i32>} : memref<1x48x128xbf16, #tpu.memory_space<vmem>>, vector<1x48x128xbf16>,
    } else {
    }
    return
  }
  func.func @transform_0(%arg0: i32, %arg1: i32) -> (i32, i32, i32) {
    %c0_i32 = arith.constant 0 : i32
    %0 = arith.minsi %arg1, %c0_i32 : i32
    %c0_i32_0 = arith.constant 0 : i32
    %c0_i32_1 = arith.constant 0 : i32
    return %arg0, %0, %c0_i32_0 : i32, i32, i32
  }
  func.func @transform_1(%arg0: i32, %arg1: i32) -> (i32, i32) {
    %c0_i32 = arith.constant 0 : i32
    %c0_i32_0 = arith.constant 0 : i32
    %c0_i32_1 = arith.constant 0 : i32
    return %c0_i32, %c0_i32_0 : i32, i32
  }
  func.func @transform_2(%arg0: i32, %arg1: i32) -> (i32, i32) {
    %c0_i32 = arith.constant 0 : i32
    %c0_i32_0 = arith.constant 0 : i32
    %c0_i32_1 = arith.constant 0 : i32
    return %c0_i32, %c0_i32_0 : i32, i32
  }
  func.func @transform_3(%arg0: i32, %arg1: i32) -> (i32, i32) {
    %c0_i32 = arith.constant 0 : i32
    %c0_i32_0 = arith.constant 0 : i32
    %c0_i32_1 = arith.constant 0 : i32
    return %c0_i32, %c0_i32_0 : i32, i32
  }
  func.func @transform_4(%arg0: i32, %arg1: i32) -> (i32, i32) {
    %c0_i32 = arith.constant 0 : i32
    %c0_i32_0 = arith.constant 0 : i32
    %c0_i32_1 = arith.constant 0 : i32
    return %c0_i32, %c0_i32_0 : i32, i32
  }
  func.func @transform_5(%arg0: i32, %arg1: i32) -> (i32, i32) {
    %c0_i32 = arith.constant 0 : i32
    %c0_i32_0 = arith.constant 0 : i32
    %c0_i32_1 = arith.constant 0 : i32
    return %c0_i32, %c0_i32_0 : i32, i32
  }
  func.func @transform_6(%arg0: i32, %arg1: i32) -> (i32, i32, i32) {
    %c1_i32 = arith.constant 1 : i32
    %0 = arith.subi %arg1, %c1_i32 : i32
    %c0_i32 = arith.constant 0 : i32
    %1 = arith.maxsi %0, %c0_i32 : i32
    %c0_i32_0 = arith.constant 0 : i32
    %c0_i32_1 = arith.constant 0 : i32
    return %arg0, %1, %c0_i32_0 : i32, i32, i32
  }
}

</mosaic_0001>

<llo_original>
// kernel: discriminator_forward.4
$region0: #{discriminator_forward.4}
  #allocation0 [shape = 'u32[]', space=smem, size = 0x4, offset = 0x4, fixed_abs, tag = 'smem constant byte address 0x4 - core index']
  #allocation1 [shape = 'u32[144,128]{1,0:T(1,128)}', space=vmem, size = 0x12000, scoped, tag = 'internal scratch']
  %s0 = inlined_call_operand.vmem [shape: bf16[2,240,32], index: 0, kind: input, shape index: {}]
  %s1 = inlined_call_operand.vmem [shape: bf16[32,128], index: 1, kind: input, shape index: {}]
  %s2 = inlined_call_operand.vmem [shape: f32[1,128], index: 2, kind: input, shape index: {}]
  %s3 = inlined_call_operand.vmem [shape: bf16[2,240,128], index: 3, kind: output, shape index: {}]
  %s4 = sld [smem:[#allocation0]]
  $region45: #{discriminator_forward.4} parent=0
    _
  %s6 = ssub.s32 1, %s4
  %s7 = scalar_select 0, %s6, %s4
  loop: start=0, step=1, limit=4
  $region2: #{discriminator_forward.4} parent=0 // loop_pre_header
    _
  $region3: #{discriminator_forward.4} parent=0 // loop_header
    %s9 = sphi 0, %s13
    %p10 = scmp.ge.s32.totalorder %s9, 4
    %s16 = sphi 0, %s28
    %s17 = sphi 0, %s24
    %s18 = sphi 0, %s16
    %s19 = sphi 0, %s17
    %s20 = sphi 0, %s18
    %s21 = sphi 0, %s19
    %s33 = sphi 0, %s35
    %s36 = sphi 0, %s33
    %s37 = sphi 0, %s36
    %s53 = sphi 0, %s37
    %s57 = sphi 0, %s57
    %s59 = sphi 0, %s57
    %s60 = sphi 0, %s59
    %s74 = sphi 0, %s60
    %s78 = sphi 0, %s78
    %s80 = sphi 0, %s78
    %s81 = sphi 0, %s80
    %s95 = sphi 0, %s81
    %s103 = sphi 0, %s105
    %s106 = sphi 0, %s103
    %s107 = sphi 0, %s106
    %s123 = sphi 0, %s107
  $region4: #{discriminator_forward.4} parent=0 // loop_header_branch
    %12 = sbr.rel (%p10) target = $region8
  $region5: #{discriminator_forward.4} parent=0 // loop_body
    %s14 = ssub.s32 %s9, 1
    %s15 = ssub.s32 %s9, 2
    %s22 = sadd.s32 1, %s17
    %p23 = scmp.ge.s32.totalorder %s22, 1
    %s24 = scalar_select %p23, 0, %s22
    %s25 = sadd.s32 1, %s16
    %s26 = scalar_select %p23, %s25, %s16
    %p27 = scmp.ge.s32.totalorder %s26, 2
    %s28 = scalar_select %p27, 0, %s26
    %s29 = ssub.s32 %s16, %s28
    %s30 = ssub.s32 %s17, %s24
    %s31 = sor.u32 %s29, %s30
    %p32 = scmp.eq.s32.totalorder %s31, 0
    %s34 = sadd.s32 %s33, 1
    %s35 = scalar_select %p32, %s33, %s34
    %p38 = pneg %p32
    %p39 = scmp.eq.s32.totalorder %s9, 1
    %p40 = por %p38, %p39
    %p41 = scmp.ne.s32.totalorder %s33, %s36
    %p42 = scmp.eq.s32.totalorder %s9, 0
    %p43 = por %p41, %p42
    %p44 = scmp.ne.s32.totalorder %s33, %s36
    %p45 = scmp.eq.s32.totalorder %s14, 1
    %p46 = por %p44, %p45
    %p47 = scmp.ne.s32.totalorder %s36, %s37
    %p48 = scmp.eq.s32.totalorder %s14, 0
    %p49 = por %p47, %p48
    %p50 = scmp.ne.s32.totalorder %s36, %s37
    %p51 = scmp.eq.s32.totalorder %s15, 1
    %p52 = por %p50, %p51
    %p54 = scmp.ne.s32.totalorder %s37, %s53
    %p55 = scmp.eq.s32.totalorder %s15, 0
    %p56 = por %p54, %p55
    %s58 = sadd.s32 %s57, 1
    %p61 = scmp.eq.s32.totalorder %s9, 1
    %p62 = scmp.ne.s32.totalorder %s57, %s59
    %p63 = scmp.eq.s32.totalorder %s9, 0
    %p64 = por %p62, %p63
    %p65 = scmp.ne.s32.totalorder %s57, %s59
    %p66 = scmp.eq.s32.totalorder %s14, 1
    %p67 = por %p65, %p66
    %p68 = scmp.ne.s32.totalorder %s59, %s60
    %p69 = scmp.eq.s32.totalorder %s14, 0
    %p70 = por %p68, %p69
    %p71 = scmp.ne.s32.totalorder %s59, %s60
    %p72 = scmp.eq.s32.totalorder %s15, 1
    %p73 = por %p71, %p72
    %p75 = scmp.ne.s32.totalorder %s60, %s74
    %p76 = scmp.eq.s32.totalorder %s15, 0
    %p77 = por %p75, %p76
    %s79 = sadd.s32 %s78, 1
    %p82 = scmp.eq.s32.totalorder %s9, 1
    %p83 = scmp.ne.s32.totalorder %s78, %s80
    %p84 = scmp.eq.s32.totalorder %s9, 0
    %p85 = por %p83, %p84
    %p86 = scmp.ne.s32.totalorder %s78, %s80
    %p87 = scmp.eq.s32.totalorder %s14, 1
    %p88 = por %p86, %p87
    %p89 = scmp.ne.s32.totalorder %s80, %s81
    %p90 = scmp.eq.s32.totalorder %s14, 0
    %p91 = por %p89, %p90
    %p92 = scmp.ne.s32.totalorder %s80, %s81
    %p93 = scmp.eq.s32.totalorder %s15, 1
    %p94 = por %p92, %p93
    %p96 = scmp.ne.s32.totalorder %s81, %s95
    %p97 = scmp.eq.s32.totalorder %s15, 0
    %p98 = por %p96, %p97
    %s99 = ssub.s32 %s16, %s28
    %s100 = ssub.s32 %s17, %s24
    %s101 = sor.u32 %s99, %s100
    %p102 = scmp.eq.s32.totalorder %s101, 0
    %s104 = sadd.s32 %s103, 1
    %s105 = scalar_select %p102, %s103, %s104
    %p108 = pneg %p102
    %p109 = scmp.eq.s32.totalorder %s9, 1
    %p110 = por %p108, %p109
    %p111 = scmp.ne.s32.totalorder %s103, %s106
    %p112 = scmp.eq.s32.totalorder %s9, 0
    %p113 = por %p111, %p112
    %p114 = scmp.ne.s32.totalorder %s103, %s106
    %p115 = scmp.eq.s32.totalorder %s14, 1
    %p116 = por %p114, %p115
    %p117 = scmp.ne.s32.totalorder %s106, %s107
    %p118 = scmp.eq.s32.totalorder %s14, 0
    %p119 = por %p117, %p118
    %p120 = scmp.ne.s32.totalorder %s106, %s107
    %p121 = scmp.eq.s32.totalorder %s15, 1
    %p122 = por %p120, %p121
    %p124 = scmp.ne.s32.totalorder %s107, %s123
    %p125 = scmp.eq.s32.totalorder %s15, 0
    %p126 = por %p124, %p125
    %p127 = scmp.le.s32.totalorder 1, %s9
    %p128 = scmp.lt.s32.totalorder %s9, 3
    %p129 = pnand %p127, %p128
    %p130 = pneg %p129
    // Predicated region
    $region9: #{discriminator_forward.4} parent=5 // pred_check
      _
    $region10: #{discriminator_forward.4} parent=5 // pred_check_branch
      %132 = sbr.rel (%p129) target = $region12
    $region11: #{discriminator_forward.4} parent=5 // pred_region
      %s133 = ssub.s32 %s9, 1
      // Predicated region
      $region13: #{discriminator_forward.4} parent=11 // pred_check
        %p134 = pneg %p70
      $region14: #{discriminator_forward.4} parent=11 // pred_check_branch
        %136 = sbr.rel (%p134) target = $region16
      $region15: #{discriminator_forward.4} parent=11 // pred_region
        _
      $region16: #{discriminator_forward.4} parent=11 // pred_fallthru
        _
      // Predicated region
      $region17: #{discriminator_forward.4} parent=11 // pred_check
        %p137 = pneg %p91
      $region18: #{discriminator_forward.4} parent=11 // pred_check_branch
        %139 = sbr.rel (%p137) target = $region20
      $region19: #{discriminator_forward.4} parent=11 // pred_region
        _
      $region20: #{discriminator_forward.4} parent=11 // pred_fallthru
        _
    $region12: #{discriminator_forward.4} parent=5 // pred_fallthru
      _
    %p140 = scmp.lt.s32.totalorder %s9, 2
    // Predicated region
    $region21: #{discriminator_forward.4} parent=5 // pred_check
      %p141 = pneg %p140
    $region22: #{discriminator_forward.4} parent=5 // pred_check_branch
      %143 = sbr.rel (%p141) target = $region24
    $region23: #{discriminator_forward.4} parent=5 // pred_region
      // Predicated region
      $region25: #{discriminator_forward.4} parent=23 // pred_check
        %p144 = pneg %p43
      $region26: #{discriminator_forward.4} parent=23 // pred_check_branch
        %146 = sbr.rel (%p144) target = $region28
      $region27: #{discriminator_forward.4} parent=23 // pred_region
        %s147 = smul.u32 30, %s17
        %p148 = scmp.lt.s32.totalorder %s16, 1
        %s149 = scalar_select %p148, %s16, 1
        %p150 = scmp.lt.s32.totalorder %s147, 29
        %s151 = scalar_select %p150, %s147, 29
        %s152 = smul.addr %s149, 30
        %s153 = sadd.s32 %s151, %s152
        %s154 = smul.addr %s153, 4
        %s155 = scalar_lea.vmem %s0, %s154
        %s156 = smul.u32 30, %s17
      $region28: #{discriminator_forward.4} parent=23 // pred_fallthru
        _
    $region24: #{discriminator_forward.4} parent=5 // pred_fallthru
      _
    %p157 = scmp.le.s32.totalorder 1, %s9
    %p158 = scmp.lt.s32.totalorder %s9, 3
    %p159 = pnand %p157, %p158
    %p160 = pneg %p159
    // Predicated region
    $region29: #{discriminator_forward.4} parent=5 // pred_check
      _
    $region30: #{discriminator_forward.4} parent=5 // pred_check_branch
      %162 = sbr.rel (%p159) target = $region32
    $region31: #{discriminator_forward.4} parent=5 // pred_region
      %s163 = ssub.s32 %s9, 1
      %s164 = smul.u32 30, %s19
      %p165 = scmp.lt.s32.totalorder %s18, 1
      %s166 = scalar_select %p165, %s18, 1
      %p167 = scmp.lt.s32.totalorder %s164, 29
      %s168 = scalar_select %p167, %s164, 29
      %s169 = smul.addr %s166, 30
      %s170 = sadd.s32 %s168, %s169
      %s171 = smul.addr %s170, 4
      %s172 = scalar_lea.vmem %s0, %s171
      %p173 = pneg %p49
      %p174 = pneg %p46
      %p175 = pneg %p70
      %p176 = pneg %p67
      %p177 = pneg %p91
      %p178 = pneg %p88
      %p179 = pneg %p119
      %p180 = pneg %p116
      %s181 = smul.u32 30, %s19
      %p182 = scmp.lt.s32.totalorder %s18, 1
      %s183 = scalar_select %p182, %s18, 1
      %p184 = scmp.lt.s32.totalorder %s181, 29
      %s185 = scalar_select %p184, %s181, 29
      %s186 = smul.addr %s183, 30
      %s187 = sadd.s32 %s185, %s186
      %s188 = smul.addr %s187, 4
      %s189 = scalar_lea.vmem %s3, %s188
      %s190 = smul.u32 30, %s19
      %p191 = scmp.lt.s32.totalorder %s18, 1
      %s192 = scalar_select %p191, %s18, 1
      %p193 = scmp.lt.s32.totalorder %s190, 29
      %s194 = scalar_select %p193, %s190, 29
      %s195 = smul.addr %s192, 30
      %s196 = sadd.s32 %s194, %s195
      %s197 = smul.addr %s196, 4
      %s198 = scalar_lea.vmem %s0, %s197
      %s199 = smul.u32 30, %s19
      %s200 = smul.u32 30, %s19
      %p201 = scmp.lt.s32.totalorder %s18, 1
      %s202 = scalar_select %p201, %s18, 1
      %p203 = scmp.lt.s32.totalorder %s200, 29
      %s204 = scalar_select %p203, %s200, 29
      %s205 = smul.addr %s202, 30
      %s206 = sadd.s32 %s204, %s205
      %s207 = smul.addr %s206, 4
      %s208 = scalar_lea.vmem %s3, %s207
      %s209 = smul.u32 30, %s19
      %v211 = vld [vmem:[%s198] sm:$0xf]
      %v212 = vld [vmem:[%s198 + $0x4] sm:$0xf]
      %v213 = vld [vmem:[%s198 + $0x8] sm:$0xf]
      %v214 = vld [vmem:[%s198 + $0xc] sm:$0xf]
      %v215 = vld [vmem:[%s198 + $0x10] sm:$0xf]
      %v216 = vld [vmem:[%s198 + $0x14] sm:$0xf]
      %v217 = vld [vmem:[%s198 + $0x18] sm:$0xf]
      %v218 = vld [vmem:[%s198 + $0x1c] sm:$0xf]
      %v219 = vld [vmem:[%s198 + $0x20] sm:$0xf]
      %v220 = vld [vmem:[%s198 + $0x24] sm:$0xf]
      %v221 = vld [vmem:[%s198 + $0x28] sm:$0xf]
      %v222 = vld [vmem:[%s198 + $0x2c] sm:$0xf]
      %v223 = vld [vmem:[%s198 + $0x30] sm:$0xf]
      %v224 = vld [vmem:[%s198 + $0x34] sm:$0xf]
      %v225 = vld [vmem:[%s198 + $0x38] sm:$0xf]
      %v226 = vld [vmem:[%s198 + $0x3c] sm:$0xf]
      %v227 = vld [vmem:[%s198 + $0x40] sm:$0xf]
      %v228 = vld [vmem:[%s198 + $0x44] sm:$0xf]
      %v229 = vld [vmem:[%s198 + $0x48] sm:$0xf]
      %v230 = vld [vmem:[%s198 + $0x4c] sm:$0xf]
      %v231 = vld [vmem:[%s198 + $0x50] sm:$0xf]
      %v232 = vld [vmem:[%s198 + $0x54] sm:$0xf]
      %v233 = vld [vmem:[%s198 + $0x58] sm:$0xf]
      %v234 = vld [vmem:[%s198 + $0x5c] sm:$0xf]
      %v235 = vld [vmem:[%s198 + $0x60] sm:$0xf]
      %v236 = vld [vmem:[%s198 + $0x64] sm:$0xf]
      %v237 = vld [vmem:[%s198 + $0x68] sm:$0xf]
      %v238 = vld [vmem:[%s198 + $0x6c] sm:$0xf]
      %v239 = vld [vmem:[%s198 + $0x70] sm:$0xf]
      %v240 = vld [vmem:[%s198 + $0x74] sm:$0xf]
      %v241 = vld [vmem:[%s1] sm:$0xf]
      %v242 = vld [vmem:[%s1 + $0x4] sm:$0xf]
      %v243 = vld [vmem:[%s1 + $0x8] sm:$0xf]
      %v244 = vld [vmem:[%s1 + $0xc] sm:$0xf]
      %v245 = vld [vmem:[%s2] sm:$0x1]
      %v247 = vlaneseq
      %v248 = vshrl.u32 %v247, 7
      %v249 = vsub.s32 0, %v248
      %v250 = vrot.slane %v245, %v249
      %v282 = vunpack.c.l.b16 %v211
      %v283 = vunpack.c.l.b16 %v212
      %v284 = vunpack.c.l.b16 %v213
      %v285 = vunpack.c.l.b16 %v214
      %v286 = vunpack.c.l.b16 %v215
      %v287 = vunpack.c.l.b16 %v216
      %v288 = vunpack.c.l.b16 %v217
      %v289 = vunpack.c.l.b16 %v218
      %v290 = vunpack.c.l.b16 %v219
      %v291 = vunpack.c.l.b16 %v220
      %v292 = vunpack.c.l.b16 %v221
      %v293 = vunpack.c.l.b16 %v222
      %v294 = vunpack.c.l.b16 %v223
      %v295 = vunpack.c.l.b16 %v224
      %v296 = vunpack.c.l.b16 %v225
      %v297 = vunpack.c.l.b16 %v226
      %v298 = vunpack.c.l.b16 %v227
      %v299 = vunpack.c.l.b16 %v228
      %v300 = vunpack.c.l.b16 %v229
      %v301 = vunpack.c.l.b16 %v230
      %v302 = vunpack.c.l.b16 %v231
      %v303 = vunpack.c.l.b16 %v232
      %v304 = vunpack.c.l.b16 %v233
      %v305 = vunpack.c.l.b16 %v234
      %v306 = vunpack.c.l.b16 %v235
      %v307 = vunpack.c.l.b16 %v236
      %v308 = vunpack.c.l.b16 %v237
      %v309 = vunpack.c.l.b16 %v238
      %v310 = vunpack.c.l.b16 %v239
      %v311 = vunpack.c.l.b16 %v240
      %v312 = vpack.c.b16 %v283, %v282
      %v313 = vpack.c.b16 %v285, %v284
      %v314 = vpack.c.b16 %v287, %v286
      %v315 = vpack.c.b16 %v289, %v288
      %v316 = vpack.c.b16 %v291, %v290
      %v317 = vpack.c.b16 %v293, %v292
      %v318 = vpack.c.b16 %v295, %v294
      %v319 = vpack.c.b16 %v297, %v296
      %v320 = vpack.c.b16 %v299, %v298
      %v321 = vpack.c.b16 %v301, %v300
      %v322 = vpack.c.b16 %v303, %v302
      %v323 = vpack.c.b16 %v305, %v304
      %v324 = vpack.c.b16 %v307, %v306
      %v325 = vpack.c.b16 %v309, %v308
      %v326 = vpack.c.b16 %v311, %v310
      %v331 = vunpack.c.l.b16 %v241
      %v332 = vunpack.c.l.b16 %v242
      %v333 = vunpack.c.l.b16 %v243
      %v334 = vunpack.c.l.b16 %v244
      %v335 = vpack.c.b16 %v332, %v331
      %v336 = vpack.c.b16 %v334, %v333
      %vm339 = vcmask 261120
      %v341 = vsel %vm339, %v312, 0
      %v344 = vsel %vm339, %v313, 0
      %v347 = vsel %vm339, %v314, 0
      %v350 = vsel %vm339, %v315, 0
      %v353 = vsel %vm339, %v316, 0
      %v356 = vsel %vm339, %v317, 0
      %v359 = vsel %vm339, %v318, 0
      %v362 = vsel %vm339, %v319, 0
      %v365 = vsel %vm339, %v320, 0
      %v368 = vsel %vm339, %v321, 0
      %v371 = vsel %vm339, %v322, 0
      %v374 = vsel %vm339, %v323, 0
      %v377 = vsel %vm339, %v324, 0
      %v380 = vsel %vm339, %v325, 0
      %v383 = vsel %vm339, %v326, 0
      %385 = vmatprep.subr.bf16.mxu0 0
      %386 = vmatpush1.bf16.msra.mxu0 0
      %387 = vmatprep.subr.bf16.mxu0 0
      %388 = vmatpush1.bf16.msra.mxu0 0
      %389 = vmatprep.subr.bf16.mxu0 0
      %390 = vmatpush1.bf16.msra.mxu0 0
      %391 = vmatprep.subr.bf16.mxu0 0
      %392 = vmatpush1.bf16.msra.mxu0 0
      %393 = vmatprep.subr.bf16.mxu0 0
      %394 = vmatpush1.bf16.msra.mxu0 0
      %395 = vmatprep.subr.bf16.mxu0 0
      %396 = vmatpush1.bf16.msra.mxu0 0
      %397 = vmatprep.subr.bf16.mxu0 0
      %398 = vmatpush1.bf16.msra.mxu0 %v336
      %399 = vmatprep.subr.bf16.mxu0 0
      %400 = vmatpush1.bf16.msra.mxu0 %v335
      %401 = vmatprep.subr.bf16.mxu0 0
      %402 = vmatpush2.bf16.msra.mxu0 0
      %403 = vmatprep.subr.bf16.mxu0 0
      %404 = vmatpush2.bf16.msra.mxu0 0
      %405 = vmatprep.subr.bf16.mxu0 0
      %406 = vmatpush2.bf16.msra.mxu0 0
      %407 = vmatprep.subr.bf16.mxu0 0
      %408 = vmatpush2.bf16.msra.mxu0 0
      %409 = vmatprep.subr.bf16.mxu0 0
      %410 = vmatpush2.bf16.msra.mxu0 0
      %411 = vmatprep.subr.bf16.mxu0 0
      %412 = vmatpush2.bf16.msra.mxu0 0
      %413 = vmatprep.subr.bf16.mxu0 0
      %414 = vmatpush2.bf16.msra.mxu0 0
      %415 = vmatprep.subr.bf16.mxu0 0
      %416 = vmatpush2.bf16.msra.mxu0 0
      %417 = vmatprep.mubr.bf16.mxu0 0
      %418 = vmatmul.mubr.bf16.gmra.mxu0 %v341
      %v419 = vpop.f32.mrf.mxu0
      %v420 = vadd.f32 %v250, %v419
      %v421 = vpop.f32.mrf.mxu0
      %v422 = vpop.f32.mrf.mxu0
      %v423 = vadd.f32 %v250, %v422
      %v424 = vpop.f32.mrf.mxu0
      %425 = vmatprep.mubr.bf16.mxu0 0
      %426 = vmatmul.mubr.bf16.gmra.mxu0 %v344
      %v427 = vpop.f32.mrf.mxu0
      %v428 = vadd.f32 %v250, %v427
      %v429 = vpop.f32.mrf.mxu0
      %v430 = vpop.f32.mrf.mxu0
      %v431 = vadd.f32 %v250, %v430
      %v432 = vpop.f32.mrf.mxu0
      %433 = vmatprep.mubr.bf16.mxu0 0
      %434 = vmatmul.mubr.bf16.gmra.mxu0 %v347
      %v435 = vpop.f32.mrf.mxu0
      %v436 = vadd.f32 %v250, %v435
      %v437 = vpop.f32.mrf.mxu0
      %v438 = vpop.f32.mrf.mxu0
      %v439 = vadd.f32 %v250, %v438
      %v440 = vpop.f32.mrf.mxu0
      %441 = vmatprep.mubr.bf16.mxu0 0
      %442 = vmatmul.mubr.bf16.gmra.mxu0 %v350
      %v443 = vpop.f32.mrf.mxu0
      %v444 = vadd.f32 %v250, %v443
      %v445 = vpop.f32.mrf.mxu0
      %v446 = vpop.f32.mrf.mxu0
      %v447 = vadd.f32 %v250, %v446
      %v448 = vpop.f32.mrf.mxu0
      %449 = vmatprep.mubr.bf16.mxu0 0
      %450 = vmatmul.mubr.bf16.gmra.mxu0 %v353
      %v451 = vpop.f32.mrf.mxu0
      %v452 = vadd.f32 %v250, %v451
      %v453 = vpop.f32.mrf.mxu0
      %v454 = vpop.f32.mrf.mxu0
      %v455 = vadd.f32 %v250, %v454
      %v456 = vpop.f32.mrf.mxu0
      %457 = vmatprep.mubr.bf16.mxu0 0
      %458 = vmatmul.mubr.bf16.gmra.mxu0 %v356
      %v459 = vpop.f32.mrf.mxu0
      %v460 = vadd.f32 %v250, %v459
      %v461 = vpop.f32.mrf.mxu0
      %v462 = vpop.f32.mrf.mxu0
      %v463 = vadd.f32 %v250, %v462
      %v464 = vpop.f32.mrf.mxu0
      %465 = vmatprep.mubr.bf16.mxu0 0
      %466 = vmatmul.mubr.bf16.gmra.mxu0 %v359
      %v467 = vpop.f32.mrf.mxu0
      %v468 = vadd.f32 %v250, %v467
      %v469 = vpop.f32.mrf.mxu0
      %v470 = vpop.f32.mrf.mxu0
      %v471 = vadd.f32 %v250, %v470
      %v472 = vpop.f32.mrf.mxu0
      %473 = vmatprep.mubr.bf16.mxu0 0
      %474 = vmatmul.mubr.bf16.gmra.mxu0 %v362
      %v475 = vpop.f32.mrf.mxu0
      %v476 = vadd.f32 %v250, %v475
      %v477 = vpop.f32.mrf.mxu0
      %v478 = vpop.f32.mrf.mxu0
      %v479 = vadd.f32 %v250, %v478
      %v480 = vpop.f32.mrf.mxu0
      %481 = vmatprep.mubr.bf16.mxu0 0
      %482 = vmatmul.mubr.bf16.gmra.mxu0 %v365
      %v483 = vpop.f32.mrf.mxu0
      %v484 = vadd.f32 %v250, %v483
      %v485 = vpop.f32.mrf.mxu0
      %v486 = vpop.f32.mrf.mxu0
      %v487 = vadd.f32 %v250, %v486
      %v488 = vpop.f32.mrf.mxu0
      %489 = vmatprep.mubr.bf16.mxu0 0
      %490 = vmatmul.mubr.bf16.gmra.mxu0 %v368
      %v491 = vpop.f32.mrf.mxu0
      %v492 = vadd.f32 %v250, %v491
      %v493 = vpop.f32.mrf.mxu0
      %v494 = vpop.f32.mrf.mxu0
      %v495 = vadd.f32 %v250, %v494
      %v496 = vpop.f32.mrf.mxu0
      %497 = vmatprep.mubr.bf16.mxu0 0
      %498 = vmatmul.mubr.bf16.gmra.mxu0 %v371
      %v499 = vpop.f32.mrf.mxu0
      %v500 = vadd.f32 %v250, %v499
      %v501 = vpop.f32.mrf.mxu0
      %v502 = vpop.f32.mrf.mxu0
      %v503 = vadd.f32 %v250, %v502
      %v504 = vpop.f32.mrf.mxu0
      %505 = vmatprep.mubr.bf16.mxu0 0
      %506 = vmatmul.mubr.bf16.gmra.mxu0 %v374
      %v507 = vpop.f32.mrf.mxu0
      %v508 = vadd.f32 %v250, %v507
      %v509 = vpop.f32.mrf.mxu0
      %v510 = vpop.f32.mrf.mxu0
      %v511 = vadd.f32 %v250, %v510
      %v512 = vpop.f32.mrf.mxu0
      %513 = vmatprep.mubr.bf16.mxu0 0
      %514 = vmatmul.mubr.bf16.gmra.mxu0 %v377
      %v515 = vpop.f32.mrf.mxu0
      %v516 = vadd.f32 %v250, %v515
      %v517 = vpop.f32.mrf.mxu0
      %v518 = vpop.f32.mrf.mxu0
      %v519 = vadd.f32 %v250, %v518
      %v520 = vpop.f32.mrf.mxu0
      %521 = vmatprep.mubr.bf16.mxu0 0
      %522 = vmatmul.mubr.bf16.gmra.mxu0 %v380
      %v523 = vpop.f32.mrf.mxu0
      %v524 = vadd.f32 %v250, %v523
      %v525 = vpop.f32.mrf.mxu0
      %v526 = vpop.f32.mrf.mxu0
      %v527 = vadd.f32 %v250, %v526
      %v528 = vpop.f32.mrf.mxu0
      %529 = vmatprep.mubr.bf16.mxu0 0
      %530 = vmatmul.mubr.bf16.gmra.mxu0 %v383
      %v531 = vpop.f32.mrf.mxu0
      %v532 = vadd.f32 %v250, %v531
      %v533 = vpop.f32.mrf.mxu0
      %v534 = vpop.f32.mrf.mxu0
      %v535 = vadd.f32 %v250, %v534
      %v536 = vpop.f32.mrf.mxu0
      %537 = vdwg.mxu0
      %vm538 = vcmp.gt.f32.partialorder %v420, 0.0
      %vm539 = vcmp.gt.f32.partialorder %v423, 0.0
      %vm540 = vcmp.gt.f32.partialorder %v428, 0.0
      %vm541 = vcmp.gt.f32.partialorder %v431, 0.0
      %vm542 = vcmp.gt.f32.partialorder %v436, 0.0
      %vm543 = vcmp.gt.f32.partialorder %v439, 0.0
      %vm544 = vcmp.gt.f32.partialorder %v444, 0.0
      %vm545 = vcmp.gt.f32.partialorder %v447, 0.0
      %vm546 = vcmp.gt.f32.partialorder %v452, 0.0
      %vm547 = vcmp.gt.f32.partialorder %v455, 0.0
      %vm548 = vcmp.gt.f32.partialorder %v460, 0.0
      %vm549 = vcmp.gt.f32.partialorder %v463, 0.0
      %vm550 = vcmp.gt.f32.partialorder %v468, 0.0
      %vm551 = vcmp.gt.f32.partialorder %v471, 0.0
      %vm552 = vcmp.gt.f32.partialorder %v476, 0.0
      %vm553 = vcmp.gt.f32.partialorder %v479, 0.0
      %vm554 = vcmp.gt.f32.partialorder %v484, 0.0
      %vm555 = vcmp.gt.f32.partialorder %v487, 0.0
      %vm556 = vcmp.gt.f32.partialorder %v492, 0.0
      %vm557 = vcmp.gt.f32.partialorder %v495, 0.0
      %vm558 = vcmp.gt.f32.partialorder %v500, 0.0
      %vm559 = vcmp.gt.f32.partialorder %v503, 0.0
      %vm560 = vcmp.gt.f32.partialorder %v508, 0.0
      %vm561 = vcmp.gt.f32.partialorder %v511, 0.0
      %vm562 = vcmp.gt.f32.partialorder %v516, 0.0
      %vm563 = vcmp.gt.f32.partialorder %v519, 0.0
      %vm564 = vcmp.gt.f32.partialorder %v524, 0.0
      %vm565 = vcmp.gt.f32.partialorder %v527, 0.0
      %vm566 = vcmp.gt.f32.partialorder %v532, 0.0
      %vm567 = vcmp.gt.f32.partialorder %v535, 0.0
      %v568 = vmul.f32 %v420, 0.01
      %v569 = vmul.f32 %v423, 0.01
      %v570 = vmul.f32 %v428, 0.01
      %v571 = vmul.f32 %v431, 0.01
      %v572 = vmul.f32 %v436, 0.01
      %v573 = vmul.f32 %v439, 0.01
      %v574 = vmul.f32 %v444, 0.01
      %v575 = vmul.f32 %v447, 0.01
      %v576 = vmul.f32 %v452, 0.01
      %v577 = vmul.f32 %v455, 0.01
      %v578 = vmul.f32 %v460, 0.01
      %v579 = vmul.f32 %v463, 0.01
      %v580 = vmul.f32 %v468, 0.01
      %v581 = vmul.f32 %v471, 0.01
      %v582 = vmul.f32 %v476, 0.01
      %v583 = vmul.f32 %v479, 0.01
      %v584 = vmul.f32 %v484, 0.01
      %v585 = vmul.f32 %v487, 0.01
      %v586 = vmul.f32 %v492, 0.01
      %v587 = vmul.f32 %v495, 0.01
      %v588 = vmul.f32 %v500, 0.01
      %v589 = vmul.f32 %v503, 0.01
      %v590 = vmul.f32 %v508, 0.01
      %v591 = vmul.f32 %v511, 0.01
      %v592 = vmul.f32 %v516, 0.01
      %v593 = vmul.f32 %v519, 0.01
      %v594 = vmul.f32 %v524, 0.01
      %v595 = vmul.f32 %v527, 0.01
      %v596 = vmul.f32 %v532, 0.01
      %v597 = vmul.f32 %v535, 0.01
      %v598 = vsel %vm538, %v420, %v568
      %v599 = vsel %vm539, %v423, %v569
      %v600 = vsel %vm540, %v428, %v570
      %v601 = vsel %vm541, %v431, %v571
      %v602 = vsel %vm542, %v436, %v572
      %v603 = vsel %vm543, %v439, %v573
      %v604 = vsel %vm544, %v444, %v574
      %v605 = vsel %vm545, %v447, %v575
      %v606 = vsel %vm546, %v452, %v576
      %v607 = vsel %vm547, %v455, %v577
      %v608 = vsel %vm548, %v460, %v578
      %v609 = vsel %vm549, %v463, %v579
      %v610 = vsel %vm550, %v468, %v580
      %v611 = vsel %vm551, %v471, %v581
      %v612 = vsel %vm552, %v476, %v582
      %v613 = vsel %vm553, %v479, %v583
      %v614 = vsel %vm554, %v484, %v584
      %v615 = vsel %vm555, %v487, %v585
      %v616 = vsel %vm556, %v492, %v586
      %v617 = vsel %vm557, %v495, %v587
      %v618 = vsel %vm558, %v500, %v588
      %v619 = vsel %vm559, %v503, %v589
      %v620 = vsel %vm560, %v508, %v590
      %v621 = vsel %vm561, %v511, %v591
      %v622 = vsel %vm562, %v516, %v592
      %v623 = vsel %vm563, %v519, %v593
      %v624 = vsel %vm564, %v524, %v594
      %v625 = vsel %vm565, %v527, %v595
      %v626 = vsel %vm566, %v532, %v596
      %v627 = vsel %vm567, %v535, %v597
      %v628 = vpack.c.bf16 %v599, %v598
      %v629 = vpack.c.bf16 %v601, %v600
      %v630 = vpack.c.bf16 %v603, %v602
      %v631 = vpack.c.bf16 %v605, %v604
      %v632 = vpack.c.bf16 %v607, %v606
      %v633 = vpack.c.bf16 %v609, %v608
      %v634 = vpack.c.bf16 %v611, %v610
      %v635 = vpack.c.bf16 %v613, %v612
      %v636 = vpack.c.bf16 %v615, %v614
      %v637 = vpack.c.bf16 %v617, %v616
      %v638 = vpack.c.bf16 %v619, %v618
      %v639 = vpack.c.bf16 %v621, %v620
      %v640 = vpack.c.bf16 %v623, %v622
      %v641 = vpack.c.bf16 %v625, %v624
      %v642 = vpack.c.bf16 %v627, %v626
      %v658 = vunpack.c.l.b16 %v628
      %v659 = vunpack.c.h.b16 %v628
      %v660 = vunpack.c.l.b16 %v629
      %v661 = vunpack.c.h.b16 %v629
      %v662 = vunpack.c.l.b16 %v630
      %v663 = vunpack.c.h.b16 %v630
      %v664 = vunpack.c.l.b16 %v631
      %v665 = vunpack.c.h.b16 %v631
      %v666 = vunpack.c.l.b16 %v632
      %v667 = vunpack.c.h.b16 %v632
      %v668 = vunpack.c.l.b16 %v633
      %v669 = vunpack.c.h.b16 %v633
      %v670 = vunpack.c.l.b16 %v634
      %v671 = vunpack.c.h.b16 %v634
      %v672 = vunpack.c.l.b16 %v635
      %v673 = vunpack.c.h.b16 %v635
      %v674 = vunpack.c.l.b16 %v636
      %v675 = vunpack.c.h.b16 %v636
      %v676 = vunpack.c.l.b16 %v637
      %v677 = vunpack.c.h.b16 %v637
      %v678 = vunpack.c.l.b16 %v638
      %v679 = vunpack.c.h.b16 %v638
      %v680 = vunpack.c.l.b16 %v639
      %v681 = vunpack.c.h.b16 %v639
      %v682 = vunpack.c.l.b16 %v640
      %v683 = vunpack.c.h.b16 %v640
      %v684 = vunpack.c.l.b16 %v641
      %v685 = vunpack.c.h.b16 %v641
      %v686 = vunpack.c.l.b16 %v642
      %v687 = vunpack.c.h.b16 %v642
      %v688 = vpack.c.b16 %v658, %v658
      %v689 = vpack.c.b16 %v659, %v659
      %v690 = vpack.c.b16 %v660, %v660
      %v691 = vpack.c.b16 %v661, %v661
      %v692 = vpack.c.b16 %v662, %v662
      %v693 = vpack.c.b16 %v663, %v663
      %v694 = vpack.c.b16 %v664, %v664
      %v695 = vpack.c.b16 %v665, %v665
      %v696 = vpack.c.b16 %v666, %v666
      %v697 = vpack.c.b16 %v667, %v667
      %v698 = vpack.c.b16 %v668, %v668
      %v699 = vpack.c.b16 %v669, %v669
      %v700 = vpack.c.b16 %v670, %v670
      %v701 = vpack.c.b16 %v671, %v671
      %v702 = vpack.c.b16 %v672, %v672
      %v703 = vpack.c.b16 %v673, %v673
      %v704 = vpack.c.b16 %v674, %v674
      %v705 = vpack.c.b16 %v675, %v675
      %v706 = vpack.c.b16 %v676, %v676
      %v707 = vpack.c.b16 %v677, %v677
      %v708 = vpack.c.b16 %v678, %v678
      %v709 = vpack.c.b16 %v679, %v679
      %v710 = vpack.c.b16 %v680, %v680
      %v711 = vpack.c.b16 %v681, %v681
      %v712 = vpack.c.b16 %v682, %v682
      %v713 = vpack.c.b16 %v683, %v683
      %v714 = vpack.c.b16 %v684, %v684
      %v715 = vpack.c.b16 %v685, %v685
      %v716 = vpack.c.b16 %v686, %v686
      %v717 = vpack.c.b16 %v687, %v687
      %748 = vst [vmem:[%s208] sm:$0xf] %v688
      %749 = vst [vmem:[%s208 + $0x4] sm:$0xf] %v689
      %750 = vst [vmem:[%s208 + $0x8] sm:$0xf] %v690
      %751 = vst [vmem:[%s208 + $0xc] sm:$0xf] %v691
      %752 = vst [vmem:[%s208 + $0x10] sm:$0xf] %v692
      %753 = vst [vmem:[%s208 + $0x14] sm:$0xf] %v693
      %754 = vst [vmem:[%s208 + $0x18] sm:$0xf] %v694
      %755 = vst [vmem:[%s208 + $0x1c] sm:$0xf] %v695
      %756 = vst [vmem:[%s208 + $0x20] sm:$0xf] %v696
      %757 = vst [vmem:[%s208 + $0x24] sm:$0xf] %v697
      %758 = vst [vmem:[%s208 + $0x28] sm:$0xf] %v698
      %759 = vst [vmem:[%s208 + $0x2c] sm:$0xf] %v699
      %760 = vst [vmem:[%s208 + $0x30] sm:$0xf] %v700
      %761 = vst [vmem:[%s208 + $0x34] sm:$0xf] %v701
      %762 = vst [vmem:[%s208 + $0x38] sm:$0xf] %v702
      %763 = vst [vmem:[%s208 + $0x3c] sm:$0xf] %v703
      %764 = vst [vmem:[%s208 + $0x40] sm:$0xf] %v704
      %765 = vst [vmem:[%s208 + $0x44] sm:$0xf] %v705
      %766 = vst [vmem:[%s208 + $0x48] sm:$0xf] %v706
      %767 = vst [vmem:[%s208 + $0x4c] sm:$0xf] %v707
      %768 = vst [vmem:[%s208 + $0x50] sm:$0xf] %v708
      %769 = vst [vmem:[%s208 + $0x54] sm:$0xf] %v709
      %770 = vst [vmem:[%s208 + $0x58] sm:$0xf] %v710
      %771 = vst [vmem:[%s208 + $0x5c] sm:$0xf] %v711
      %772 = vst [vmem:[%s208 + $0x60] sm:$0xf] %v712
      %773 = vst [vmem:[%s208 + $0x64] sm:$0xf] %v713
      %774 = vst [vmem:[%s208 + $0x68] sm:$0xf] %v714
      %775 = vst [vmem:[%s208 + $0x6c] sm:$0xf] %v715
      %776 = vst [vmem:[%s208 + $0x70] sm:$0xf] %v716
      %777 = vst [vmem:[%s208 + $0x74] sm:$0xf] %v717
      %s778 = smul.u32 30, %s19
      %p779 = scmp.lt.s32.totalorder %s18, 1
      %s780 = scalar_select %p779, %s18, 1
      %p781 = scmp.lt.s32.totalorder %s778, 29
      %s782 = scalar_select %p781, %s778, 29
      %s783 = smul.addr %s780, 30
      %s784 = sadd.s32 %s782, %s783
      %s785 = smul.addr %s784, 4
      %s786 = scalar_lea.vmem %s3, %s785
      // Predicated region
      $region33: #{discriminator_forward.4} parent=31 // pred_check
        %p787 = pneg %p116
      $region34: #{discriminator_forward.4} parent=31 // pred_check_branch
        %789 = sbr.rel (%p787) target = $region36
      $region35: #{discriminator_forward.4} parent=31 // pred_region
        %s790 = smul.u32 30, %s19
      $region36: #{discriminator_forward.4} parent=31 // pred_fallthru
        _
    $region32: #{discriminator_forward.4} parent=5 // pred_fallthru
      _
    %p791 = scmp.le.s32.totalorder 2, %s9
    // Predicated region
    $region37: #{discriminator_forward.4} parent=5 // pred_check
      %p792 = pneg %p791
    $region38: #{discriminator_forward.4} parent=5 // pred_check_branch
      %794 = sbr.rel (%p792) target = $region40
    $region39: #{discriminator_forward.4} parent=5 // pred_region
      %s795 = ssub.s32 %s9, 2
      // Predicated region
      $region41: #{discriminator_forward.4} parent=39 // pred_check
        %p796 = pneg %p122
      $region42: #{discriminator_forward.4} parent=39 // pred_check_branch
        %798 = sbr.rel (%p796) target = $region44
      $region43: #{discriminator_forward.4} parent=39 // pred_region
        %s799 = smul.u32 30, %s21
        %p800 = scmp.lt.s32.totalorder %s20, 1
        %s801 = scalar_select %p800, %s20, 1
        %p802 = scmp.lt.s32.totalorder %s799, 29
        %s803 = scalar_select %p802, %s799, 29
        %s804 = smul.addr %s801, 30
        %s805 = sadd.s32 %s803, %s804
        %s806 = smul.addr %s805, 4
        %s807 = scalar_lea.vmem %s3, %s806
      $region44: #{discriminator_forward.4} parent=39 // pred_fallthru
        _
    $region40: #{discriminator_forward.4} parent=5 // pred_fallthru
      _
  $region6: #{discriminator_forward.4} parent=0 // loop_footer
    %s13 = sadd.s32 1, %s9
  $region7: #{discriminator_forward.4} parent=0 // loop_footer_branch
    %8 = sbr.rel target = $region3
  $region8: #{discriminator_forward.4} parent=0 // loop_exit
    _

// kernel: discriminator_forward.5
$region0: #{discriminator_forward.5}
  #allocation0 [shape = 'u32[]', space=smem, size = 0x4, offset = 0x4, fixed_abs, tag = 'smem constant byte address 0x4 - core index']
  #allocation1 [shape = 'u32[144,128]{1,0:T(1,128)}', space=vmem, size = 0x12000, scoped, tag = 'internal scratch']
  #allocation2 [shape = 'bf16[64,128]{1,0:T(8,128)(2,1)}', space=vmem, size = 0x4000, scoped, tag = 'scratch operand']
  #allocation3 [shape = 'f32[8,128]{1,0:T(8,128)}', space=vmem, size = 0x1000, scoped, tag = 'scratch operand']
  #allocation4 [shape = 'f32[8,128]{1,0:T(8,128)}', space=vmem, size = 0x1000, scoped, tag = 'scratch operand']
  %s0 = inlined_call_operand.vmem [shape: bf16[2,64,128], index: 0, kind: input, shape index: {}]
  %s1 = inlined_call_operand.vmem [shape: bf16[128,128], index: 1, kind: input, shape index: {}]
  %s2 = inlined_call_operand.vmem [shape: f32[1,128], index: 2, kind: input, shape index: {}]
  %s3 = inlined_call_operand.vmem [shape: f32[1,128], index: 3, kind: input, shape index: {}]
  %s4 = inlined_call_operand.vmem [shape: bf16[2,64,128], index: 4, kind: output, shape index: {}]
  %s5 = sld [smem:[#allocation0]]
  $region61: #{discriminator_forward.5} parent=0
    _
  %s7 = ssub.s32 1, %s5
  %s8 = scalar_select 0, %s7, %s5
  loop: start=0, step=1, limit=6
  $region2: #{discriminator_forward.5} parent=0 // loop_pre_header
    _
  $region3: #{discriminator_forward.5} parent=0 // loop_header
    %s10 = sphi 0, %s14
    %p11 = scmp.ge.s32.totalorder %s10, 6
    %s17 = sphi 0, %s29
    %s18 = sphi 0, %s25
    %s19 = sphi 0, %s17
    %s20 = sphi 0, %s18
    %s21 = sphi 0, %s19
    %s22 = sphi 0, %s20
    %s38 = sphi 0, %s40
    %s41 = sphi 0, %s38
    %s42 = sphi 0, %s41
    %s58 = sphi 0, %s42
    %s62 = sphi 0, %s62
    %s64 = sphi 0, %s62
    %s65 = sphi 0, %s64
    %s79 = sphi 0, %s65
    %s83 = sphi 0, %s83
    %s85 = sphi 0, %s83
    %s86 = sphi 0, %s85
    %s100 = sphi 0, %s86
    %s104 = sphi 0, %s104
    %s106 = sphi 0, %s104
    %s107 = sphi 0, %s106
    %s121 = sphi 0, %s107
    %s135 = sphi 0, %s137
    %s138 = sphi 0, %s135
    %s139 = sphi 0, %s138
    %s155 = sphi 0, %s139
  $region4: #{discriminator_forward.5} parent=0 // loop_header_branch
    %13 = sbr.rel (%p11) target = $region8
  $region5: #{discriminator_forward.5} parent=0 // loop_body
    %s15 = ssub.s32 %s10, 1
    %s16 = ssub.s32 %s10, 2
    %s23 = sadd.s32 1, %s18
    %p24 = scmp.ge.s32.totalorder %s23, 2
    %s25 = scalar_select %p24, 0, %s23
    %s26 = sadd.s32 1, %s17
    %s27 = scalar_select %p24, %s26, %s17
    %p28 = scmp.ge.s32.totalorder %s27, 2
    %s29 = scalar_select %p28, 0, %s27
    %p30 = scmp.lt.s32.totalorder %s18, 0
    %s31 = scalar_select %p30, %s18, 0
    %p32 = scmp.lt.s32.totalorder %s25, 0
    %s33 = scalar_select %p32, %s25, 0
    %s34 = ssub.s32 %s17, %s29
    %s35 = ssub.s32 %s31, %s33
    %s36 = sor.u32 %s34, %s35
    %p37 = scmp.eq.s32.totalorder %s36, 0
    %s39 = sadd.s32 %s38, 1
    %s40 = scalar_select %p37, %s38, %s39
    %p43 = pneg %p37
    %p44 = scmp.eq.s32.totalorder %s10, 3
    %p45 = por %p43, %p44
    %p46 = scmp.ne.s32.totalorder %s38, %s41
    %p47 = scmp.eq.s32.totalorder %s10, 0
    %p48 = por %p46, %p47
    %p49 = scmp.ne.s32.totalorder %s38, %s41
    %p50 = scmp.eq.s32.totalorder %s15, 3
    %p51 = por %p49, %p50
    %p52 = scmp.ne.s32.totalorder %s41, %s42
    %p53 = scmp.eq.s32.totalorder %s15, 0
    %p54 = por %p52, %p53
    %p55 = scmp.ne.s32.totalorder %s41, %s42
    %p56 = scmp.eq.s32.totalorder %s16, 3
    %p57 = por %p55, %p56
    %p59 = scmp.ne.s32.totalorder %s42, %s58
    %p60 = scmp.eq.s32.totalorder %s16, 0
    %p61 = por %p59, %p60
    %s63 = sadd.s32 %s62, 1
    %p66 = scmp.eq.s32.totalorder %s10, 3
    %p67 = scmp.ne.s32.totalorder %s62, %s64
    %p68 = scmp.eq.s32.totalorder %s10, 0
    %p69 = por %p67, %p68
    %p70 = scmp.ne.s32.totalorder %s62, %s64
    %p71 = scmp.eq.s32.totalorder %s15, 3
    %p72 = por %p70, %p71
    %p73 = scmp.ne.s32.totalorder %s64, %s65
    %p74 = scmp.eq.s32.totalorder %s15, 0
    %p75 = por %p73, %p74
    %p76 = scmp.ne.s32.totalorder %s64, %s65
    %p77 = scmp.eq.s32.totalorder %s16, 3
    %p78 = por %p76, %p77
    %p80 = scmp.ne.s32.totalorder %s65, %s79
    %p81 = scmp.eq.s32.totalorder %s16, 0
    %p82 = por %p80, %p81
    %s84 = sadd.s32 %s83, 1
    %p87 = scmp.eq.s32.totalorder %s10, 3
    %p88 = scmp.ne.s32.totalorder %s83, %s85
    %p89 = scmp.eq.s32.totalorder %s10, 0
    %p90 = por %p88, %p89
    %p91 = scmp.ne.s32.totalorder %s83, %s85
    %p92 = scmp.eq.s32.totalorder %s15, 3
    %p93 = por %p91, %p92
    %p94 = scmp.ne.s32.totalorder %s85, %s86
    %p95 = scmp.eq.s32.totalorder %s15, 0
    %p96 = por %p94, %p95
    %p97 = scmp.ne.s32.totalorder %s85, %s86
    %p98 = scmp.eq.s32.totalorder %s16, 3
    %p99 = por %p97, %p98
    %p101 = scmp.ne.s32.totalorder %s86, %s100
    %p102 = scmp.eq.s32.totalorder %s16, 0
    %p103 = por %p101, %p102
    %s105 = sadd.s32 %s104, 1
    %p108 = scmp.eq.s32.totalorder %s10, 3
    %p109 = scmp.ne.s32.totalorder %s104, %s106
    %p110 = scmp.eq.s32.totalorder %s10, 0
    %p111 = por %p109, %p110
    %p112 = scmp.ne.s32.totalorder %s104, %s106
    %p113 = scmp.eq.s32.totalorder %s15, 3
    %p114 = por %p112, %p113
    %p115 = scmp.ne.s32.totalorder %s106, %s107
    %p116 = scmp.eq.s32.totalorder %s15, 0
    %p117 = por %p115, %p116
    %p118 = scmp.ne.s32.totalorder %s106, %s107
    %p119 = scmp.eq.s32.totalorder %s16, 3
    %p120 = por %p118, %p119
    %p122 = scmp.ne.s32.totalorder %s107, %s121
    %p123 = scmp.eq.s32.totalorder %s16, 0
    %p124 = por %p122, %p123
    %s125 = ssub.s32 %s18, 1
    %p126 = scmp.gt.s32.totalorder %s125, 0
    %s127 = scalar_select %p126, %s125, 0
    %s128 = ssub.s32 %s25, 1
    %p129 = scmp.gt.s32.totalorder %s128, 0
    %s130 = scalar_select %p129, %s128, 0
    %s131 = ssub.s32 %s17, %s29
    %s132 = ssub.s32 %s127, %s130
    %s133 = sor.u32 %s131, %s132
    %p134 = scmp.eq.s32.totalorder %s133, 0
    %s136 = sadd.s32 %s135, 1
    %s137 = scalar_select %p134, %s135, %s136
    %p140 = pneg %p134
    %p141 = scmp.eq.s32.totalorder %s10, 3
    %p142 = por %p140, %p141
    %p143 = scmp.ne.s32.totalorder %s135, %s138
    %p144 = scmp.eq.s32.totalorder %s10, 0
    %p145 = por %p143, %p144
    %p146 = scmp.ne.s32.totalorder %s135, %s138
    %p147 = scmp.eq.s32.totalorder %s15, 3
    %p148 = por %p146, %p147
    %p149 = scmp.ne.s32.totalorder %s138, %s139
    %p150 = scmp.eq.s32.totalorder %s15, 0
    %p151 = por %p149, %p150
    %p152 = scmp.ne.s32.totalorder %s138, %s139
    %p153 = scmp.eq.s32.totalorder %s16, 3
    %p154 = por %p152, %p153
    %p156 = scmp.ne.s32.totalorder %s139, %s155
    %p157 = scmp.eq.s32.totalorder %s16, 0
    %p158 = por %p156, %p157
    %p159 = scmp.le.s32.totalorder 1, %s10
    %p160 = scmp.lt.s32.totalorder %s10, 5
    %p161 = pnand %p159, %p160
    %p162 = pneg %p161
    // Predicated region
    $region9: #{discriminator_forward.5} parent=5 // pred_check
      _
    $region10: #{discriminator_forward.5} parent=5 // pred_check_branch
      %164 = sbr.rel (%p161) target = $region12
    $region11: #{discriminator_forward.5} parent=5 // pred_region
      %s165 = ssub.s32 %s10, 1
      // Predicated region
      $region13: #{discriminator_forward.5} parent=11 // pred_check
        %p166 = pneg %p75
      $region14: #{discriminator_forward.5} parent=11 // pred_check_branch
        %168 = sbr.rel (%p166) target = $region16
      $region15: #{discriminator_forward.5} parent=11 // pred_region
        _
      $region16: #{discriminator_forward.5} parent=11 // pred_fallthru
        _
      // Predicated region
      $region17: #{discriminator_forward.5} parent=11 // pred_check
        %p169 = pneg %p96
      $region18: #{discriminator_forward.5} parent=11 // pred_check_branch
        %171 = sbr.rel (%p169) target = $region20
      $region19: #{discriminator_forward.5} parent=11 // pred_region
        _
      $region20: #{discriminator_forward.5} parent=11 // pred_fallthru
        _
      // Predicated region
      $region21: #{discriminator_forward.5} parent=11 // pred_check
        %p172 = pneg %p117
      $region22: #{discriminator_forward.5} parent=11 // pred_check_branch
        %174 = sbr.rel (%p172) target = $region24
      $region23: #{discriminator_forward.5} parent=11 // pred_region
        _
      $region24: #{discriminator_forward.5} parent=11 // pred_fallthru
        _
    $region12: #{discriminator_forward.5} parent=5 // pred_fallthru
      _
    %p175 = scmp.lt.s32.totalorder %s10, 4
    // Predicated region
    $region25: #{discriminator_forward.5} parent=5 // pred_check
      %p176 = pneg %p175
    $region26: #{discriminator_forward.5} parent=5 // pred_check_branch
      %178 = sbr.rel (%p176) target = $region28
    $region27: #{discriminator_forward.5} parent=5 // pred_region
      // Predicated region
      $region29: #{discriminator_forward.5} parent=27 // pred_check
        %p179 = pneg %p48
      $region30: #{discriminator_forward.5} parent=27 // pred_check_branch
        %181 = sbr.rel (%p179) target = $region32
      $region31: #{discriminator_forward.5} parent=27 // pred_region
        %p182 = scmp.lt.s32.totalorder %s18, 0
        %s183 = scalar_select %p182, %s18, 0
        %s184 = smul.u32 8, %s183
        %p185 = scmp.lt.s32.totalorder %s17, 1
        %s186 = scalar_select %p185, %s17, 1
        %p187 = scmp.lt.s32.totalorder %s184, 7
        %s188 = scalar_select %p187, %s184, 7
        %s189 = smul.addr %s186, 8
        %s190 = sadd.s32 %s188, %s189
        %s191 = smul.addr %s190, 4
        %s192 = scalar_lea.vmem %s0, %s191
        %p193 = scmp.lt.s32.totalorder %s18, 0
        %s194 = scalar_select %p193, %s18, 0
        %s195 = smul.u32 8, %s194
      $region32: #{discriminator_forward.5} parent=27 // pred_fallthru
        _
    $region28: #{discriminator_forward.5} parent=5 // pred_fallthru
      _
    %p196 = scmp.le.s32.totalorder 1, %s10
    %p197 = scmp.lt.s32.totalorder %s10, 5
    %p198 = pnand %p196, %p197
    %p199 = pneg %p198
    // Predicated region
    $region33: #{discriminator_forward.5} parent=5 // pred_check
      _
    $region34: #{discriminator_forward.5} parent=5 // pred_check_branch
      %201 = sbr.rel (%p198) target = $region36
    $region35: #{discriminator_forward.5} parent=5 // pred_region
      %s202 = ssub.s32 %s10, 1
      %p203 = scmp.lt.s32.totalorder %s20, 0
      %s204 = scalar_select %p203, %s20, 0
      %s205 = smul.u32 8, %s204
      %p206 = scmp.lt.s32.totalorder %s19, 1
      %s207 = scalar_select %p206, %s19, 1
      %p208 = scmp.lt.s32.totalorder %s205, 7
      %s209 = scalar_select %p208, %s205, 7
      %s210 = smul.addr %s207, 8
      %s211 = sadd.s32 %s209, %s210
      %s212 = smul.addr %s211, 4
      %s213 = scalar_lea.vmem %s0, %s212
      %p214 = pneg %p54
      %p215 = pneg %p51
      %p216 = pneg %p75
      %p217 = pneg %p72
      %p218 = pneg %p96
      %p219 = pneg %p93
      %p220 = pneg %p117
      %p221 = pneg %p114
      %p222 = pneg %p151
      %p223 = pneg %p148
      %s224 = ssub.s32 %s20, 1
      %p225 = scmp.gt.s32.totalorder %s224, 0
      %s226 = scalar_select %p225, %s224, 0
      %s227 = smul.u32 8, %s226
      %p228 = scmp.lt.s32.totalorder %s19, 1
      %s229 = scalar_select %p228, %s19, 1
      %p230 = scmp.lt.s32.totalorder %s227, 7
      %s231 = scalar_select %p230, %s227, 7
      %s232 = smul.addr %s229, 8
      %s233 = sadd.s32 %s231, %s232
      %s234 = smul.addr %s233, 4
      %s235 = scalar_lea.vmem %s4, %s234
      %p236 = scmp.lt.s32.totalorder %s20, 0
      %s237 = scalar_select %p236, %s20, 0
      %s238 = smul.u32 8, %s237
      %p239 = scmp.lt.s32.totalorder %s19, 1
      %s240 = scalar_select %p239, %s19, 1
      %p241 = scmp.lt.s32.totalorder %s238, 7
      %s242 = scalar_select %p241, %s238, 7
      %s243 = smul.addr %s240, 8
      %s244 = sadd.s32 %s242, %s243
      %s245 = smul.addr %s244, 4
      %s246 = scalar_lea.vmem %s0, %s245
      %p247 = scmp.lt.s32.totalorder %s20, 0
      %s248 = scalar_select %p247, %s20, 0
      %s249 = smul.u32 8, %s248
      %s250 = ssub.s32 %s20, 1
      %p251 = scmp.gt.s32.totalorder %s250, 0
      %s252 = scalar_select %p251, %s250, 0
      %s253 = smul.u32 8, %s252
      %p254 = scmp.lt.s32.totalorder %s19, 1
      %s255 = scalar_select %p254, %s19, 1
      %p256 = scmp.lt.s32.totalorder %s253, 7
      %s257 = scalar_select %p256, %s253, 7
      %s258 = smul.addr %s255, 8
      %s259 = sadd.s32 %s257, %s258
      %s260 = smul.addr %s259, 4
      %s261 = scalar_lea.vmem %s4, %s260
      %s262 = ssub.s32 %s20, 1
      %p263 = scmp.gt.s32.totalorder %s262, 0
      %s264 = scalar_select %p263, %s262, 0
      %s265 = smul.u32 8, %s264
      %p267 = scmp.lt.s32.totalorder %s20, 1
      // Predicated region
      $region37: #{discriminator_forward.5} parent=35 // pred_check
        %p268 = pneg %p267
      $region38: #{discriminator_forward.5} parent=35 // pred_check_branch
        %270 = sbr.rel (%p268) target = $region40
      $region39: #{discriminator_forward.5} parent=35 // pred_region
        %p271 = scmp.eq.s32.totalorder %s20, 0
        // Predicated region
        $region41: #{discriminator_forward.5} parent=39 // pred_check
          %p272 = pneg %p271
        $region42: #{discriminator_forward.5} parent=39 // pred_check_branch
          %274 = sbr.rel (%p272) target = $region44
        $region43: #{discriminator_forward.5} parent=39 // pred_region
          %275 = vst [vmem:[#allocation3] sm:$0xff] 0.0
          %276 = vst [vmem:[#allocation4] sm:$0xff] 0.0
        $region44: #{discriminator_forward.5} parent=39 // pred_fallthru
          _
        %v277 = vld [vmem:[%s246] sm:$0xf]
        %v278 = vld [vmem:[%s246 + $0x4] sm:$0xf]
        %v279 = vld [vmem:[%s246 + $0x8] sm:$0xf]
        %v280 = vld [vmem:[%s246 + $0xc] sm:$0xf]
        %v281 = vld [vmem:[%s246 + $0x10] sm:$0xf]
        %v282 = vld [vmem:[%s246 + $0x14] sm:$0xf]
        %v283 = vld [vmem:[%s246 + $0x18] sm:$0xf]
        %v284 = vld [vmem:[%s246 + $0x1c] sm:$0xf]
        %v285 = vld [vmem:[%s1] sm:$0xf]
        %v286 = vld [vmem:[%s1 + $0x4] sm:$0xf]
        %v287 = vld [vmem:[%s1 + $0x8] sm:$0xf]
        %v288 = vld [vmem:[%s1 + $0xc] sm:$0xf]
        %v289 = vld [vmem:[%s1 + $0x10] sm:$0xf]
        %v290 = vld [vmem:[%s1 + $0x14] sm:$0xf]
        %v291 = vld [vmem:[%s1 + $0x18] sm:$0xf]
        %v292 = vld [vmem:[%s1 + $0x1c] sm:$0xf]
        %v293 = vld [vmem:[%s1 + $0x20] sm:$0xf]
        %v294 = vld [vmem:[%s1 + $0x24] sm:$0xf]
        %v295 = vld [vmem:[%s1 + $0x28] sm:$0xf]
        %v296 = vld [vmem:[%s1 + $0x2c] sm:$0xf]
        %v297 = vld [vmem:[%s1 + $0x30] sm:$0xf]
        %v298 = vld [vmem:[%s1 + $0x34] sm:$0xf]
        %v299 = vld [vmem:[%s1 + $0x38] sm:$0xf]
        %v300 = vld [vmem:[%s1 + $0x3c] sm:$0xf]
        %v309 = vunpack.c.l.b16 %v277
        %v310 = vunpack.c.l.b16 %v278
        %v311 = vunpack.c.l.b16 %v279
        %v312 = vunpack.c.l.b16 %v280
        %v313 = vunpack.c.l.b16 %v281
        %v314 = vunpack.c.l.b16 %v282
        %v315 = vunpack.c.l.b16 %v283
        %v316 = vunpack.c.l.b16 %v284
        %v317 = vpack.c.b16 %v310, %v309
        %v318 = vpack.c.b16 %v312, %v311
        %v319 = vpack.c.b16 %v314, %v313
        %v320 = vpack.c.b16 %v316, %v315
        %v341 = vunpack.c.l.b16 %v285
        %v342 = vunpack.c.l.b16 %v286
        %v343 = vunpack.c.l.b16 %v287
        %v344 = vunpack.c.l.b16 %v288
        %v345 = vunpack.c.l.b16 %v289
        %v346 = vunpack.c.l.b16 %v290
        %v347 = vunpack.c.l.b16 %v291
        %v348 = vunpack.c.l.b16 %v292
        %v349 = vunpack.c.l.b16 %v293
        %v350 = vunpack.c.l.b16 %v294
        %v351 = vunpack.c.l.b16 %v295
        %v352 = vunpack.c.l.b16 %v296
        %v353 = vunpack.c.l.b16 %v297
        %v354 = vunpack.c.l.b16 %v298
        %v355 = vunpack.c.l.b16 %v299
        %v356 = vunpack.c.l.b16 %v300
        %v357 = vpack.c.b16 %v342, %v341
        %v358 = vpack.c.b16 %v344, %v343
        %v359 = vpack.c.b16 %v346, %v345
        %v360 = vpack.c.b16 %v348, %v347
        %v361 = vpack.c.b16 %v350, %v349
        %v362 = vpack.c.b16 %v352, %v351
        %v363 = vpack.c.b16 %v354, %v353
        %v364 = vpack.c.b16 %v356, %v355
        %373 = vmatprep.subr.bf16.mxu0 0
        %374 = vmatpush1.bf16.msra.mxu0 %v364
        %375 = vmatprep.subr.bf16.mxu0 0
        %376 = vmatpush1.bf16.msra.mxu0 %v363
        %377 = vmatprep.subr.bf16.mxu0 0
        %378 = vmatpush1.bf16.msra.mxu0 %v362
        %379 = vmatprep.subr.bf16.mxu0 0
        %380 = vmatpush1.bf16.msra.mxu0 %v361
        %381 = vmatprep.subr.bf16.mxu0 0
        %382 = vmatpush1.bf16.msra.mxu0 %v360
        %383 = vmatprep.subr.bf16.mxu0 0
        %384 = vmatpush1.bf16.msra.mxu0 %v359
        %385 = vmatprep.subr.bf16.mxu0 0
        %386 = vmatpush1.bf16.msra.mxu0 %v358
        %387 = vmatprep.subr.bf16.mxu0 0
        %388 = vmatpush1.bf16.msra.mxu0 %v357
        %389 = vmatprep.subr.bf16.mxu0 0
        %390 = vmatpush2.bf16.msra.mxu0 0
        %391 = vmatprep.subr.bf16.mxu0 0
        %392 = vmatpush2.bf16.msra.mxu0 0
        %393 = vmatprep.subr.bf16.mxu0 0
        %394 = vmatpush2.bf16.msra.mxu0 0
        %395 = vmatprep.subr.bf16.mxu0 0
        %396 = vmatpush2.bf16.msra.mxu0 0
        %397 = vmatprep.subr.bf16.mxu0 0
        %398 = vmatpush2.bf16.msra.mxu0 0
        %399 = vmatprep.subr.bf16.mxu0 0
        %400 = vmatpush2.bf16.msra.mxu0 0
        %401 = vmatprep.subr.bf16.mxu0 0
        %402 = vmatpush2.bf16.msra.mxu0 0
        %403 = vmatprep.subr.bf16.mxu0 0
        %404 = vmatpush2.bf16.msra.mxu0 0
        %405 = vmatprep.mubr.bf16.mxu0 0
        %406 = vmatmul.mubr.bf16.gmra.mxu0 %v317
        %v407 = vpop.f32.mrf.mxu0
        %v408 = vadd.f32 0.0, %v407
        %v409 = vpop.f32.mrf.mxu0
        %v410 = vpop.f32.mrf.mxu0
        %v411 = vadd.f32 0.0, %v410
        %v412 = vpop.f32.mrf.mxu0
        %413 = vmatprep.mubr.bf16.mxu0 0
        %414 = vmatmul.mubr.bf16.gmra.mxu0 %v318
        %v415 = vpop.f32.mrf.mxu0
        %v416 = vadd.f32 0.0, %v415
        %v417 = vpop.f32.mrf.mxu0
        %v418 = vpop.f32.mrf.mxu0
        %v419 = vadd.f32 0.0, %v418
        %v420 = vpop.f32.mrf.mxu0
        %421 = vmatprep.mubr.bf16.mxu0 0
        %422 = vmatmul.mubr.bf16.gmra.mxu0 %v319
        %v423 = vpop.f32.mrf.mxu0
        %v424 = vadd.f32 0.0, %v423
        %v425 = vpop.f32.mrf.mxu0
        %v426 = vpop.f32.mrf.mxu0
        %v427 = vadd.f32 0.0, %v426
        %v428 = vpop.f32.mrf.mxu0
        %429 = vmatprep.mubr.bf16.mxu0 0
        %430 = vmatmul.mubr.bf16.gmra.mxu0 %v320
        %v431 = vpop.f32.mrf.mxu0
        %v432 = vadd.f32 0.0, %v431
        %v433 = vpop.f32.mrf.mxu0
        %v434 = vpop.f32.mrf.mxu0
        %v435 = vadd.f32 0.0, %v434
        %v436 = vpop.f32.mrf.mxu0
        %437 = vdwg.mxu0
        %s438 = smul.u32 %s20, 64
        %v439 = vpack.c.bf16 %v411, %v408
        %v440 = vpack.c.bf16 %v419, %v416
        %v441 = vpack.c.bf16 %v427, %v424
        %v442 = vpack.c.bf16 %v435, %v432
        %v447 = vunpack.c.l.b16 %v439
        %v448 = vunpack.c.h.b16 %v439
        %v449 = vunpack.c.l.b16 %v440
        %v450 = vunpack.c.h.b16 %v440
        %v451 = vunpack.c.l.b16 %v441
        %v452 = vunpack.c.h.b16 %v441
        %v453 = vunpack.c.l.b16 %v442
        %v454 = vunpack.c.h.b16 %v442
        %v455 = vpack.c.b16 %v447, %v447
        %v456 = vpack.c.b16 %v448, %v448
        %v457 = vpack.c.b16 %v449, %v449
        %v458 = vpack.c.b16 %v450, %v450
        %v459 = vpack.c.b16 %v451, %v451
        %v460 = vpack.c.b16 %v452, %v452
        %v461 = vpack.c.b16 %v453, %v453
        %v462 = vpack.c.b16 %v454, %v454
        %s471 = sshra.s32 %s438, 3
        %s472 = sand.u32 %s438, 7
        %s473 = smul.addr %s471, 4
        %s474 = scalar_lea.vmem [#allocation2], %s473
        %475 = vst [vmem:[%s474] sm:$0xf] %v455
        %476 = vst [vmem:[%s474 + $0x4] sm:$0xf] %v456
        %477 = vst [vmem:[%s474 + $0x8] sm:$0xf] %v457
        %478 = vst [vmem:[%s474 + $0xc] sm:$0xf] %v458
        %479 = vst [vmem:[%s474 + $0x10] sm:$0xf] %v459
        %480 = vst [vmem:[%s474 + $0x14] sm:$0xf] %v460
        %481 = vst [vmem:[%s474 + $0x18] sm:$0xf] %v461
        %482 = vst [vmem:[%s474 + $0x1c] sm:$0xf] %v462
        %v483 = vld [vmem:[#allocation3] sm:$0xff]
        %v484 = vadd.f32 %v408, %v411
        %v485 = vadd.f32 %v484, %v416
        %v486 = vadd.f32 %v485, %v419
        %v487 = vadd.f32 %v486, %v424
        %v488 = vadd.f32 %v487, %v427
        %v489 = vadd.f32 %v488, %v432
        %v490 = vadd.f32 %v489, %v435
        %v491 = vadd.f32 %v483, %v490
        %492 = vst [vmem:[#allocation3] sm:$0xff] %v491
        %v493 = vld [vmem:[#allocation4] sm:$0xff]
        %v494 = vmul.f32 %v408, %v408
        %v495 = vmul.f32 %v411, %v411
        %v496 = vmul.f32 %v416, %v416
        %v497 = vmul.f32 %v419, %v419
        %v498 = vmul.f32 %v424, %v424
        %v499 = vmul.f32 %v427, %v427
        %v500 = vmul.f32 %v432, %v432
        %v501 = vmul.f32 %v435, %v435
        %v502 = vadd.f32 %v494, %v495
        %v503 = vadd.f32 %v502, %v496
        %v504 = vadd.f32 %v503, %v497
        %v505 = vadd.f32 %v504, %v498
        %v506 = vadd.f32 %v505, %v499
        %v507 = vadd.f32 %v506, %v500
        %v508 = vadd.f32 %v507, %v501
        %v509 = vadd.f32 %v493, %v508
        %510 = vst [vmem:[#allocation4] sm:$0xff] %v509
      $region40: #{discriminator_forward.5} parent=35 // pred_fallthru
        _
      %p511 = scmp.ge.s32.totalorder %s20, 1
      // Predicated region
      $region45: #{discriminator_forward.5} parent=35 // pred_check
        %p512 = pneg %p511
      $region46: #{discriminator_forward.5} parent=35 // pred_check_branch
        %514 = sbr.rel (%p512) target = $region48
      $region47: #{discriminator_forward.5} parent=35 // pred_region
        %s515 = ssub.s32 %s20, 1
        %v516 = vld [vmem:[#allocation3] sm:$0xff]
        %v517 = vrot.slane %v516, 4
        %v518 = vadd.f32 %v516, %v517
        %v519 = vrot.slane %v518, 2
        %v520 = vadd.f32 %v518, %v519
        %v521 = vrot.slane %v520, 1
        %v522 = vadd.f32 %v520, %v521
        %v523 = vmul.f32 %v522, 0.015625
        %v524 = vld [vmem:[#allocation4] sm:$0xff]
        %v525 = vrot.slane %v524, 4
        %v526 = vadd.f32 %v524, %v525
        %v527 = vrot.slane %v526, 2
        %v528 = vadd.f32 %v526, %v527
        %v529 = vrot.slane %v528, 1
        %v530 = vadd.f32 %v528, %v529
        %v531 = vmul.f32 %v530, 0.015625
        %v532 = vmul.f32 %v523, %v523
        %v533 = vsub.f32 %v531, %v532
        %v534 = vmax.f32 %v533, 0.0
        %v535 = vadd.f32 %v534, 1e-05
        %v536 = vrsqrt.pop %v535
        %s537 = smul.u32 %s515, 64
        %s538 = sshra.s32 %s537, 3
        %s539 = sand.u32 %s537, 7
        %s540 = smul.addr %s538, 4
        %s541 = scalar_lea.vmem [#allocation2], %s540
        %v542 = vld [vmem:[%s541] sm:$0xf]
        %v543 = vld [vmem:[%s541 + $0x4] sm:$0xf]
        %v544 = vld [vmem:[%s541 + $0x8] sm:$0xf]
        %v545 = vld [vmem:[%s541 + $0xc] sm:$0xf]
        %v546 = vld [vmem:[%s541 + $0x10] sm:$0xf]
        %v547 = vld [vmem:[%s541 + $0x14] sm:$0xf]
        %v548 = vld [vmem:[%s541 + $0x18] sm:$0xf]
        %v549 = vld [vmem:[%s541 + $0x1c] sm:$0xf]
        %v550 = vunpack.c.l.bf16 %v542
        %v551 = vunpack.c.l.bf16 %v543
        %v552 = vunpack.c.l.bf16 %v544
        %v553 = vunpack.c.l.bf16 %v545
        %v554 = vunpack.c.l.bf16 %v546
        %v555 = vunpack.c.l.bf16 %v547
        %v556 = vunpack.c.l.bf16 %v548
        %v557 = vunpack.c.l.bf16 %v549
        %v558 = vsub.f32 %v550, %v523
        %v559 = vsub.f32 %v551, %v523
        %v560 = vsub.f32 %v552, %v523
        %v561 = vsub.f32 %v553, %v523
        %v562 = vsub.f32 %v554, %v523
        %v563 = vsub.f32 %v555, %v523
        %v564 = vsub.f32 %v556, %v523
        %v565 = vsub.f32 %v557, %v523
        %v566 = vmul.f32 %v558, %v536
        %v567 = vmul.f32 %v559, %v536
        %v568 = vmul.f32 %v560, %v536
        %v569 = vmul.f32 %v561, %v536
        %v570 = vmul.f32 %v562, %v536
        %v571 = vmul.f32 %v563, %v536
        %v572 = vmul.f32 %v564, %v536
        %v573 = vmul.f32 %v565, %v536
        %v574 = vld [vmem:[%s2] sm:$0x1]
        %v576 = vlaneseq
        %v577 = vshrl.u32 %v576, 7
        %v578 = vsub.s32 0, %v577
        %v579 = vrot.slane %v574, %v578
        %v581 = vmul.f32 %v566, %v579
        %v582 = vmul.f32 %v567, %v579
        %v583 = vmul.f32 %v568, %v579
        %v584 = vmul.f32 %v569, %v579
        %v585 = vmul.f32 %v570, %v579
        %v586 = vmul.f32 %v571, %v579
        %v587 = vmul.f32 %v572, %v579
        %v588 = vmul.f32 %v573, %v579
        %v589 = vld [vmem:[%s3] sm:$0x1]
        %v591 = vlaneseq
        %v592 = vshrl.u32 %v591, 7
        %v593 = vsub.s32 0, %v592
        %v594 = vrot.slane %v589, %v593
        %v596 = vadd.f32 %v581, %v594
        %v597 = vadd.f32 %v582, %v594
        %v598 = vadd.f32 %v583, %v594
        %v599 = vadd.f32 %v584, %v594
        %v600 = vadd.f32 %v585, %v594
        %v601 = vadd.f32 %v586, %v594
        %v602 = vadd.f32 %v587, %v594
        %v603 = vadd.f32 %v588, %v594
        %vm604 = vcmp.gt.f32.partialorder %v596, 0.0
        %vm605 = vcmp.gt.f32.partialorder %v597, 0.0
        %vm606 = vcmp.gt.f32.partialorder %v598, 0.0
        %vm607 = vcmp.gt.f32.partialorder %v599, 0.0
        %vm608 = vcmp.gt.f32.partialorder %v600, 0.0
        %vm609 = vcmp.gt.f32.partialorder %v601, 0.0
        %vm610 = vcmp.gt.f32.partialorder %v602, 0.0
        %vm611 = vcmp.gt.f32.partialorder %v603, 0.0
        %v612 = vmul.f32 %v596, 0.01
        %v613 = vmul.f32 %v597, 0.01
        %v614 = vmul.f32 %v598, 0.01
        %v615 = vmul.f32 %v599, 0.01
        %v616 = vmul.f32 %v600, 0.01
        %v617 = vmul.f32 %v601, 0.01
        %v618 = vmul.f32 %v602, 0.01
        %v619 = vmul.f32 %v603, 0.01
        %v620 = vsel %vm604, %v596, %v612
        %v621 = vsel %vm605, %v597, %v613
        %v622 = vsel %vm606, %v598, %v614
        %v623 = vsel %vm607, %v599, %v615
        %v624 = vsel %vm608, %v600, %v616
        %v625 = vsel %vm609, %v601, %v617
        %v626 = vsel %vm610, %v602, %v618
        %v627 = vsel %vm611, %v603, %v619
        %v628 = vpack.c.bf16 %v621, %v620
        %v629 = vpack.c.bf16 %v623, %v622
        %v630 = vpack.c.bf16 %v625, %v624
        %v631 = vpack.c.bf16 %v627, %v626
        %v636 = vunpack.c.l.b16 %v628
        %v637 = vunpack.c.h.b16 %v628
        %v638 = vunpack.c.l.b16 %v629
        %v639 = vunpack.c.h.b16 %v629
        %v640 = vunpack.c.l.b16 %v630
        %v641 = vunpack.c.h.b16 %v630
        %v642 = vunpack.c.l.b16 %v631
        %v643 = vunpack.c.h.b16 %v631
        %v644 = vpack.c.b16 %v636, %v636
        %v645 = vpack.c.b16 %v637, %v637
        %v646 = vpack.c.b16 %v638, %v638
        %v647 = vpack.c.b16 %v639, %v639
        %v648 = vpack.c.b16 %v640, %v640
        %v649 = vpack.c.b16 %v641, %v641
        %v650 = vpack.c.b16 %v642, %v642
        %v651 = vpack.c.b16 %v643, %v643
        %660 = vst [vmem:[%s261] sm:$0xf] %v644
        %661 = vst [vmem:[%s261 + $0x4] sm:$0xf] %v645
        %662 = vst [vmem:[%s261 + $0x8] sm:$0xf] %v646
        %663 = vst [vmem:[%s261 + $0xc] sm:$0xf] %v647
        %664 = vst [vmem:[%s261 + $0x10] sm:$0xf] %v648
        %665 = vst [vmem:[%s261 + $0x14] sm:$0xf] %v649
        %666 = vst [vmem:[%s261 + $0x18] sm:$0xf] %v650
        %667 = vst [vmem:[%s261 + $0x1c] sm:$0xf] %v651
      $region48: #{discriminator_forward.5} parent=35 // pred_fallthru
        _
      %s668 = ssub.s32 %s20, 1
      %p669 = scmp.gt.s32.totalorder %s668, 0
      %s670 = scalar_select %p669, %s668, 0
      %s671 = smul.u32 8, %s670
      %p672 = scmp.lt.s32.totalorder %s19, 1
      %s673 = scalar_select %p672, %s19, 1
      %p674 = scmp.lt.s32.totalorder %s671, 7
      %s675 = scalar_select %p674, %s671, 7
      %s676 = smul.addr %s673, 8
      %s677 = sadd.s32 %s675, %s676
      %s678 = smul.addr %s677, 4
      %s679 = scalar_lea.vmem %s4, %s678
      // Predicated region
      $region49: #{discriminator_forward.5} parent=35 // pred_check
        %p680 = pneg %p148
      $region50: #{discriminator_forward.5} parent=35 // pred_check_branch
        %682 = sbr.rel (%p680) target = $region52
      $region51: #{discriminator_forward.5} parent=35 // pred_region
        %s683 = ssub.s32 %s20, 1
        %p684 = scmp.gt.s32.totalorder %s683, 0
        %s685 = scalar_select %p684, %s683, 0
        %s686 = smul.u32 8, %s685
      $region52: #{discriminator_forward.5} parent=35 // pred_fallthru
        _
    $region36: #{discriminator_forward.5} parent=5 // pred_fallthru
      _
    %p687 = scmp.le.s32.totalorder 2, %s10
    // Predicated region
    $region53: #{discriminator_forward.5} parent=5 // pred_check
      %p688 = pneg %p687
    $region54: #{discriminator_forward.5} parent=5 // pred_check_branch
      %690 = sbr.rel (%p688) target = $region56
    $region55: #{discriminator_forward.5} parent=5 // pred_region
      %s691 = ssub.s32 %s10, 2
      // Predicated region
      $region57: #{discriminator_forward.5} parent=55 // pred_check
        %p692 = pneg %p154
      $region58: #{discriminator_forward.5} parent=55 // pred_check_branch
        %694 = sbr.rel (%p692) target = $region60
      $region59: #{discriminator_forward.5} parent=55 // pred_region
        %s695 = ssub.s32 %s22, 1
        %p696 = scmp.gt.s32.totalorder %s695, 0
        %s697 = scalar_select %p696, %s695, 0
        %s698 = smul.u32 8, %s697
        %p699 = scmp.lt.s32.totalorder %s21, 1
        %s700 = scalar_select %p699, %s21, 1
        %p701 = scmp.lt.s32.totalorder %s698, 7
        %s702 = scalar_select %p701, %s698, 7
        %s703 = smul.addr %s700, 8
        %s704 = sadd.s32 %s702, %s703
        %s705 = smul.addr %s704, 4
        %s706 = scalar_lea.vmem %s4, %s705
      $region60: #{discriminator_forward.5} parent=55 // pred_fallthru
        _
    $region56: #{discriminator_forward.5} parent=5 // pred_fallthru
      _
  $region6: #{discriminator_forward.5} parent=0 // loop_footer
    %s14 = sadd.s32 1, %s10
  $region7: #{discriminator_forward.5} parent=0 // loop_footer_branch
    %9 = sbr.rel target = $region3
  $region8: #{discriminator_forward.5} parent=0 // loop_exit
    _

// kernel: discriminator_forward.6
$region0: #{discriminator_forward.6}
  #allocation0 [shape = 'u32[]', space=smem, size = 0x4, offset = 0x4, fixed_abs, tag = 'smem constant byte address 0x4 - core index']
  #allocation1 [shape = 'u32[144,128]{1,0:T(1,128)}', space=vmem, size = 0x12000, scoped, tag = 'internal scratch']
  #allocation2 [shape = 'bf16[32,128]{1,0:T(8,128)(2,1)}', space=vmem, size = 0x2000, scoped, tag = 'scratch operand']
  #allocation3 [shape = 'f32[8,128]{1,0:T(8,128)}', space=vmem, size = 0x1000, scoped, tag = 'scratch operand']
  #allocation4 [shape = 'f32[8,128]{1,0:T(8,128)}', space=vmem, size = 0x1000, scoped, tag = 'scratch operand']
  %s0 = inlined_call_operand.vmem [shape: bf16[2,32,256], index: 0, kind: input, shape index: {}]
  %s1 = inlined_call_operand.vmem [shape: bf16[256,128], index: 1, kind: input, shape index: {}]
  %s2 = inlined_call_operand.vmem [shape: f32[1,128], index: 2, kind: input, shape index: {}]
  %s3 = inlined_call_operand.vmem [shape: f32[1,128], index: 3, kind: input, shape index: {}]
  %s4 = inlined_call_operand.vmem [shape: bf16[2,32,128], index: 4, kind: output, shape index: {}]
  %s5 = sld [smem:[#allocation0]]
  $region69: #{discriminator_forward.6} parent=0
    _
  %s7 = ssub.s32 1, %s5
  %s8 = scalar_select 0, %s7, %s5
  loop: start=0, step=1, limit=6
  $region2: #{discriminator_forward.6} parent=0 // loop_pre_header
    _
  $region3: #{discriminator_forward.6} parent=0 // loop_header
    %s10 = sphi 0, %s14
    %p11 = scmp.ge.s32.totalorder %s10, 6
    %s17 = sphi 0, %s29
    %s18 = sphi 0, %s25
    %s19 = sphi 0, %s17
    %s20 = sphi 0, %s18
    %s21 = sphi 0, %s19
    %s22 = sphi 0, %s20
    %s38 = sphi 0, %s40
    %s41 = sphi 0, %s38
    %s42 = sphi 0, %s41
    %s58 = sphi 0, %s42
    %s62 = sphi 0, %s62
    %s64 = sphi 0, %s62
    %s65 = sphi 0, %s64
    %s79 = sphi 0, %s65
    %s83 = sphi 0, %s83
    %s85 = sphi 0, %s83
    %s86 = sphi 0, %s85
    %s100 = sphi 0, %s86
    %s104 = sphi 0, %s104
    %s106 = sphi 0, %s104
    %s107 = sphi 0, %s106
    %s121 = sphi 0, %s107
    %s135 = sphi 0, %s137
    %s138 = sphi 0, %s135
    %s139 = sphi 0, %s138
    %s155 = sphi 0, %s139
  $region4: #{discriminator_forward.6} parent=0 // loop_header_branch
    %13 = sbr.rel (%p11) target = $region8
  $region5: #{discriminator_forward.6} parent=0 // loop_body
    %s15 = ssub.s32 %s10, 1
    %s16 = ssub.s32 %s10, 2
    %s23 = sadd.s32 1, %s18
    %p24 = scmp.ge.s32.totalorder %s23, 2
    %s25 = scalar_select %p24, 0, %s23
    %s26 = sadd.s32 1, %s17
    %s27 = scalar_select %p24, %s26, %s17
    %p28 = scmp.ge.s32.totalorder %s27, 2
    %s29 = scalar_select %p28, 0, %s27
    %p30 = scmp.lt.s32.totalorder %s18, 0
    %s31 = scalar_select %p30, %s18, 0
    %p32 = scmp.lt.s32.totalorder %s25, 0
    %s33 = scalar_select %p32, %s25, 0
    %s34 = ssub.s32 %s17, %s29
    %s35 = ssub.s32 %s31, %s33
    %s36 = sor.u32 %s34, %s35
    %p37 = scmp.eq.s32.totalorder %s36, 0
    %s39 = sadd.s32 %s38, 1
    %s40 = scalar_select %p37, %s38, %s39
    %p43 = pneg %p37
    %p44 = scmp.eq.s32.totalorder %s10, 3
    %p45 = por %p43, %p44
    %p46 = scmp.ne.s32.totalorder %s38, %s41
    %p47 = scmp.eq.s32.totalorder %s10, 0
    %p48 = por %p46, %p47
    %p49 = scmp.ne.s32.totalorder %s38, %s41
    %p50 = scmp.eq.s32.totalorder %s15, 3
    %p51 = por %p49, %p50
    %p52 = scmp.ne.s32.totalorder %s41, %s42
    %p53 = scmp.eq.s32.totalorder %s15, 0
    %p54 = por %p52, %p53
    %p55 = scmp.ne.s32.totalorder %s41, %s42
    %p56 = scmp.eq.s32.totalorder %s16, 3
    %p57 = por %p55, %p56
    %p59 = scmp.ne.s32.totalorder %s42, %s58
    %p60 = scmp.eq.s32.totalorder %s16, 0
    %p61 = por %p59, %p60
    %s63 = sadd.s32 %s62, 1
    %p66 = scmp.eq.s32.totalorder %s10, 3
    %p67 = scmp.ne.s32.totalorder %s62, %s64
    %p68 = scmp.eq.s32.totalorder %s10, 0
    %p69 = por %p67, %p68
    %p70 = scmp.ne.s32.totalorder %s62, %s64
    %p71 = scmp.eq.s32.totalorder %s15, 3
    %p72 = por %p70, %p71
    %p73 = scmp.ne.s32.totalorder %s64, %s65
    %p74 = scmp.eq.s32.totalorder %s15, 0
    %p75 = por %p73, %p74
    %p76 = scmp.ne.s32.totalorder %s64, %s65
    %p77 = scmp.eq.s32.totalorder %s16, 3
    %p78 = por %p76, %p77
    %p80 = scmp.ne.s32.totalorder %s65, %s79
    %p81 = scmp.eq.s32.totalorder %s16, 0
    %p82 = por %p80, %p81
    %s84 = sadd.s32 %s83, 1
    %p87 = scmp.eq.s32.totalorder %s10, 3
    %p88 = scmp.ne.s32.totalorder %s83, %s85
    %p89 = scmp.eq.s32.totalorder %s10, 0
    %p90 = por %p88, %p89
    %p91 = scmp.ne.s32.totalorder %s83, %s85
    %p92 = scmp.eq.s32.totalorder %s15, 3
    %p93 = por %p91, %p92
    %p94 = scmp.ne.s32.totalorder %s85, %s86
    %p95 = scmp.eq.s32.totalorder %s15, 0
    %p96 = por %p94, %p95
    %p97 = scmp.ne.s32.totalorder %s85, %s86
    %p98 = scmp.eq.s32.totalorder %s16, 3
    %p99 = por %p97, %p98
    %p101 = scmp.ne.s32.totalorder %s86, %s100
    %p102 = scmp.eq.s32.totalorder %s16, 0
    %p103 = por %p101, %p102
    %s105 = sadd.s32 %s104, 1
    %p108 = scmp.eq.s32.totalorder %s10, 3
    %p109 = scmp.ne.s32.totalorder %s104, %s106
    %p110 = scmp.eq.s32.totalorder %s10, 0
    %p111 = por %p109, %p110
    %p112 = scmp.ne.s32.totalorder %s104, %s106
    %p113 = scmp.eq.s32.totalorder %s15, 3
    %p114 = por %p112, %p113
    %p115 = scmp.ne.s32.totalorder %s106, %s107
    %p116 = scmp.eq.s32.totalorder %s15, 0
    %p117 = por %p115, %p116
    %p118 = scmp.ne.s32.totalorder %s106, %s107
    %p119 = scmp.eq.s32.totalorder %s16, 3
    %p120 = por %p118, %p119
    %p122 = scmp.ne.s32.totalorder %s107, %s121
    %p123 = scmp.eq.s32.totalorder %s16, 0
    %p124 = por %p122, %p123
    %s125 = ssub.s32 %s18, 1
    %p126 = scmp.gt.s32.totalorder %s125, 0
    %s127 = scalar_select %p126, %s125, 0
    %s128 = ssub.s32 %s25, 1
    %p129 = scmp.gt.s32.totalorder %s128, 0
    %s130 = scalar_select %p129, %s128, 0
    %s131 = ssub.s32 %s17, %s29
    %s132 = ssub.s32 %s127, %s130
    %s133 = sor.u32 %s131, %s132
    %p134 = scmp.eq.s32.totalorder %s133, 0
    %s136 = sadd.s32 %s135, 1
    %s137 = scalar_select %p134, %s135, %s136
    %p140 = pneg %p134
    %p141 = scmp.eq.s32.totalorder %s10, 3
    %p142 = por %p140, %p141
    %p143 = scmp.ne.s32.totalorder %s135, %s138
    %p144 = scmp.eq.s32.totalorder %s10, 0
    %p145 = por %p143, %p144
    %p146 = scmp.ne.s32.totalorder %s135, %s138
    %p147 = scmp.eq.s32.totalorder %s15, 3
    %p148 = por %p146, %p147
    %p149 = scmp.ne.s32.totalorder %s138, %s139
    %p150 = scmp.eq.s32.totalorder %s15, 0
    %p151 = por %p149, %p150
    %p152 = scmp.ne.s32.totalorder %s138, %s139
    %p153 = scmp.eq.s32.totalorder %s16, 3
    %p154 = por %p152, %p153
    %p156 = scmp.ne.s32.totalorder %s139, %s155
    %p157 = scmp.eq.s32.totalorder %s16, 0
    %p158 = por %p156, %p157
    %p159 = scmp.le.s32.totalorder 1, %s10
    %p160 = scmp.lt.s32.totalorder %s10, 5
    %p161 = pnand %p159, %p160
    %p162 = pneg %p161
    // Predicated region
    $region9: #{discriminator_forward.6} parent=5 // pred_check
      _
    $region10: #{discriminator_forward.6} parent=5 // pred_check_branch
      %164 = sbr.rel (%p161) target = $region12
    $region11: #{discriminator_forward.6} parent=5 // pred_region
      %s165 = ssub.s32 %s10, 1
      // Predicated region
      $region13: #{discriminator_forward.6} parent=11 // pred_check
        %p166 = pneg %p75
      $region14: #{discriminator_forward.6} parent=11 // pred_check_branch
        %168 = sbr.rel (%p166) target = $region16
      $region15: #{discriminator_forward.6} parent=11 // pred_region
        _
      $region16: #{discriminator_forward.6} parent=11 // pred_fallthru
        _
      // Predicated region
      $region17: #{discriminator_forward.6} parent=11 // pred_check
        %p169 = pneg %p96
      $region18: #{discriminator_forward.6} parent=11 // pred_check_branch
        %171 = sbr.rel (%p169) target = $region20
      $region19: #{discriminator_forward.6} parent=11 // pred_region
        _
      $region20: #{discriminator_forward.6} parent=11 // pred_fallthru
        _
      // Predicated region
      $region21: #{discriminator_forward.6} parent=11 // pred_check
        %p172 = pneg %p117
      $region22: #{discriminator_forward.6} parent=11 // pred_check_branch
        %174 = sbr.rel (%p172) target = $region24
      $region23: #{discriminator_forward.6} parent=11 // pred_region
        _
      $region24: #{discriminator_forward.6} parent=11 // pred_fallthru
        _
    $region12: #{discriminator_forward.6} parent=5 // pred_fallthru
      _
    %p175 = scmp.lt.s32.totalorder %s10, 4
    // Predicated region
    $region25: #{discriminator_forward.6} parent=5 // pred_check
      %p176 = pneg %p175
    $region26: #{discriminator_forward.6} parent=5 // pred_check_branch
      %178 = sbr.rel (%p176) target = $region28
    $region27: #{discriminator_forward.6} parent=5 // pred_region
      // Predicated region
      $region29: #{discriminator_forward.6} parent=27 // pred_check
        %p179 = pneg %p48
      $region30: #{discriminator_forward.6} parent=27 // pred_check_branch
        %181 = sbr.rel (%p179) target = $region32
      $region31: #{discriminator_forward.6} parent=27 // pred_region
        %p182 = scmp.lt.s32.totalorder %s18, 0
        %s183 = scalar_select %p182, %s18, 0
        %s184 = smul.u32 4, %s183
        %p185 = scmp.lt.s32.totalorder %s17, 1
        %s186 = scalar_select %p185, %s17, 1
        %p187 = scmp.lt.s32.totalorder %s184, 3
        %s188 = scalar_select %p187, %s184, 3
        %s189 = smul.addr %s188, 2
        %s190 = smul.addr %s186, 8
        %s191 = sadd.s32 %s189, %s190
        %s192 = smul.addr %s191, 4
        %s193 = scalar_lea.vmem %s0, %s192
        %p194 = scmp.lt.s32.totalorder %s18, 0
        %s195 = scalar_select %p194, %s18, 0
        %s196 = smul.u32 4, %s195
      $region32: #{discriminator_forward.6} parent=27 // pred_fallthru
        _
    $region28: #{discriminator_forward.6} parent=5 // pred_fallthru
      _
    %p197 = scmp.le.s32.totalorder 1, %s10
    %p198 = scmp.lt.s32.totalorder %s10, 5
    %p199 = pnand %p197, %p198
    %p200 = pneg %p199
    // Predicated region
    $region33: #{discriminator_forward.6} parent=5 // pred_check
      _
    $region34: #{discriminator_forward.6} parent=5 // pred_check_branch
      %202 = sbr.rel (%p199) target = $region36
    $region35: #{discriminator_forward.6} parent=5 // pred_region
      %s203 = ssub.s32 %s10, 1
      %p204 = scmp.lt.s32.totalorder %s20, 0
      %s205 = scalar_select %p204, %s20, 0
      %s206 = smul.u32 4, %s205
      %p207 = scmp.lt.s32.totalorder %s19, 1
      %s208 = scalar_select %p207, %s19, 1
      %p209 = scmp.lt.s32.totalorder %s206, 3
      %s210 = scalar_select %p209, %s206, 3
      %s211 = smul.addr %s210, 2
      %s212 = smul.addr %s208, 8
      %s213 = sadd.s32 %s211, %s212
      %s214 = smul.addr %s213, 4
      %s215 = scalar_lea.vmem %s0, %s214
      %p216 = pneg %p54
      %p217 = pneg %p51
      %p218 = pneg %p75
      %p219 = pneg %p72
      %p220 = pneg %p96
      %p221 = pneg %p93
      %p222 = pneg %p117
      %p223 = pneg %p114
      %p224 = pneg %p151
      %p225 = pneg %p148
      %s226 = ssub.s32 %s20, 1
      %p227 = scmp.gt.s32.totalorder %s226, 0
      %s228 = scalar_select %p227, %s226, 0
      %s229 = smul.u32 4, %s228
      %p230 = scmp.lt.s32.totalorder %s19, 1
      %s231 = scalar_select %p230, %s19, 1
      %p232 = scmp.lt.s32.totalorder %s229, 3
      %s233 = scalar_select %p232, %s229, 3
      %s234 = smul.addr %s231, 4
      %s235 = sadd.s32 %s233, %s234
      %s236 = smul.addr %s235, 4
      %s237 = scalar_lea.vmem %s4, %s236
      %p238 = scmp.lt.s32.totalorder %s20, 0
      %s239 = scalar_select %p238, %s20, 0
      %s240 = smul.u32 4, %s239
      %p241 = scmp.lt.s32.totalorder %s19, 1
      %s242 = scalar_select %p241, %s19, 1
      %p243 = scmp.lt.s32.totalorder %s240, 3
      %s244 = scalar_select %p243, %s240, 3
      %s245 = smul.addr %s244, 2
      %s246 = smul.addr %s242, 8
      %s247 = sadd.s32 %s245, %s246
      %s248 = smul.addr %s247, 4
      %s249 = scalar_lea.vmem %s0, %s248
      %p250 = scmp.lt.s32.totalorder %s20, 0
      %s251 = scalar_select %p250, %s20, 0
      %s252 = smul.u32 4, %s251
      %s253 = ssub.s32 %s20, 1
      %p254 = scmp.gt.s32.totalorder %s253, 0
      %s255 = scalar_select %p254, %s253, 0
      %s256 = smul.u32 4, %s255
      %p257 = scmp.lt.s32.totalorder %s19, 1
      %s258 = scalar_select %p257, %s19, 1
      %p259 = scmp.lt.s32.totalorder %s256, 3
      %s260 = scalar_select %p259, %s256, 3
      %s261 = smul.addr %s258, 4
      %s262 = sadd.s32 %s260, %s261
      %s263 = smul.addr %s262, 4
      %s264 = scalar_lea.vmem %s4, %s263
      %s265 = ssub.s32 %s20, 1
      %p266 = scmp.gt.s32.totalorder %s265, 0
      %s267 = scalar_select %p266, %s265, 0
      %s268 = smul.u32 4, %s267
      %p270 = scmp.lt.s32.totalorder %s20, 1
      // Predicated region
      $region37: #{discriminator_forward.6} parent=35 // pred_check
        %p271 = pneg %p270
      $region38: #{discriminator_forward.6} parent=35 // pred_check_branch
        %273 = sbr.rel (%p271) target = $region40
      $region39: #{discriminator_forward.6} parent=35 // pred_region
        %p274 = scmp.eq.s32.totalorder %s20, 0
        // Predicated region
        $region41: #{discriminator_forward.6} parent=39 // pred_check
          %p275 = pneg %p274
        $region42: #{discriminator_forward.6} parent=39 // pred_check_branch
          %277 = sbr.rel (%p275) target = $region44
        $region43: #{discriminator_forward.6} parent=39 // pred_region
          %278 = vst [vmem:[#allocation3] sm:$0xff] 0.0
          %279 = vst [vmem:[#allocation4] sm:$0xff] 0.0
        $region44: #{discriminator_forward.6} parent=39 // pred_fallthru
          _
        %v280 = vld [vmem:[%s249] sm:$0xff]
        %v281 = vld [vmem:[%s249 + $0x8] sm:$0xff]
        %v282 = vld [vmem:[%s249 + $0x10] sm:$0xff]
        %v283 = vld [vmem:[%s249 + $0x18] sm:$0xff]
        %v284 = vld [vmem:[%s1] sm:$0xf]
        %v285 = vld [vmem:[%s1 + $0x4] sm:$0xf]
        %v286 = vld [vmem:[%s1 + $0x8] sm:$0xf]
        %v287 = vld [vmem:[%s1 + $0xc] sm:$0xf]
        %v288 = vld [vmem:[%s1 + $0x10] sm:$0xf]
        %v289 = vld [vmem:[%s1 + $0x14] sm:$0xf]
        %v290 = vld [vmem:[%s1 + $0x18] sm:$0xf]
        %v291 = vld [vmem:[%s1 + $0x1c] sm:$0xf]
        %v292 = vld [vmem:[%s1 + $0x20] sm:$0xf]
        %v293 = vld [vmem:[%s1 + $0x24] sm:$0xf]
        %v294 = vld [vmem:[%s1 + $0x28] sm:$0xf]
        %v295 = vld [vmem:[%s1 + $0x2c] sm:$0xf]
        %v296 = vld [vmem:[%s1 + $0x30] sm:$0xf]
        %v297 = vld [vmem:[%s1 + $0x34] sm:$0xf]
        %v298 = vld [vmem:[%s1 + $0x38] sm:$0xf]
        %v299 = vld [vmem:[%s1 + $0x3c] sm:$0xf]
        %v300 = vld [vmem:[%s1 + $0x40] sm:$0xf]
        %v301 = vld [vmem:[%s1 + $0x44] sm:$0xf]
        %v302 = vld [vmem:[%s1 + $0x48] sm:$0xf]
        %v303 = vld [vmem:[%s1 + $0x4c] sm:$0xf]
        %v304 = vld [vmem:[%s1 + $0x50] sm:$0xf]
        %v305 = vld [vmem:[%s1 + $0x54] sm:$0xf]
        %v306 = vld [vmem:[%s1 + $0x58] sm:$0xf]
        %v307 = vld [vmem:[%s1 + $0x5c] sm:$0xf]
        %v308 = vld [vmem:[%s1 + $0x60] sm:$0xf]
        %v309 = vld [vmem:[%s1 + $0x64] sm:$0xf]
        %v310 = vld [vmem:[%s1 + $0x68] sm:$0xf]
        %v311 = vld [vmem:[%s1 + $0x6c] sm:$0xf]
        %v312 = vld [vmem:[%s1 + $0x70] sm:$0xf]
        %v313 = vld [vmem:[%s1 + $0x74] sm:$0xf]
        %v314 = vld [vmem:[%s1 + $0x78] sm:$0xf]
        %v315 = vld [vmem:[%s1 + $0x7c] sm:$0xf]
        %v320 = vunpack.c.l.b16 %v280
        %v321 = vunpack.c.h.b16 %v280
        %v322 = vunpack.c.l.b16 %v281
        %v323 = vunpack.c.h.b16 %v281
        %v324 = vunpack.c.l.b16 %v282
        %v325 = vunpack.c.h.b16 %v282
        %v326 = vunpack.c.l.b16 %v283
        %v327 = vunpack.c.h.b16 %v283
        %v328 = vpack.c.b16 %v322, %v320
        %v329 = vpack.c.b16 %v323, %v321
        %v330 = vpack.c.b16 %v326, %v324
        %v331 = vpack.c.b16 %v327, %v325
        %v368 = vunpack.c.l.b16 %v284
        %v369 = vunpack.c.l.b16 %v285
        %v370 = vunpack.c.l.b16 %v286
        %v371 = vunpack.c.l.b16 %v287
        %v372 = vunpack.c.l.b16 %v288
        %v373 = vunpack.c.l.b16 %v289
        %v374 = vunpack.c.l.b16 %v290
        %v375 = vunpack.c.l.b16 %v291
        %v376 = vunpack.c.l.b16 %v292
        %v377 = vunpack.c.l.b16 %v293
        %v378 = vunpack.c.l.b16 %v294
        %v379 = vunpack.c.l.b16 %v295
        %v380 = vunpack.c.l.b16 %v296
        %v381 = vunpack.c.l.b16 %v297
        %v382 = vunpack.c.l.b16 %v298
        %v383 = vunpack.c.l.b16 %v299
        %v384 = vunpack.c.l.b16 %v300
        %v385 = vunpack.c.l.b16 %v301
        %v386 = vunpack.c.l.b16 %v302
        %v387 = vunpack.c.l.b16 %v303
        %v388 = vunpack.c.l.b16 %v304
        %v389 = vunpack.c.l.b16 %v305
        %v390 = vunpack.c.l.b16 %v306
        %v391 = vunpack.c.l.b16 %v307
        %v392 = vunpack.c.l.b16 %v308
        %v393 = vunpack.c.l.b16 %v309
        %v394 = vunpack.c.l.b16 %v310
        %v395 = vunpack.c.l.b16 %v311
        %v396 = vunpack.c.l.b16 %v312
        %v397 = vunpack.c.l.b16 %v313
        %v398 = vunpack.c.l.b16 %v314
        %v399 = vunpack.c.l.b16 %v315
        %v400 = vpack.c.b16 %v369, %v368
        %v401 = vpack.c.b16 %v371, %v370
        %v402 = vpack.c.b16 %v373, %v372
        %v403 = vpack.c.b16 %v375, %v374
        %v404 = vpack.c.b16 %v377, %v376
        %v405 = vpack.c.b16 %v379, %v378
        %v406 = vpack.c.b16 %v381, %v380
        %v407 = vpack.c.b16 %v383, %v382
        %v408 = vpack.c.b16 %v385, %v384
        %v409 = vpack.c.b16 %v387, %v386
        %v410 = vpack.c.b16 %v389, %v388
        %v411 = vpack.c.b16 %v391, %v390
        %v412 = vpack.c.b16 %v393, %v392
        %v413 = vpack.c.b16 %v395, %v394
        %v414 = vpack.c.b16 %v397, %v396
        %v415 = vpack.c.b16 %v399, %v398
        %432 = vmatprep.subr.bf16.mxu0 0
        %433 = vmatpush1.bf16.msra.mxu0 %v407
        %434 = vmatprep.subr.bf16.mxu0 0
        %435 = vmatpush1.bf16.msra.mxu0 %v406
        %436 = vmatprep.subr.bf16.mxu0 0
        %437 = vmatpush1.bf16.msra.mxu0 %v405
        %438 = vmatprep.subr.bf16.mxu0 0
        %439 = vmatpush1.bf16.msra.mxu0 %v404
        %440 = vmatprep.subr.bf16.mxu0 0
        %441 = vmatpush1.bf16.msra.mxu0 %v403
        %442 = vmatprep.subr.bf16.mxu0 0
        %443 = vmatpush1.bf16.msra.mxu0 %v402
        %444 = vmatprep.subr.bf16.mxu0 0
        %445 = vmatpush1.bf16.msra.mxu0 %v401
        %446 = vmatprep.subr.bf16.mxu0 0
        %447 = vmatpush1.bf16.msra.mxu0 %v400
        %448 = vmatprep.subr.bf16.mxu0 0
        %449 = vmatpush2.bf16.msra.mxu0 %v415
        %450 = vmatprep.subr.bf16.mxu0 0
        %451 = vmatpush2.bf16.msra.mxu0 %v414
        %452 = vmatprep.subr.bf16.mxu0 0
        %453 = vmatpush2.bf16.msra.mxu0 %v413
        %454 = vmatprep.subr.bf16.mxu0 0
        %455 = vmatpush2.bf16.msra.mxu0 %v412
        %456 = vmatprep.subr.bf16.mxu0 0
        %457 = vmatpush2.bf16.msra.mxu0 %v411
        %458 = vmatprep.subr.bf16.mxu0 0
        %459 = vmatpush2.bf16.msra.mxu0 %v410
        %460 = vmatprep.subr.bf16.mxu0 0
        %461 = vmatpush2.bf16.msra.mxu0 %v409
        %462 = vmatprep.subr.bf16.mxu0 0
        %463 = vmatpush2.bf16.msra.mxu0 %v408
        %464 = vmatprep.mubr.bf16.mxu0 %v329
        %465 = vmatmul.mubr.bf16.gmra.mxu0 %v328
        %v466 = vpop.f32.mrf.mxu0
        %v467 = vadd.f32 0.0, %v466
        %v468 = vpop.f32.mrf.mxu0
        %v469 = vpop.f32.mrf.mxu0
        %v470 = vadd.f32 0.0, %v469
        %v471 = vpop.f32.mrf.mxu0
        %472 = vmatprep.mubr.bf16.mxu0 %v331
        %473 = vmatmul.mubr.bf16.gmra.mxu0 %v330
        %v474 = vpop.f32.mrf.mxu0
        %v475 = vadd.f32 0.0, %v474
        %v476 = vpop.f32.mrf.mxu0
        %v477 = vpop.f32.mrf.mxu0
        %v478 = vadd.f32 0.0, %v477
        %v479 = vpop.f32.mrf.mxu0
        %480 = vdwg.mxu0
        %s481 = smul.u32 %s20, 32
        %v482 = vpack.c.bf16 %v470, %v467
        %v483 = vpack.c.bf16 %v478, %v475
        %v486 = vunpack.c.l.b16 %v482
        %v487 = vunpack.c.h.b16 %v482
        %v488 = vunpack.c.l.b16 %v483
        %v489 = vunpack.c.h.b16 %v483
        %v490 = vpack.c.b16 %v486, %v486
        %v491 = vpack.c.b16 %v487, %v487
        %v492 = vpack.c.b16 %v488, %v488
        %v493 = vpack.c.b16 %v489, %v489
        %s498 = sshra.s32 %s481, 3
        %s499 = sand.u32 %s481, 7
        %s500 = smul.addr %s498, 4
        %s501 = scalar_lea.vmem [#allocation2], %s500
        %502 = vst [vmem:[%s501] sm:$0xf] %v490
        %503 = vst [vmem:[%s501 + $0x4] sm:$0xf] %v491
        %504 = vst [vmem:[%s501 + $0x8] sm:$0xf] %v492
        %505 = vst [vmem:[%s501 + $0xc] sm:$0xf] %v493
        %p506 = scmp.lt.s32.totalorder %s20, 0
        // Predicated region
        $region45: #{discriminator_forward.6} parent=39 // pred_check
          %p507 = pneg %p506
        $region46: #{discriminator_forward.6} parent=39 // pred_check_branch
          %509 = sbr.rel (%p507) target = $region48
        $region47: #{discriminator_forward.6} parent=39 // pred_region
          %v510 = vld [vmem:[#allocation3] sm:$0xff]
          %v511 = vadd.f32 %v467, %v470
          %v512 = vadd.f32 %v511, %v475
          %v513 = vadd.f32 %v512, %v478
          %v514 = vadd.f32 %v510, %v513
          %515 = vst [vmem:[#allocation3] sm:$0xff] %v514
          %v516 = vld [vmem:[#allocation4] sm:$0xff]
          %v517 = vmul.f32 %v467, %v467
          %v518 = vmul.f32 %v470, %v470
          %v519 = vmul.f32 %v475, %v475
          %v520 = vmul.f32 %v478, %v478
          %v521 = vadd.f32 %v517, %v518
          %v522 = vadd.f32 %v521, %v519
          %v523 = vadd.f32 %v522, %v520
          %v524 = vadd.f32 %v516, %v523
          %525 = vst [vmem:[#allocation4] sm:$0xff] %v524
        $region48: #{discriminator_forward.6} parent=39 // pred_fallthru
          _
        // Predicated region
        $region49: #{discriminator_forward.6} parent=39 // pred_check
          %p526 = pneg %p274
        $region50: #{discriminator_forward.6} parent=39 // pred_check_branch
          %528 = sbr.rel (%p526) target = $region52
        $region51: #{discriminator_forward.6} parent=39 // pred_region
          %v529 = vlaneseq
          %v530 = vshrl.u32 %v529, 7
          %v531 = vadd.s32 %v530, 8
          %v532 = vadd.s32 %v530, 16
          %v533 = vadd.s32 %v530, 24
          %v534 = vstv %s481
          %v535 = vadd.s32 %v534, %v530
          %v536 = vadd.s32 %v534, %v531
          %v537 = vadd.s32 %v534, %v532
          %v538 = vadd.s32 %v534, %v533
          %vm539 = vcmp.lt.s32.totalorder %v535, 25
          %vm540 = vcmp.lt.s32.totalorder %v536, 25
          %vm541 = vcmp.lt.s32.totalorder %v537, 25
          %vm542 = vcmp.lt.s32.totalorder %v538, 25
          %v543 = vsel %vm539, 1, 0
          %v544 = vsel %vm540, 1, 0
          %v545 = vsel %vm541, 1, 0
          %v546 = vsel %vm542, 1, 0
          %vm547 = vcmp.eq.s32.totalorder %v543, 1
          %vm548 = vcmp.eq.s32.totalorder %v544, 1
          %vm549 = vcmp.eq.s32.totalorder %v545, 1
          %vm550 = vcmp.eq.s32.totalorder %v546, 1
          %v551 = vsel %vm547, %v467, 0.0
          %v552 = vsel %vm548, %v470, 0.0
          %v553 = vsel %vm549, %v475, 0.0
          %v554 = vsel %vm550, %v478, 0.0
          %v555 = vld [vmem:[#allocation3] sm:$0xff]
          %v556 = vadd.f32 %v551, %v552
          %v557 = vadd.f32 %v556, %v553
          %v558 = vadd.f32 %v557, %v554
          %v559 = vadd.f32 %v555, %v558
          %560 = vst [vmem:[#allocation3] sm:$0xff] %v559
          %v561 = vld [vmem:[#allocation4] sm:$0xff]
          %v562 = vmul.f32 %v551, %v551
          %v563 = vmul.f32 %v552, %v552
          %v564 = vmul.f32 %v553, %v553
          %v565 = vmul.f32 %v554, %v554
          %v566 = vadd.f32 %v562, %v563
          %v567 = vadd.f32 %v566, %v564
          %v568 = vadd.f32 %v567, %v565
          %v569 = vadd.f32 %v561, %v568
          %570 = vst [vmem:[#allocation4] sm:$0xff] %v569
        $region52: #{discriminator_forward.6} parent=39 // pred_fallthru
          _
      $region40: #{discriminator_forward.6} parent=35 // pred_fallthru
        _
      %p571 = scmp.ge.s32.totalorder %s20, 1
      // Predicated region
      $region53: #{discriminator_forward.6} parent=35 // pred_check
        %p572 = pneg %p571
      $region54: #{discriminator_forward.6} parent=35 // pred_check_branch
        %574 = sbr.rel (%p572) target = $region56
      $region55: #{discriminator_forward.6} parent=35 // pred_region
        %s575 = ssub.s32 %s20, 1
        %v576 = vld [vmem:[#allocation3] sm:$0xff]
        %v577 = vrot.slane %v576, 4
        %v578 = vadd.f32 %v576, %v577
        %v579 = vrot.slane %v578, 2
        %v580 = vadd.f32 %v578, %v579
        %v581 = vrot.slane %v580, 1
        %v582 = vadd.f32 %v580, %v581
        %v583 = vmul.f32 %v582, 0.04
        %v584 = vld [vmem:[#allocation4] sm:$0xff]
        %v585 = vrot.slane %v584, 4
        %v586 = vadd.f32 %v584, %v585
        %v587 = vrot.slane %v586, 2
        %v588 = vadd.f32 %v586, %v587
        %v589 = vrot.slane %v588, 1
        %v590 = vadd.f32 %v588, %v589
        %v591 = vmul.f32 %v590, 0.04
        %v592 = vmul.f32 %v583, %v583
        %v593 = vsub.f32 %v591, %v592
        %v594 = vmax.f32 %v593, 0.0
        %v595 = vadd.f32 %v594, 1e-05
        %v596 = vrsqrt.pop %v595
        %s597 = smul.u32 %s575, 32
        %s598 = sshra.s32 %s597, 3
        %s599 = sand.u32 %s597, 7
        %s600 = smul.addr %s598, 4
        %s601 = scalar_lea.vmem [#allocation2], %s600
        %v602 = vld [vmem:[%s601] sm:$0xf]
        %v603 = vld [vmem:[%s601 + $0x4] sm:$0xf]
        %v604 = vld [vmem:[%s601 + $0x8] sm:$0xf]
        %v605 = vld [vmem:[%s601 + $0xc] sm:$0xf]
        %v606 = vunpack.c.l.bf16 %v602
        %v607 = vunpack.c.l.bf16 %v603
        %v608 = vunpack.c.l.bf16 %v604
        %v609 = vunpack.c.l.bf16 %v605
        %v610 = vsub.f32 %v606, %v583
        %v611 = vsub.f32 %v607, %v583
        %v612 = vsub.f32 %v608, %v583
        %v613 = vsub.f32 %v609, %v583
        %v614 = vmul.f32 %v610, %v596
        %v615 = vmul.f32 %v611, %v596
        %v616 = vmul.f32 %v612, %v596
        %v617 = vmul.f32 %v613, %v596
        %v618 = vld [vmem:[%s2] sm:$0x1]
        %v620 = vlaneseq
        %v621 = vshrl.u32 %v620, 7
        %v622 = vsub.s32 0, %v621
        %v623 = vrot.slane %v618, %v622
        %v625 = vmul.f32 %v614, %v623
        %v626 = vmul.f32 %v615, %v623
        %v627 = vmul.f32 %v616, %v623
        %v628 = vmul.f32 %v617, %v623
        %v629 = vld [vmem:[%s3] sm:$0x1]
        %v631 = vlaneseq
        %v632 = vshrl.u32 %v631, 7
        %v633 = vsub.s32 0, %v632
        %v634 = vrot.slane %v629, %v633
        %v636 = vadd.f32 %v625, %v634
        %v637 = vadd.f32 %v626, %v634
        %v638 = vadd.f32 %v627, %v634
        %v639 = vadd.f32 %v628, %v634
        %vm640 = vcmp.gt.f32.partialorder %v636, 0.0
        %vm641 = vcmp.gt.f32.partialorder %v637, 0.0
        %vm642 = vcmp.gt.f32.partialorder %v638, 0.0
        %vm643 = vcmp.gt.f32.partialorder %v639, 0.0
        %v644 = vmul.f32 %v636, 0.01
        %v645 = vmul.f32 %v637, 0.01
        %v646 = vmul.f32 %v638, 0.01
        %v647 = vmul.f32 %v639, 0.01
        %v648 = vsel %vm640, %v636, %v644
        %v649 = vsel %vm641, %v637, %v645
        %v650 = vsel %vm642, %v638, %v646
        %v651 = vsel %vm643, %v639, %v647
        %v652 = vpack.c.bf16 %v649, %v648
        %v653 = vpack.c.bf16 %v651, %v650
        %v656 = vunpack.c.l.b16 %v652
        %v657 = vunpack.c.h.b16 %v652
        %v658 = vunpack.c.l.b16 %v653
        %v659 = vunpack.c.h.b16 %v653
        %v660 = vpack.c.b16 %v656, %v656
        %v661 = vpack.c.b16 %v657, %v657
        %v662 = vpack.c.b16 %v658, %v658
        %v663 = vpack.c.b16 %v659, %v659
        %668 = vst [vmem:[%s264] sm:$0xf] %v660
        %669 = vst [vmem:[%s264 + $0x4] sm:$0xf] %v661
        %670 = vst [vmem:[%s264 + $0x8] sm:$0xf] %v662
        %671 = vst [vmem:[%s264 + $0xc] sm:$0xf] %v663
      $region56: #{discriminator_forward.6} parent=35 // pred_fallthru
        _
      %s672 = ssub.s32 %s20, 1
      %p673 = scmp.gt.s32.totalorder %s672, 0
      %s674 = scalar_select %p673, %s672, 0
      %s675 = smul.u32 4, %s674
      %p676 = scmp.lt.s32.totalorder %s19, 1
      %s677 = scalar_select %p676, %s19, 1
      %p678 = scmp.lt.s32.totalorder %s675, 3
      %s679 = scalar_select %p678, %s675, 3
      %s680 = smul.addr %s677, 4
      %s681 = sadd.s32 %s679, %s680
      %s682 = smul.addr %s681, 4
      %s683 = scalar_lea.vmem %s4, %s682
      // Predicated region
      $region57: #{discriminator_forward.6} parent=35 // pred_check
        %p684 = pneg %p148
      $region58: #{discriminator_forward.6} parent=35 // pred_check_branch
        %686 = sbr.rel (%p684) target = $region60
      $region59: #{discriminator_forward.6} parent=35 // pred_region
        %s687 = ssub.s32 %s20, 1
        %p688 = scmp.gt.s32.totalorder %s687, 0
        %s689 = scalar_select %p688, %s687, 0
        %s690 = smul.u32 4, %s689
      $region60: #{discriminator_forward.6} parent=35 // pred_fallthru
        _
    $region36: #{discriminator_forward.6} parent=5 // pred_fallthru
      _
    %p691 = scmp.le.s32.totalorder 2, %s10
    // Predicated region
    $region61: #{discriminator_forward.6} parent=5 // pred_check
      %p692 = pneg %p691
    $region62: #{discriminator_forward.6} parent=5 // pred_check_branch
      %694 = sbr.rel (%p692) target = $region64
    $region63: #{discriminator_forward.6} parent=5 // pred_region
      %s695 = ssub.s32 %s10, 2
      // Predicated region
      $region65: #{discriminator_forward.6} parent=63 // pred_check
        %p696 = pneg %p154
      $region66: #{discriminator_forward.6} parent=63 // pred_check_branch
        %698 = sbr.rel (%p696) target = $region68
      $region67: #{discriminator_forward.6} parent=63 // pred_region
        %s699 = ssub.s32 %s22, 1
        %p700 = scmp.gt.s32.totalorder %s699, 0
        %s701 = scalar_select %p700, %s699, 0
        %s702 = smul.u32 4, %s701
        %p703 = scmp.lt.s32.totalorder %s21, 1
        %s704 = scalar_select %p703, %s21, 1
        %p705 = scmp.lt.s32.totalorder %s702, 3
        %s706 = scalar_select %p705, %s702, 3
        %s707 = smul.addr %s704, 4
        %s708 = sadd.s32 %s706, %s707
        %s709 = smul.addr %s708, 4
        %s710 = scalar_lea.vmem %s4, %s709
      $region68: #{discriminator_forward.6} parent=63 // pred_fallthru
        _
    $region64: #{discriminator_forward.6} parent=5 // pred_fallthru
      _
  $region6: #{discriminator_forward.6} parent=0 // loop_footer
    %s14 = sadd.s32 1, %s10
  $region7: #{discriminator_forward.6} parent=0 // loop_footer_branch
    %9 = sbr.rel target = $region3
  $region8: #{discriminator_forward.6} parent=0 // loop_exit
    _

// kernel: discriminator_forward.7
$region0: #{discriminator_forward.7}
  #allocation0 [shape = 'u32[]', space=smem, size = 0x4, offset = 0x4, fixed_abs, tag = 'smem constant byte address 0x4 - core index']
  #allocation1 [shape = 'u32[144,128]{1,0:T(1,128)}', space=vmem, size = 0x12000, scoped, tag = 'internal scratch']
  #allocation2 [shape = 'bf16[48,128]{1,0:T(8,128)(2,1)}', space=vmem, size = 0x3000, scoped, tag = 'scratch operand']
  #allocation3 [shape = 'f32[8,128]{1,0:T(8,128)}', space=vmem, size = 0x1000, scoped, tag = 'scratch operand']
  #allocation4 [shape = 'f32[8,128]{1,0:T(8,128)}', space=vmem, size = 0x1000, scoped, tag = 'scratch operand']
  %s0 = inlined_call_operand.vmem [shape: bf16[2,48,512], index: 0, kind: input, shape index: {}]
  %s1 = inlined_call_operand.vmem [shape: bf16[512,128], index: 1, kind: input, shape index: {}]
  %s2 = inlined_call_operand.vmem [shape: f32[1,128], index: 2, kind: input, shape index: {}]
  %s3 = inlined_call_operand.vmem [shape: f32[1,128], index: 3, kind: input, shape index: {}]
  %s4 = inlined_call_operand.vmem [shape: bf16[128,128], index: 4, kind: input, shape index: {}]
  %s5 = inlined_call_operand.vmem [shape: f32[1,128], index: 5, kind: input, shape index: {}]
  %s6 = inlined_call_operand.vmem [shape: bf16[2,48,128], index: 6, kind: output, shape index: {}]
  %s7 = sld [smem:[#allocation0]]
  $region77: #{discriminator_forward.7} parent=0
    _
  %s9 = ssub.s32 1, %s7
  %s10 = scalar_select 0, %s9, %s7
  loop: start=0, step=1, limit=6
  $region2: #{discriminator_forward.7} parent=0 // loop_pre_header
    _
  $region3: #{discriminator_forward.7} parent=0 // loop_header
    %s12 = sphi 0, %s16
    %p13 = scmp.ge.s32.totalorder %s12, 6
    %s19 = sphi 0, %s31
    %s20 = sphi 0, %s27
    %s21 = sphi 0, %s19
    %s22 = sphi 0, %s20
    %s23 = sphi 0, %s21
    %s24 = sphi 0, %s22
    %s40 = sphi 0, %s42
    %s43 = sphi 0, %s40
    %s44 = sphi 0, %s43
    %s60 = sphi 0, %s44
    %s64 = sphi 0, %s64
    %s66 = sphi 0, %s64
    %s67 = sphi 0, %s66
    %s81 = sphi 0, %s67
    %s85 = sphi 0, %s85
    %s87 = sphi 0, %s85
    %s88 = sphi 0, %s87
    %s102 = sphi 0, %s88
    %s106 = sphi 0, %s106
    %s108 = sphi 0, %s106
    %s109 = sphi 0, %s108
    %s123 = sphi 0, %s109
    %s127 = sphi 0, %s127
    %s129 = sphi 0, %s127
    %s130 = sphi 0, %s129
    %s144 = sphi 0, %s130
    %s148 = sphi 0, %s148
    %s150 = sphi 0, %s148
    %s151 = sphi 0, %s150
    %s165 = sphi 0, %s151
    %s179 = sphi 0, %s181
    %s182 = sphi 0, %s179
    %s183 = sphi 0, %s182
    %s199 = sphi 0, %s183
  $region4: #{discriminator_forward.7} parent=0 // loop_header_branch
    %15 = sbr.rel (%p13) target = $region8
  $region5: #{discriminator_forward.7} parent=0 // loop_body
    %s17 = ssub.s32 %s12, 1
    %s18 = ssub.s32 %s12, 2
    %s25 = sadd.s32 1, %s20
    %p26 = scmp.ge.s32.totalorder %s25, 2
    %s27 = scalar_select %p26, 0, %s25
    %s28 = sadd.s32 1, %s19
    %s29 = scalar_select %p26, %s28, %s19
    %p30 = scmp.ge.s32.totalorder %s29, 2
    %s31 = scalar_select %p30, 0, %s29
    %p32 = scmp.lt.s32.totalorder %s20, 0
    %s33 = scalar_select %p32, %s20, 0
    %p34 = scmp.lt.s32.totalorder %s27, 0
    %s35 = scalar_select %p34, %s27, 0
    %s36 = ssub.s32 %s19, %s31
    %s37 = ssub.s32 %s33, %s35
    %s38 = sor.u32 %s36, %s37
    %p39 = scmp.eq.s32.totalorder %s38, 0
    %s41 = sadd.s32 %s40, 1
    %s42 = scalar_select %p39, %s40, %s41
    %p45 = pneg %p39
    %p46 = scmp.eq.s32.totalorder %s12, 3
    %p47 = por %p45, %p46
    %p48 = scmp.ne.s32.totalorder %s40, %s43
    %p49 = scmp.eq.s32.totalorder %s12, 0
    %p50 = por %p48, %p49
    %p51 = scmp.ne.s32.totalorder %s40, %s43
    %p52 = scmp.eq.s32.totalorder %s17, 3
    %p53 = por %p51, %p52
    %p54 = scmp.ne.s32.totalorder %s43, %s44
    %p55 = scmp.eq.s32.totalorder %s17, 0
    %p56 = por %p54, %p55
    %p57 = scmp.ne.s32.totalorder %s43, %s44
    %p58 = scmp.eq.s32.totalorder %s18, 3
    %p59 = por %p57, %p58
    %p61 = scmp.ne.s32.totalorder %s44, %s60
    %p62 = scmp.eq.s32.totalorder %s18, 0
    %p63 = por %p61, %p62
    %s65 = sadd.s32 %s64, 1
    %p68 = scmp.eq.s32.totalorder %s12, 3
    %p69 = scmp.ne.s32.totalorder %s64, %s66
    %p70 = scmp.eq.s32.totalorder %s12, 0
    %p71 = por %p69, %p70
    %p72 = scmp.ne.s32.totalorder %s64, %s66
    %p73 = scmp.eq.s32.totalorder %s17, 3
    %p74 = por %p72, %p73
    %p75 = scmp.ne.s32.totalorder %s66, %s67
    %p76 = scmp.eq.s32.totalorder %s17, 0
    %p77 = por %p75, %p76
    %p78 = scmp.ne.s32.totalorder %s66, %s67
    %p79 = scmp.eq.s32.totalorder %s18, 3
    %p80 = por %p78, %p79
    %p82 = scmp.ne.s32.totalorder %s67, %s81
    %p83 = scmp.eq.s32.totalorder %s18, 0
    %p84 = por %p82, %p83
    %s86 = sadd.s32 %s85, 1
    %p89 = scmp.eq.s32.totalorder %s12, 3
    %p90 = scmp.ne.s32.totalorder %s85, %s87
    %p91 = scmp.eq.s32.totalorder %s12, 0
    %p92 = por %p90, %p91
    %p93 = scmp.ne.s32.totalorder %s85, %s87
    %p94 = scmp.eq.s32.totalorder %s17, 3
    %p95 = por %p93, %p94
    %p96 = scmp.ne.s32.totalorder %s87, %s88
    %p97 = scmp.eq.s32.totalorder %s17, 0
    %p98 = por %p96, %p97
    %p99 = scmp.ne.s32.totalorder %s87, %s88
    %p100 = scmp.eq.s32.totalorder %s18, 3
    %p101 = por %p99, %p100
    %p103 = scmp.ne.s32.totalorder %s88, %s102
    %p104 = scmp.eq.s32.totalorder %s18, 0
    %p105 = por %p103, %p104
    %s107 = sadd.s32 %s106, 1
    %p110 = scmp.eq.s32.totalorder %s12, 3
    %p111 = scmp.ne.s32.totalorder %s106, %s108
    %p112 = scmp.eq.s32.totalorder %s12, 0
    %p113 = por %p111, %p112
    %p114 = scmp.ne.s32.totalorder %s106, %s108
    %p115 = scmp.eq.s32.totalorder %s17, 3
    %p116 = por %p114, %p115
    %p117 = scmp.ne.s32.totalorder %s108, %s109
    %p118 = scmp.eq.s32.totalorder %s17, 0
    %p119 = por %p117, %p118
    %p120 = scmp.ne.s32.totalorder %s108, %s109
    %p121 = scmp.eq.s32.totalorder %s18, 3
    %p122 = por %p120, %p121
    %p124 = scmp.ne.s32.totalorder %s109, %s123
    %p125 = scmp.eq.s32.totalorder %s18, 0
    %p126 = por %p124, %p125
    %s128 = sadd.s32 %s127, 1
    %p131 = scmp.eq.s32.totalorder %s12, 3
    %p132 = scmp.ne.s32.totalorder %s127, %s129
    %p133 = scmp.eq.s32.totalorder %s12, 0
    %p134 = por %p132, %p133
    %p135 = scmp.ne.s32.totalorder %s127, %s129
    %p136 = scmp.eq.s32.totalorder %s17, 3
    %p137 = por %p135, %p136
    %p138 = scmp.ne.s32.totalorder %s129, %s130
    %p139 = scmp.eq.s32.totalorder %s17, 0
    %p140 = por %p138, %p139
    %p141 = scmp.ne.s32.totalorder %s129, %s130
    %p142 = scmp.eq.s32.totalorder %s18, 3
    %p143 = por %p141, %p142
    %p145 = scmp.ne.s32.totalorder %s130, %s144
    %p146 = scmp.eq.s32.totalorder %s18, 0
    %p147 = por %p145, %p146
    %s149 = sadd.s32 %s148, 1
    %p152 = scmp.eq.s32.totalorder %s12, 3
    %p153 = scmp.ne.s32.totalorder %s148, %s150
    %p154 = scmp.eq.s32.totalorder %s12, 0
    %p155 = por %p153, %p154
    %p156 = scmp.ne.s32.totalorder %s148, %s150
    %p157 = scmp.eq.s32.totalorder %s17, 3
    %p158 = por %p156, %p157
    %p159 = scmp.ne.s32.totalorder %s150, %s151
    %p160 = scmp.eq.s32.totalorder %s17, 0
    %p161 = por %p159, %p160
    %p162 = scmp.ne.s32.totalorder %s150, %s151
    %p163 = scmp.eq.s32.totalorder %s18, 3
    %p164 = por %p162, %p163
    %p166 = scmp.ne.s32.totalorder %s151, %s165
    %p167 = scmp.eq.s32.totalorder %s18, 0
    %p168 = por %p166, %p167
    %s169 = ssub.s32 %s20, 1
    %p170 = scmp.gt.s32.totalorder %s169, 0
    %s171 = scalar_select %p170, %s169, 0
    %s172 = ssub.s32 %s27, 1
    %p173 = scmp.gt.s32.totalorder %s172, 0
    %s174 = scalar_select %p173, %s172, 0
    %s175 = ssub.s32 %s19, %s31
    %s176 = ssub.s32 %s171, %s174
    %s177 = sor.u32 %s175, %s176
    %p178 = scmp.eq.s32.totalorder %s177, 0
    %s180 = sadd.s32 %s179, 1
    %s181 = scalar_select %p178, %s179, %s180
    %p184 = pneg %p178
    %p185 = scmp.eq.s32.totalorder %s12, 3
    %p186 = por %p184, %p185
    %p187 = scmp.ne.s32.totalorder %s179, %s182
    %p188 = scmp.eq.s32.totalorder %s12, 0
    %p189 = por %p187, %p188
    %p190 = scmp.ne.s32.totalorder %s179, %s182
    %p191 = scmp.eq.s32.totalorder %s17, 3
    %p192 = por %p190, %p191
    %p193 = scmp.ne.s32.totalorder %s182, %s183
    %p194 = scmp.eq.s32.totalorder %s17, 0
    %p195 = por %p193, %p194
    %p196 = scmp.ne.s32.totalorder %s182, %s183
    %p197 = scmp.eq.s32.totalorder %s18, 3
    %p198 = por %p196, %p197
    %p200 = scmp.ne.s32.totalorder %s183, %s199
    %p201 = scmp.eq.s32.totalorder %s18, 0
    %p202 = por %p200, %p201
    %p203 = scmp.le.s32.totalorder 1, %s12
    %p204 = scmp.lt.s32.totalorder %s12, 5
    %p205 = pnand %p203, %p204
    %p206 = pneg %p205
    // Predicated region
    $region9: #{discriminator_forward.7} parent=5 // pred_check
      _
    $region10: #{discriminator_forward.7} parent=5 // pred_check_branch
      %208 = sbr.rel (%p205) target = $region12
    $region11: #{discriminator_forward.7} parent=5 // pred_region
      %s209 = ssub.s32 %s12, 1
      // Predicated region
      $region13: #{discriminator_forward.7} parent=11 // pred_check
        %p210 = pneg %p77
      $region14: #{discriminator_forward.7} parent=11 // pred_check_branch
        %212 = sbr.rel (%p210) target = $region16
      $region15: #{discriminator_forward.7} parent=11 // pred_region
        _
      $region16: #{discriminator_forward.7} parent=11 // pred_fallthru
        _
      // Predicated region
      $region17: #{discriminator_forward.7} parent=11 // pred_check
        %p213 = pneg %p98
      $region18: #{discriminator_forward.7} parent=11 // pred_check_branch
        %215 = sbr.rel (%p213) target = $region20
      $region19: #{discriminator_forward.7} parent=11 // pred_region
        _
      $region20: #{discriminator_forward.7} parent=11 // pred_fallthru
        _
      // Predicated region
      $region21: #{discriminator_forward.7} parent=11 // pred_check
        %p216 = pneg %p119
      $region22: #{discriminator_forward.7} parent=11 // pred_check_branch
        %218 = sbr.rel (%p216) target = $region24
      $region23: #{discriminator_forward.7} parent=11 // pred_region
        _
      $region24: #{discriminator_forward.7} parent=11 // pred_fallthru
        _
      // Predicated region
      $region25: #{discriminator_forward.7} parent=11 // pred_check
        %p219 = pneg %p140
      $region26: #{discriminator_forward.7} parent=11 // pred_check_branch
        %221 = sbr.rel (%p219) target = $region28
      $region27: #{discriminator_forward.7} parent=11 // pred_region
        _
      $region28: #{discriminator_forward.7} parent=11 // pred_fallthru
        _
      // Predicated region
      $region29: #{discriminator_forward.7} parent=11 // pred_check
        %p222 = pneg %p161
      $region30: #{discriminator_forward.7} parent=11 // pred_check_branch
        %224 = sbr.rel (%p222) target = $region32
      $region31: #{discriminator_forward.7} parent=11 // pred_region
        _
      $region32: #{discriminator_forward.7} parent=11 // pred_fallthru
        _
    $region12: #{discriminator_forward.7} parent=5 // pred_fallthru
      _
    %p225 = scmp.lt.s32.totalorder %s12, 4
    // Predicated region
    $region33: #{discriminator_forward.7} parent=5 // pred_check
      %p226 = pneg %p225
    $region34: #{discriminator_forward.7} parent=5 // pred_check_branch
      %228 = sbr.rel (%p226) target = $region36
    $region35: #{discriminator_forward.7} parent=5 // pred_region
      // Predicated region
      $region37: #{discriminator_forward.7} parent=35 // pred_check
        %p229 = pneg %p50
      $region38: #{discriminator_forward.7} parent=35 // pred_check_branch
        %231 = sbr.rel (%p229) target = $region40
      $region39: #{discriminator_forward.7} parent=35 // pred_region
        %p232 = scmp.lt.s32.totalorder %s20, 0
        %s233 = scalar_select %p232, %s20, 0
        %s234 = smul.u32 6, %s233
        %p235 = scmp.lt.s32.totalorder %s19, 1
        %s236 = scalar_select %p235, %s19, 1
        %p237 = scmp.lt.s32.totalorder %s234, 5
        %s238 = scalar_select %p237, %s234, 5
        %s239 = smul.addr %s238, 4
        %s240 = smul.addr %s236, 24
        %s241 = sadd.s32 %s239, %s240
        %s242 = smul.addr %s241, 4
        %s243 = scalar_lea.vmem %s0, %s242
        %p244 = scmp.lt.s32.totalorder %s20, 0
        %s245 = scalar_select %p244, %s20, 0
        %s246 = smul.u32 6, %s245
      $region40: #{discriminator_forward.7} parent=35 // pred_fallthru
        _
    $region36: #{discriminator_forward.7} parent=5 // pred_fallthru
      _
    %p247 = scmp.le.s32.totalorder 1, %s12
    %p248 = scmp.lt.s32.totalorder %s12, 5
    %p249 = pnand %p247, %p248
    %p250 = pneg %p249
    // Predicated region
    $region41: #{discriminator_forward.7} parent=5 // pred_check
      _
    $region42: #{discriminator_forward.7} parent=5 // pred_check_branch
      %252 = sbr.rel (%p249) target = $region44
    $region43: #{discriminator_forward.7} parent=5 // pred_region
      %s253 = ssub.s32 %s12, 1
      %p254 = scmp.lt.s32.totalorder %s22, 0
      %s255 = scalar_select %p254, %s22, 0
      %s256 = smul.u32 6, %s255
      %p257 = scmp.lt.s32.totalorder %s21, 1
      %s258 = scalar_select %p257, %s21, 1
      %p259 = scmp.lt.s32.totalorder %s256, 5
      %s260 = scalar_select %p259, %s256, 5
      %s261 = smul.addr %s260, 4
      %s262 = smul.addr %s258, 24
      %s263 = sadd.s32 %s261, %s262
      %s264 = smul.addr %s263, 4
      %s265 = scalar_lea.vmem %s0, %s264
      %p266 = pneg %p56
      %p267 = pneg %p53
      %p268 = pneg %p77
      %p269 = pneg %p74
      %p270 = pneg %p98
      %p271 = pneg %p95
      %p272 = pneg %p119
      %p273 = pneg %p116
      %p274 = pneg %p140
      %p275 = pneg %p137
      %p276 = pneg %p161
      %p277 = pneg %p158
      %p278 = pneg %p195
      %p279 = pneg %p192
      %s280 = ssub.s32 %s22, 1
      %p281 = scmp.gt.s32.totalorder %s280, 0
      %s282 = scalar_select %p281, %s280, 0
      %s283 = smul.u32 6, %s282
      %p284 = scmp.lt.s32.totalorder %s21, 1
      %s285 = scalar_select %p284, %s21, 1
      %p286 = scmp.lt.s32.totalorder %s283, 5
      %s287 = scalar_select %p286, %s283, 5
      %s288 = smul.addr %s285, 6
      %s289 = sadd.s32 %s287, %s288
      %s290 = smul.addr %s289, 4
      %s291 = scalar_lea.vmem %s6, %s290
      %p292 = scmp.lt.s32.totalorder %s22, 0
      %s293 = scalar_select %p292, %s22, 0
      %s294 = smul.u32 6, %s293
      %p295 = scmp.lt.s32.totalorder %s21, 1
      %s296 = scalar_select %p295, %s21, 1
      %p297 = scmp.lt.s32.totalorder %s294, 5
      %s298 = scalar_select %p297, %s294, 5
      %s299 = smul.addr %s298, 4
      %s300 = smul.addr %s296, 24
      %s301 = sadd.s32 %s299, %s300
      %s302 = smul.addr %s301, 4
      %s303 = scalar_lea.vmem %s0, %s302
      %p304 = scmp.lt.s32.totalorder %s22, 0
      %s305 = scalar_select %p304, %s22, 0
      %s306 = smul.u32 6, %s305
      %s307 = ssub.s32 %s22, 1
      %p308 = scmp.gt.s32.totalorder %s307, 0
      %s309 = scalar_select %p308, %s307, 0
      %s310 = smul.u32 6, %s309
      %p311 = scmp.lt.s32.totalorder %s21, 1
      %s312 = scalar_select %p311, %s21, 1
      %p313 = scmp.lt.s32.totalorder %s310, 5
      %s314 = scalar_select %p313, %s310, 5
      %s315 = smul.addr %s312, 6
      %s316 = sadd.s32 %s314, %s315
      %s317 = smul.addr %s316, 4
      %s318 = scalar_lea.vmem %s6, %s317
      %s319 = ssub.s32 %s22, 1
      %p320 = scmp.gt.s32.totalorder %s319, 0
      %s321 = scalar_select %p320, %s319, 0
      %s322 = smul.u32 6, %s321
      %p324 = scmp.lt.s32.totalorder %s22, 1
      // Predicated region
      $region45: #{discriminator_forward.7} parent=43 // pred_check
        %p325 = pneg %p324
      $region46: #{discriminator_forward.7} parent=43 // pred_check_branch
        %327 = sbr.rel (%p325) target = $region48
      $region47: #{discriminator_forward.7} parent=43 // pred_region
        %p328 = scmp.eq.s32.totalorder %s22, 0
        // Predicated region
        $region49: #{discriminator_forward.7} parent=47 // pred_check
          %p329 = pneg %p328
        $region50: #{discriminator_forward.7} parent=47 // pred_check_branch
          %331 = sbr.rel (%p329) target = $region52
        $region51: #{discriminator_forward.7} parent=47 // pred_region
          %332 = vst [vmem:[#allocation3] sm:$0xff] 0.0
          %333 = vst [vmem:[#allocation4] sm:$0xff] 0.0
        $region52: #{discriminator_forward.7} parent=47 // pred_fallthru
          _
        %v334 = vld [vmem:[%s303] sm:$0xff]
        %v335 = vld [vmem:[%s303 + $0x8] sm:$0xff]
        %v336 = vld [vmem:[%s303 + $0x10] sm:$0xff]
        %v337 = vld [vmem:[%s303 + $0x18] sm:$0xff]
        %v338 = vld [vmem:[%s303 + $0x20] sm:$0xff]
        %v339 = vld [vmem:[%s303 + $0x28] sm:$0xff]
        %v340 = vld [vmem:[%s303 + $0x30] sm:$0xff]
        %v341 = vld [vmem:[%s303 + $0x38] sm:$0xff]
        %v342 = vld [vmem:[%s303 + $0x40] sm:$0xff]
        %v343 = vld [vmem:[%s303 + $0x48] sm:$0xff]
        %v344 = vld [vmem:[%s303 + $0x50] sm:$0xff]
        %v345 = vld [vmem:[%s303 + $0x58] sm:$0xff]
        %v346 = vld [vmem:[%s1] sm:$0xf]
        %v347 = vld [vmem:[%s1 + $0x4] sm:$0xf]
        %v348 = vld [vmem:[%s1 + $0x8] sm:$0xf]
        %v349 = vld [vmem:[%s1 + $0xc] sm:$0xf]
        %v350 = vld [vmem:[%s1 + $0x10] sm:$0xf]
        %v351 = vld [vmem:[%s1 + $0x14] sm:$0xf]
        %v352 = vld [vmem:[%s1 + $0x18] sm:$0xf]
        %v353 = vld [vmem:[%s1 + $0x1c] sm:$0xf]
        %v354 = vld [vmem:[%s1 + $0x20] sm:$0xf]
        %v355 = vld [vmem:[%s1 + $0x24] sm:$0xf]
        %v356 = vld [vmem:[%s1 + $0x28] sm:$0xf]
        %v357 = vld [vmem:[%s1 + $0x2c] sm:$0xf]
        %v358 = vld [vmem:[%s1 + $0x30] sm:$0xf]
        %v359 = vld [vmem:[%s1 + $0x34] sm:$0xf]
        %v360 = vld [vmem:[%s1 + $0x38] sm:$0xf]
        %v361 = vld [vmem:[%s1 + $0x3c] sm:$0xf]
        %v362 = vld [vmem:[%s1 + $0x40] sm:$0xf]
        %v363 = vld [vmem:[%s1 + $0x44] sm:$0xf]
        %v364 = vld [vmem:[%s1 + $0x48] sm:$0xf]
        %v365 = vld [vmem:[%s1 + $0x4c] sm:$0xf]
        %v366 = vld [vmem:[%s1 + $0x50] sm:$0xf]
        %v367 = vld [vmem:[%s1 + $0x54] sm:$0xf]
        %v368 = vld [vmem:[%s1 + $0x58] sm:$0xf]
        %v369 = vld [vmem:[%s1 + $0x5c] sm:$0xf]
        %v370 = vld [vmem:[%s1 + $0x60] sm:$0xf]
        %v371 = vld [vmem:[%s1 + $0x64] sm:$0xf]
        %v372 = vld [vmem:[%s1 + $0x68] sm:$0xf]
        %v373 = vld [vmem:[%s1 + $0x6c] sm:$0xf]
        %v374 = vld [vmem:[%s1 + $0x70] sm:$0xf]
        %v375 = vld [vmem:[%s1 + $0x74] sm:$0xf]
        %v376 = vld [vmem:[%s1 + $0x78] sm:$0xf]
        %v377 = vld [vmem:[%s1 + $0x7c] sm:$0xf]
        %v378 = vld [vmem:[%s1 + $0x80] sm:$0xf]
        %v379 = vld [vmem:[%s1 + $0x84] sm:$0xf]
        %v380 = vld [vmem:[%s1 + $0x88] sm:$0xf]
        %v381 = vld [vmem:[%s1 + $0x8c] sm:$0xf]
        %v382 = vld [vmem:[%s1 + $0x90] sm:$0xf]
        %v383 = vld [vmem:[%s1 + $0x94] sm:$0xf]
        %v384 = vld [vmem:[%s1 + $0x98] sm:$0xf]
        %v385 = vld [vmem:[%s1 + $0x9c] sm:$0xf]
        %v386 = vld [vmem:[%s1 + $0xa0] sm:$0xf]
        %v387 = vld [vmem:[%s1 + $0xa4] sm:$0xf]
        %v388 = vld [vmem:[%s1 + $0xa8] sm:$0xf]
        %v389 = vld [vmem:[%s1 + $0xac] sm:$0xf]
        %v390 = vld [vmem:[%s1 + $0xb0] sm:$0xf]
        %v391 = vld [vmem:[%s1 + $0xb4] sm:$0xf]
        %v392 = vld [vmem:[%s1 + $0xb8] sm:$0xf]
        %v393 = vld [vmem:[%s1 + $0xbc] sm:$0xf]
        %v394 = vld [vmem:[%s1 + $0xc0] sm:$0xf]
        %v395 = vld [vmem:[%s1 + $0xc4] sm:$0xf]
        %v396 = vld [vmem:[%s1 + $0xc8] sm:$0xf]
        %v397 = vld [vmem:[%s1 + $0xcc] sm:$0xf]
        %v398 = vld [vmem:[%s1 + $0xd0] sm:$0xf]
        %v399 = vld [vmem:[%s1 + $0xd4] sm:$0xf]
        %v400 = vld [vmem:[%s1 + $0xd8] sm:$0xf]
        %v401 = vld [vmem:[%s1 + $0xdc] sm:$0xf]
        %v402 = vld [vmem:[%s1 + $0xe0] sm:$0xf]
        %v403 = vld [vmem:[%s1 + $0xe4] sm:$0xf]
        %v404 = vld [vmem:[%s1 + $0xe8] sm:$0xf]
        %v405 = vld [vmem:[%s1 + $0xec] sm:$0xf]
        %v406 = vld [vmem:[%s1 + $0xf0] sm:$0xf]
        %v407 = vld [vmem:[%s1 + $0xf4] sm:$0xf]
        %v408 = vld [vmem:[%s1 + $0xf8] sm:$0xf]
        %v409 = vld [vmem:[%s1 + $0xfc] sm:$0xf]
        %v422 = vunpack.c.l.b16 %v334
        %v423 = vunpack.c.h.b16 %v334
        %v424 = vunpack.c.l.b16 %v335
        %v425 = vunpack.c.h.b16 %v335
        %v426 = vunpack.c.l.b16 %v336
        %v427 = vunpack.c.h.b16 %v336
        %v428 = vunpack.c.l.b16 %v337
        %v429 = vunpack.c.h.b16 %v337
        %v430 = vunpack.c.l.b16 %v338
        %v431 = vunpack.c.h.b16 %v338
        %v432 = vunpack.c.l.b16 %v339
        %v433 = vunpack.c.h.b16 %v339
        %v434 = vunpack.c.l.b16 %v340
        %v435 = vunpack.c.h.b16 %v340
        %v436 = vunpack.c.l.b16 %v341
        %v437 = vunpack.c.h.b16 %v341
        %v438 = vunpack.c.l.b16 %v342
        %v439 = vunpack.c.h.b16 %v342
        %v440 = vunpack.c.l.b16 %v343
        %v441 = vunpack.c.h.b16 %v343
        %v442 = vunpack.c.l.b16 %v344
        %v443 = vunpack.c.h.b16 %v344
        %v444 = vunpack.c.l.b16 %v345
        %v445 = vunpack.c.h.b16 %v345
        %v446 = vpack.c.b16 %v426, %v422
        %v447 = vpack.c.b16 %v427, %v423
        %v448 = vpack.c.b16 %v428, %v424
        %v449 = vpack.c.b16 %v429, %v425
        %v450 = vpack.c.b16 %v434, %v430
        %v451 = vpack.c.b16 %v435, %v431
        %v452 = vpack.c.b16 %v436, %v432
        %v453 = vpack.c.b16 %v437, %v433
        %v454 = vpack.c.b16 %v442, %v438
        %v455 = vpack.c.b16 %v443, %v439
        %v456 = vpack.c.b16 %v444, %v440
        %v457 = vpack.c.b16 %v445, %v441
        %v534 = vunpack.c.l.b16 %v346
        %v535 = vunpack.c.l.b16 %v347
        %v536 = vunpack.c.l.b16 %v348
        %v537 = vunpack.c.l.b16 %v349
        %v538 = vunpack.c.l.b16 %v350
        %v539 = vunpack.c.l.b16 %v351
        %v540 = vunpack.c.l.b16 %v352
        %v541 = vunpack.c.l.b16 %v353
        %v542 = vunpack.c.l.b16 %v354
        %v543 = vunpack.c.l.b16 %v355
        %v544 = vunpack.c.l.b16 %v356
        %v545 = vunpack.c.l.b16 %v357
        %v546 = vunpack.c.l.b16 %v358
        %v547 = vunpack.c.l.b16 %v359
        %v548 = vunpack.c.l.b16 %v360
        %v549 = vunpack.c.l.b16 %v361
        %v550 = vunpack.c.l.b16 %v362
        %v551 = vunpack.c.l.b16 %v363
        %v552 = vunpack.c.l.b16 %v364
        %v553 = vunpack.c.l.b16 %v365
        %v554 = vunpack.c.l.b16 %v366
        %v555 = vunpack.c.l.b16 %v367
        %v556 = vunpack.c.l.b16 %v368
        %v557 = vunpack.c.l.b16 %v369
        %v558 = vunpack.c.l.b16 %v370
        %v559 = vunpack.c.l.b16 %v371
        %v560 = vunpack.c.l.b16 %v372
        %v561 = vunpack.c.l.b16 %v373
        %v562 = vunpack.c.l.b16 %v374
        %v563 = vunpack.c.l.b16 %v375
        %v564 = vunpack.c.l.b16 %v376
        %v565 = vunpack.c.l.b16 %v377
        %v566 = vunpack.c.l.b16 %v378
        %v567 = vunpack.c.l.b16 %v379
        %v568 = vunpack.c.l.b16 %v380
        %v569 = vunpack.c.l.b16 %v381
        %v570 = vunpack.c.l.b16 %v382
        %v571 = vunpack.c.l.b16 %v383
        %v572 = vunpack.c.l.b16 %v384
        %v573 = vunpack.c.l.b16 %v385
        %v574 = vunpack.c.l.b16 %v386
        %v575 = vunpack.c.l.b16 %v387
        %v576 = vunpack.c.l.b16 %v388
        %v577 = vunpack.c.l.b16 %v389
        %v578 = vunpack.c.l.b16 %v390
        %v579 = vunpack.c.l.b16 %v391
        %v580 = vunpack.c.l.b16 %v392
        %v581 = vunpack.c.l.b16 %v393
        %v582 = vunpack.c.l.b16 %v394
        %v583 = vunpack.c.l.b16 %v395
        %v584 = vunpack.c.l.b16 %v396
        %v585 = vunpack.c.l.b16 %v397
        %v586 = vunpack.c.l.b16 %v398
        %v587 = vunpack.c.l.b16 %v399
        %v588 = vunpack.c.l.b16 %v400
        %v589 = vunpack.c.l.b16 %v401
        %v590 = vunpack.c.l.b16 %v402
        %v591 = vunpack.c.l.b16 %v403
        %v592 = vunpack.c.l.b16 %v404
        %v593 = vunpack.c.l.b16 %v405
        %v594 = vunpack.c.l.b16 %v406
        %v595 = vunpack.c.l.b16 %v407
        %v596 = vunpack.c.l.b16 %v408
        %v597 = vunpack.c.l.b16 %v409
        %v598 = vpack.c.b16 %v535, %v534
        %v599 = vpack.c.b16 %v537, %v536
        %v600 = vpack.c.b16 %v539, %v538
        %v601 = vpack.c.b16 %v541, %v540
        %v602 = vpack.c.b16 %v543, %v542
        %v603 = vpack.c.b16 %v545, %v544
        %v604 = vpack.c.b16 %v547, %v546
        %v605 = vpack.c.b16 %v549, %v548
        %v606 = vpack.c.b16 %v551, %v550
        %v607 = vpack.c.b16 %v553, %v552
        %v608 = vpack.c.b16 %v555, %v554
        %v609 = vpack.c.b16 %v557, %v556
        %v610 = vpack.c.b16 %v559, %v558
        %v611 = vpack.c.b16 %v561, %v560
        %v612 = vpack.c.b16 %v563, %v562
        %v613 = vpack.c.b16 %v565, %v564
        %v614 = vpack.c.b16 %v567, %v566
        %v615 = vpack.c.b16 %v569, %v568
        %v616 = vpack.c.b16 %v571, %v570
        %v617 = vpack.c.b16 %v573, %v572
        %v618 = vpack.c.b16 %v575, %v574
        %v619 = vpack.c.b16 %v577, %v576
        %v620 = vpack.c.b16 %v579, %v578
        %v621 = vpack.c.b16 %v581, %v580
        %v622 = vpack.c.b16 %v583, %v582
        %v623 = vpack.c.b16 %v585, %v584
        %v624 = vpack.c.b16 %v587, %v586
        %v625 = vpack.c.b16 %v589, %v588
        %v626 = vpack.c.b16 %v591, %v590
        %v627 = vpack.c.b16 %v593, %v592
        %v628 = vpack.c.b16 %v595, %v594
        %v629 = vpack.c.b16 %v597, %v596
        %662 = vmatprep.subr.bf16.mxu0 0
        %663 = vmatpush1.bf16.msra.mxu0 %v605
        %664 = vmatprep.subr.bf16.mxu0 0
        %665 = vmatpush1.bf16.msra.mxu0 %v604
        %666 = vmatprep.subr.bf16.mxu0 0
        %667 = vmatpush1.bf16.msra.mxu0 %v603
        %668 = vmatprep.subr.bf16.mxu0 0
        %669 = vmatpush1.bf16.msra.mxu0 %v602
        %670 = vmatprep.subr.bf16.mxu0 0
        %671 = vmatpush1.bf16.msra.mxu0 %v601
        %672 = vmatprep.subr.bf16.mxu0 0
        %673 = vmatpush1.bf16.msra.mxu0 %v600
        %674 = vmatprep.subr.bf16.mxu0 0
        %675 = vmatpush1.bf16.msra.mxu0 %v599
        %676 = vmatprep.subr.bf16.mxu0 0
        %677 = vmatpush1.bf16.msra.mxu0 %v598
        %678 = vmatprep.subr.bf16.mxu0 0
        %679 = vmatpush2.bf16.msra.mxu0 %v613
        %680 = vmatprep.subr.bf16.mxu0 0
        %681 = vmatpush2.bf16.msra.mxu0 %v612
        %682 = vmatprep.subr.bf16.mxu0 0
        %683 = vmatpush2.bf16.msra.mxu0 %v611
        %684 = vmatprep.subr.bf16.mxu0 0
        %685 = vmatpush2.bf16.msra.mxu0 %v610
        %686 = vmatprep.subr.bf16.mxu0 0
        %687 = vmatpush2.bf16.msra.mxu0 %v609
        %688 = vmatprep.subr.bf16.mxu0 0
        %689 = vmatpush2.bf16.msra.mxu0 %v608
        %690 = vmatprep.subr.bf16.mxu0 0
        %691 = vmatpush2.bf16.msra.mxu0 %v607
        %692 = vmatprep.subr.bf16.mxu0 0
        %693 = vmatpush2.bf16.msra.mxu0 %v606
        %694 = vmatprep.mubr.bf16.mxu0 %v447
        %695 = vmatmul.mubr.bf16.gmra.mxu0 %v446
        %v696 = vpop.f32.mrf.mxu0
        %v697 = vadd.f32 0.0, %v696
        %v698 = vpop.f32.mrf.mxu0
        %v699 = vpop.f32.mrf.mxu0
        %v700 = vadd.f32 0.0, %v699
        %v701 = vpop.f32.mrf.mxu0
        %702 = vmatprep.mubr.bf16.mxu0 %v451
        %703 = vmatmul.mubr.bf16.gmra.mxu0 %v450
        %v704 = vpop.f32.mrf.mxu0
        %v705 = vadd.f32 0.0, %v704
        %v706 = vpop.f32.mrf.mxu0
        %v707 = vpop.f32.mrf.mxu0
        %v708 = vadd.f32 0.0, %v707
        %v709 = vpop.f32.mrf.mxu0
        %710 = vmatprep.mubr.bf16.mxu0 %v455
        %711 = vmatmul.mubr.bf16.gmra.mxu0 %v454
        %v712 = vpop.f32.mrf.mxu0
        %v713 = vadd.f32 0.0, %v712
        %v714 = vpop.f32.mrf.mxu0
        %v715 = vpop.f32.mrf.mxu0
        %v716 = vadd.f32 0.0, %v715
        %v717 = vpop.f32.mrf.mxu0
        %718 = vdwg.mxu0
        %719 = vmatprep.subr.bf16.mxu0 0
        %720 = vmatpush1.bf16.msra.mxu0 %v621
        %721 = vmatprep.subr.bf16.mxu0 0
        %722 = vmatpush1.bf16.msra.mxu0 %v620
        %723 = vmatprep.subr.bf16.mxu0 0
        %724 = vmatpush1.bf16.msra.mxu0 %v619
        %725 = vmatprep.subr.bf16.mxu0 0
        %726 = vmatpush1.bf16.msra.mxu0 %v618
        %727 = vmatprep.subr.bf16.mxu0 0
        %728 = vmatpush1.bf16.msra.mxu0 %v617
        %729 = vmatprep.subr.bf16.mxu0 0
        %730 = vmatpush1.bf16.msra.mxu0 %v616
        %731 = vmatprep.subr.bf16.mxu0 0
        %732 = vmatpush1.bf16.msra.mxu0 %v615
        %733 = vmatprep.subr.bf16.mxu0 0
        %734 = vmatpush1.bf16.msra.mxu0 %v614
        %735 = vmatprep.subr.bf16.mxu0 0
        %736 = vmatpush2.bf16.msra.mxu0 %v629
        %737 = vmatprep.subr.bf16.mxu0 0
        %738 = vmatpush2.bf16.msra.mxu0 %v628
        %739 = vmatprep.subr.bf16.mxu0 0
        %740 = vmatpush2.bf16.msra.mxu0 %v627
        %741 = vmatprep.subr.bf16.mxu0 0
        %742 = vmatpush2.bf16.msra.mxu0 %v626
        %743 = vmatprep.subr.bf16.mxu0 0
        %744 = vmatpush2.bf16.msra.mxu0 %v625
        %745 = vmatprep.subr.bf16.mxu0 0
        %746 = vmatpush2.bf16.msra.mxu0 %v624
        %747 = vmatprep.subr.bf16.mxu0 0
        %748 = vmatpush2.bf16.msra.mxu0 %v623
        %749 = vmatprep.subr.bf16.mxu0 0
        %750 = vmatpush2.bf16.msra.mxu0 %v622
        %751 = vmatprep.mubr.bf16.mxu0 %v449
        %752 = vmatmul.mubr.bf16.gmra.mxu0 %v448
        %v753 = vpop.f32.mrf.mxu0
        %v754 = vadd.f32 %v697, %v753
        %v755 = vpop.f32.mrf.mxu0
        %v756 = vpop.f32.mrf.mxu0
        %v757 = vadd.f32 %v700, %v756
        %v758 = vpop.f32.mrf.mxu0
        %759 = vmatprep.mubr.bf16.mxu0 %v453
        %760 = vmatmul.mubr.bf16.gmra.mxu0 %v452
        %v761 = vpop.f32.mrf.mxu0
        %v762 = vadd.f32 %v705, %v761
        %v763 = vpop.f32.mrf.mxu0
        %v764 = vpop.f32.mrf.mxu0
        %v765 = vadd.f32 %v708, %v764
        %v766 = vpop.f32.mrf.mxu0
        %767 = vmatprep.mubr.bf16.mxu0 %v457
        %768 = vmatmul.mubr.bf16.gmra.mxu0 %v456
        %v769 = vpop.f32.mrf.mxu0
        %v770 = vadd.f32 %v713, %v769
        %v771 = vpop.f32.mrf.mxu0
        %v772 = vpop.f32.mrf.mxu0
        %v773 = vadd.f32 %v716, %v772
        %v774 = vpop.f32.mrf.mxu0
        %775 = vdwg.mxu0
        %s776 = smul.u32 %s22, 48
        %v777 = vpack.c.bf16 %v757, %v754
        %v778 = vpack.c.bf16 %v765, %v762
        %v779 = vpack.c.bf16 %v773, %v770
        %v783 = vunpack.c.l.b16 %v777
        %v784 = vunpack.c.h.b16 %v777
        %v785 = vunpack.c.l.b16 %v778
        %v786 = vunpack.c.h.b16 %v778
        %v787 = vunpack.c.l.b16 %v779
        %v788 = vunpack.c.h.b16 %v779
        %v789 = vpack.c.b16 %v783, %v783
        %v790 = vpack.c.b16 %v784, %v784
        %v791 = vpack.c.b16 %v785, %v785
        %v792 = vpack.c.b16 %v786, %v786
        %v793 = vpack.c.b16 %v787, %v787
        %v794 = vpack.c.b16 %v788, %v788
        %s801 = sshra.s32 %s776, 3
        %s802 = sand.u32 %s776, 7
        %s803 = smul.addr %s801, 4
        %s804 = scalar_lea.vmem [#allocation2], %s803
        %805 = vst [vmem:[%s804] sm:$0xf] %v789
        %806 = vst [vmem:[%s804 + $0x4] sm:$0xf] %v790
        %807 = vst [vmem:[%s804 + $0x8] sm:$0xf] %v791
        %808 = vst [vmem:[%s804 + $0xc] sm:$0xf] %v792
        %809 = vst [vmem:[%s804 + $0x10] sm:$0xf] %v793
        %810 = vst [vmem:[%s804 + $0x14] sm:$0xf] %v794
        %p811 = scmp.lt.s32.totalorder %s22, 0
        // Predicated region
        $region53: #{discriminator_forward.7} parent=47 // pred_check
          %p812 = pneg %p811
        $region54: #{discriminator_forward.7} parent=47 // pred_check_branch
          %814 = sbr.rel (%p812) target = $region56
        $region55: #{discriminator_forward.7} parent=47 // pred_region
          %v815 = vld [vmem:[#allocation3] sm:$0xff]
          %v816 = vadd.f32 %v754, %v757
          %v817 = vadd.f32 %v816, %v762
          %v818 = vadd.f32 %v817, %v765
          %v819 = vadd.f32 %v818, %v770
          %v820 = vadd.f32 %v819, %v773
          %v821 = vadd.f32 %v815, %v820
          %822 = vst [vmem:[#allocation3] sm:$0xff] %v821
          %v823 = vld [vmem:[#allocation4] sm:$0xff]
          %v824 = vmul.f32 %v754, %v754
          %v825 = vmul.f32 %v757, %v757
          %v826 = vmul.f32 %v762, %v762
          %v827 = vmul.f32 %v765, %v765
          %v828 = vmul.f32 %v770, %v770
          %v829 = vmul.f32 %v773, %v773
          %v830 = vadd.f32 %v824, %v825
          %v831 = vadd.f32 %v830, %v826
          %v832 = vadd.f32 %v831, %v827
          %v833 = vadd.f32 %v832, %v828
          %v834 = vadd.f32 %v833, %v829
          %v835 = vadd.f32 %v823, %v834
          %836 = vst [vmem:[#allocation4] sm:$0xff] %v835
        $region56: #{discriminator_forward.7} parent=47 // pred_fallthru
          _
        // Predicated region
        $region57: #{discriminator_forward.7} parent=47 // pred_check
          %p837 = pneg %p328
        $region58: #{discriminator_forward.7} parent=47 // pred_check_branch
          %839 = sbr.rel (%p837) target = $region60
        $region59: #{discriminator_forward.7} parent=47 // pred_region
          %v840 = vlaneseq
          %v841 = vshrl.u32 %v840, 7
          %v842 = vadd.s32 %v841, 8
          %v843 = vadd.s32 %v841, 16
          %v844 = vadd.s32 %v841, 24
          %v845 = vadd.s32 %v841, 32
          %v846 = vadd.s32 %v841, 40
          %v847 = vstv %s776
          %v848 = vadd.s32 %v847, %v841
          %v849 = vadd.s32 %v847, %v842
          %v850 = vadd.s32 %v847, %v843
          %v851 = vadd.s32 %v847, %v844
          %v852 = vadd.s32 %v847, %v845
          %v853 = vadd.s32 %v847, %v846
          %vm854 = vcmp.lt.s32.totalorder %v848, 36
          %vm855 = vcmp.lt.s32.totalorder %v849, 36
          %vm856 = vcmp.lt.s32.totalorder %v850, 36
          %vm857 = vcmp.lt.s32.totalorder %v851, 36
          %vm858 = vcmp.lt.s32.totalorder %v852, 36
          %vm859 = vcmp.lt.s32.totalorder %v853, 36
          %v860 = vsel %vm854, 1, 0
          %v861 = vsel %vm855, 1, 0
          %v862 = vsel %vm856, 1, 0
          %v863 = vsel %vm857, 1, 0
          %v864 = vsel %vm858, 1, 0
          %v865 = vsel %vm859, 1, 0
          %vm866 = vcmp.eq.s32.totalorder %v860, 1
          %vm867 = vcmp.eq.s32.totalorder %v861, 1
          %vm868 = vcmp.eq.s32.totalorder %v862, 1
          %vm869 = vcmp.eq.s32.totalorder %v863, 1
          %vm870 = vcmp.eq.s32.totalorder %v864, 1
          %vm871 = vcmp.eq.s32.totalorder %v865, 1
          %v872 = vsel %vm866, %v754, 0.0
          %v873 = vsel %vm867, %v757, 0.0
          %v874 = vsel %vm868, %v762, 0.0
          %v875 = vsel %vm869, %v765, 0.0
          %v876 = vsel %vm870, %v770, 0.0
          %v877 = vsel %vm871, %v773, 0.0
          %v878 = vld [vmem:[#allocation3] sm:$0xff]
          %v879 = vadd.f32 %v872, %v873
          %v880 = vadd.f32 %v879, %v874
          %v881 = vadd.f32 %v880, %v875
          %v882 = vadd.f32 %v881, %v876
          %v883 = vadd.f32 %v882, %v877
          %v884 = vadd.f32 %v878, %v883
          %885 = vst [vmem:[#allocation3] sm:$0xff] %v884
          %v886 = vld [vmem:[#allocation4] sm:$0xff]
          %v887 = vmul.f32 %v872, %v872
          %v888 = vmul.f32 %v873, %v873
          %v889 = vmul.f32 %v874, %v874
          %v890 = vmul.f32 %v875, %v875
          %v891 = vmul.f32 %v876, %v876
          %v892 = vmul.f32 %v877, %v877
          %v893 = vadd.f32 %v887, %v888
          %v894 = vadd.f32 %v893, %v889
          %v895 = vadd.f32 %v894, %v890
          %v896 = vadd.f32 %v895, %v891
          %v897 = vadd.f32 %v896, %v892
          %v898 = vadd.f32 %v886, %v897
          %899 = vst [vmem:[#allocation4] sm:$0xff] %v898
        $region60: #{discriminator_forward.7} parent=47 // pred_fallthru
          _
      $region48: #{discriminator_forward.7} parent=43 // pred_fallthru
        _
      %p900 = scmp.ge.s32.totalorder %s22, 1
      // Predicated region
      $region61: #{discriminator_forward.7} parent=43 // pred_check
        %p901 = pneg %p900
      $region62: #{discriminator_forward.7} parent=43 // pred_check_branch
        %903 = sbr.rel (%p901) target = $region64
      $region63: #{discriminator_forward.7} parent=43 // pred_region
        %s904 = ssub.s32 %s22, 1
        %v905 = vld [vmem:[#allocation3] sm:$0xff]
        %v906 = vrot.slane %v905, 4
        %v907 = vadd.f32 %v905, %v906
        %v908 = vrot.slane %v907, 2
        %v909 = vadd.f32 %v907, %v908
        %v910 = vrot.slane %v909, 1
        %v911 = vadd.f32 %v909, %v910
        %v912 = vmul.f32 %v911, 0.027777778
        %v913 = vld [vmem:[#allocation4] sm:$0xff]
        %v914 = vrot.slane %v913, 4
        %v915 = vadd.f32 %v913, %v914
        %v916 = vrot.slane %v915, 2
        %v917 = vadd.f32 %v915, %v916
        %v918 = vrot.slane %v917, 1
        %v919 = vadd.f32 %v917, %v918
        %v920 = vmul.f32 %v919, 0.027777778
        %v921 = vmul.f32 %v912, %v912
        %v922 = vsub.f32 %v920, %v921
        %v923 = vmax.f32 %v922, 0.0
        %v924 = vadd.f32 %v923, 1e-05
        %v925 = vrsqrt.pop %v924
        %s926 = smul.u32 %s904, 48
        %s927 = sshra.s32 %s926, 3
        %s928 = sand.u32 %s926, 7
        %s929 = smul.addr %s927, 4
        %s930 = scalar_lea.vmem [#allocation2], %s929
        %v931 = vld [vmem:[%s930] sm:$0xf]
        %v932 = vld [vmem:[%s930 + $0x4] sm:$0xf]
        %v933 = vld [vmem:[%s930 + $0x8] sm:$0xf]
        %v934 = vld [vmem:[%s930 + $0xc] sm:$0xf]
        %v935 = vld [vmem:[%s930 + $0x10] sm:$0xf]
        %v936 = vld [vmem:[%s930 + $0x14] sm:$0xf]
        %v937 = vunpack.c.l.bf16 %v931
        %v938 = vunpack.c.l.bf16 %v932
        %v939 = vunpack.c.l.bf16 %v933
        %v940 = vunpack.c.l.bf16 %v934
        %v941 = vunpack.c.l.bf16 %v935
        %v942 = vunpack.c.l.bf16 %v936
        %v943 = vsub.f32 %v937, %v912
        %v944 = vsub.f32 %v938, %v912
        %v945 = vsub.f32 %v939, %v912
        %v946 = vsub.f32 %v940, %v912
        %v947 = vsub.f32 %v941, %v912
        %v948 = vsub.f32 %v942, %v912
        %v949 = vmul.f32 %v943, %v925
        %v950 = vmul.f32 %v944, %v925
        %v951 = vmul.f32 %v945, %v925
        %v952 = vmul.f32 %v946, %v925
        %v953 = vmul.f32 %v947, %v925
        %v954 = vmul.f32 %v948, %v925
        %v955 = vld [vmem:[%s2] sm:$0x1]
        %v957 = vlaneseq
        %v958 = vshrl.u32 %v957, 7
        %v959 = vsub.s32 0, %v958
        %v960 = vrot.slane %v955, %v959
        %v962 = vmul.f32 %v949, %v960
        %v963 = vmul.f32 %v950, %v960
        %v964 = vmul.f32 %v951, %v960
        %v965 = vmul.f32 %v952, %v960
        %v966 = vmul.f32 %v953, %v960
        %v967 = vmul.f32 %v954, %v960
        %v968 = vld [vmem:[%s3] sm:$0x1]
        %v970 = vlaneseq
        %v971 = vshrl.u32 %v970, 7
        %v972 = vsub.s32 0, %v971
        %v973 = vrot.slane %v968, %v972
        %v975 = vadd.f32 %v962, %v973
        %v976 = vadd.f32 %v963, %v973
        %v977 = vadd.f32 %v964, %v973
        %v978 = vadd.f32 %v965, %v973
        %v979 = vadd.f32 %v966, %v973
        %v980 = vadd.f32 %v967, %v973
        %vm981 = vcmp.gt.f32.partialorder %v975, 0.0
        %vm982 = vcmp.gt.f32.partialorder %v976, 0.0
        %vm983 = vcmp.gt.f32.partialorder %v977, 0.0
        %vm984 = vcmp.gt.f32.partialorder %v978, 0.0
        %vm985 = vcmp.gt.f32.partialorder %v979, 0.0
        %vm986 = vcmp.gt.f32.partialorder %v980, 0.0
        %v987 = vmul.f32 %v975, 0.01
        %v988 = vmul.f32 %v976, 0.01
        %v989 = vmul.f32 %v977, 0.01
        %v990 = vmul.f32 %v978, 0.01
        %v991 = vmul.f32 %v979, 0.01
        %v992 = vmul.f32 %v980, 0.01
        %v993 = vsel %vm981, %v975, %v987
        %v994 = vsel %vm982, %v976, %v988
        %v995 = vsel %vm983, %v977, %v989
        %v996 = vsel %vm984, %v978, %v990
        %v997 = vsel %vm985, %v979, %v991
        %v998 = vsel %vm986, %v980, %v992
        %v999 = vpack.c.bf16 %v994, %v993
        %v1000 = vpack.c.bf16 %v996, %v995
        %v1001 = vpack.c.bf16 %v998, %v997
        %v1002 = vld [vmem:[%s4] sm:$0xf]
        %v1003 = vld [vmem:[%s4 + $0x4] sm:$0xf]
        %v1004 = vld [vmem:[%s4 + $0x8] sm:$0xf]
        %v1005 = vld [vmem:[%s4 + $0xc] sm:$0xf]
        %v1006 = vld [vmem:[%s4 + $0x10] sm:$0xf]
        %v1007 = vld [vmem:[%s4 + $0x14] sm:$0xf]
        %v1008 = vld [vmem:[%s4 + $0x18] sm:$0xf]
        %v1009 = vld [vmem:[%s4 + $0x1c] sm:$0xf]
        %v1010 = vld [vmem:[%s4 + $0x20] sm:$0xf]
        %v1011 = vld [vmem:[%s4 + $0x24] sm:$0xf]
        %v1012 = vld [vmem:[%s4 + $0x28] sm:$0xf]
        %v1013 = vld [vmem:[%s4 + $0x2c] sm:$0xf]
        %v1014 = vld [vmem:[%s4 + $0x30] sm:$0xf]
        %v1015 = vld [vmem:[%s4 + $0x34] sm:$0xf]
        %v1016 = vld [vmem:[%s4 + $0x38] sm:$0xf]
        %v1017 = vld [vmem:[%s4 + $0x3c] sm:$0xf]
        %v1018 = vld [vmem:[%s5] sm:$0x1]
        %v1020 = vlaneseq
        %v1021 = vshrl.u32 %v1020, 7
        %v1022 = vsub.s32 0, %v1021
        %v1023 = vrot.slane %v1018, %v1022
        %v1041 = vunpack.c.l.b16 %v1002
        %v1042 = vunpack.c.l.b16 %v1003
        %v1043 = vunpack.c.l.b16 %v1004
        %v1044 = vunpack.c.l.b16 %v1005
        %v1045 = vunpack.c.l.b16 %v1006
        %v1046 = vunpack.c.l.b16 %v1007
        %v1047 = vunpack.c.l.b16 %v1008
        %v1048 = vunpack.c.l.b16 %v1009
        %v1049 = vunpack.c.l.b16 %v1010
        %v1050 = vunpack.c.l.b16 %v1011
        %v1051 = vunpack.c.l.b16 %v1012
        %v1052 = vunpack.c.l.b16 %v1013
        %v1053 = vunpack.c.l.b16 %v1014
        %v1054 = vunpack.c.l.b16 %v1015
        %v1055 = vunpack.c.l.b16 %v1016
        %v1056 = vunpack.c.l.b16 %v1017
        %v1057 = vpack.c.b16 %v1042, %v1041
        %v1058 = vpack.c.b16 %v1044, %v1043
        %v1059 = vpack.c.b16 %v1046, %v1045
        %v1060 = vpack.c.b16 %v1048, %v1047
        %v1061 = vpack.c.b16 %v1050, %v1049
        %v1062 = vpack.c.b16 %v1052, %v1051
        %v1063 = vpack.c.b16 %v1054, %v1053
        %v1064 = vpack.c.b16 %v1056, %v1055
        %1073 = vmatprep.subr.bf16.mxu0 0
        %1074 = vmatpush1.bf16.msra.mxu0 %v1064
        %1075 = vmatprep.subr.bf16.mxu0 0
        %1076 = vmatpush1.bf16.msra.mxu0 %v1063
        %1077 = vmatprep.subr.bf16.mxu0 0
        %1078 = vmatpush1.bf16.msra.mxu0 %v1062
        %1079 = vmatprep.subr.bf16.mxu0 0
        %1080 = vmatpush1.bf16.msra.mxu0 %v1061
        %1081 = vmatprep.subr.bf16.mxu0 0
        %1082 = vmatpush1.bf16.msra.mxu0 %v1060
        %1083 = vmatprep.subr.bf16.mxu0 0
        %1084 = vmatpush1.bf16.msra.mxu0 %v1059
        %1085 = vmatprep.subr.bf16.mxu0 0
        %1086 = vmatpush1.bf16.msra.mxu0 %v1058
        %1087 = vmatprep.subr.bf16.mxu0 0
        %1088 = vmatpush1.bf16.msra.mxu0 %v1057
        %1089 = vmatprep.subr.bf16.mxu0 0
        %1090 = vmatpush2.bf16.msra.mxu0 0
        %1091 = vmatprep.subr.bf16.mxu0 0
        %1092 = vmatpush2.bf16.msra.mxu0 0
        %1093 = vmatprep.subr.bf16.mxu0 0
        %1094 = vmatpush2.bf16.msra.mxu0 0
        %1095 = vmatprep.subr.bf16.mxu0 0
        %1096 = vmatpush2.bf16.msra.mxu0 0
        %1097 = vmatprep.subr.bf16.mxu0 0
        %1098 = vmatpush2.bf16.msra.mxu0 0
        %1099 = vmatprep.subr.bf16.mxu0 0
        %1100 = vmatpush2.bf16.msra.mxu0 0
        %1101 = vmatprep.subr.bf16.mxu0 0
        %1102 = vmatpush2.bf16.msra.mxu0 0
        %1103 = vmatprep.subr.bf16.mxu0 0
        %1104 = vmatpush2.bf16.msra.mxu0 0
        %1105 = vmatprep.mubr.bf16.mxu0 0
        %1106 = vmatmul.mubr.bf16.gmra.mxu0 %v999
        %v1107 = vpop.f32.mrf.mxu0
        %v1108 = vadd.f32 %v1023, %v1107
        %v1109 = vpop.f32.mrf.mxu0
        %v1110 = vpop.f32.mrf.mxu0
        %v1111 = vadd.f32 %v1023, %v1110
        %v1112 = vpop.f32.mrf.mxu0
        %1113 = vmatprep.mubr.bf16.mxu0 0
        %1114 = vmatmul.mubr.bf16.gmra.mxu0 %v1000
        %v1115 = vpop.f32.mrf.mxu0
        %v1116 = vadd.f32 %v1023, %v1115
        %v1117 = vpop.f32.mrf.mxu0
        %v1118 = vpop.f32.mrf.mxu0
        %v1119 = vadd.f32 %v1023, %v1118
        %v1120 = vpop.f32.mrf.mxu0
        %1121 = vmatprep.mubr.bf16.mxu0 0
        %1122 = vmatmul.mubr.bf16.gmra.mxu0 %v1001
        %v1123 = vpop.f32.mrf.mxu0
        %v1124 = vadd.f32 %v1023, %v1123
        %v1125 = vpop.f32.mrf.mxu0
        %v1126 = vpop.f32.mrf.mxu0
        %v1127 = vadd.f32 %v1023, %v1126
        %v1128 = vpop.f32.mrf.mxu0
        %1129 = vdwg.mxu0
        %v1130 = vpack.c.bf16 %v1111, %v1108
        %v1131 = vpack.c.bf16 %v1119, %v1116
        %v1132 = vpack.c.bf16 %v1127, %v1124
        %v1136 = vunpack.c.l.b16 %v1130
        %v1137 = vunpack.c.h.b16 %v1130
        %v1138 = vunpack.c.l.b16 %v1131
        %v1139 = vunpack.c.h.b16 %v1131
        %v1140 = vunpack.c.l.b16 %v1132
        %v1141 = vunpack.c.h.b16 %v1132
        %v1142 = vpack.c.b16 %v1136, %v1136
        %v1143 = vpack.c.b16 %v1137, %v1137
        %v1144 = vpack.c.b16 %v1138, %v1138
        %v1145 = vpack.c.b16 %v1139, %v1139
        %v1146 = vpack.c.b16 %v1140, %v1140
        %v1147 = vpack.c.b16 %v1141, %v1141
        %1154 = vst [vmem:[%s318] sm:$0xf] %v1142
        %1155 = vst [vmem:[%s318 + $0x4] sm:$0xf] %v1143
        %1156 = vst [vmem:[%s318 + $0x8] sm:$0xf] %v1144
        %1157 = vst [vmem:[%s318 + $0xc] sm:$0xf] %v1145
        %1158 = vst [vmem:[%s318 + $0x10] sm:$0xf] %v1146
        %1159 = vst [vmem:[%s318 + $0x14] sm:$0xf] %v1147
      $region64: #{discriminator_forward.7} parent=43 // pred_fallthru
        _
      %s1160 = ssub.s32 %s22, 1
      %p1161 = scmp.gt.s32.totalorder %s1160, 0
      %s1162 = scalar_select %p1161, %s1160, 0
      %s1163 = smul.u32 6, %s1162
      %p1164 = scmp.lt.s32.totalorder %s21, 1
      %s1165 = scalar_select %p1164, %s21, 1
      %p1166 = scmp.lt.s32.totalorder %s1163, 5
      %s1167 = scalar_select %p1166, %s1163, 5
      %s1168 = smul.addr %s1165, 6
      %s1169 = sadd.s32 %s1167, %s1168
      %s1170 = smul.addr %s1169, 4
      %s1171 = scalar_lea.vmem %s6, %s1170
      // Predicated region
      $region65: #{discriminator_forward.7} parent=43 // pred_check
        %p1172 = pneg %p192
      $region66: #{discriminator_forward.7} parent=43 // pred_check_branch
        %1174 = sbr.rel (%p1172) target = $region68
      $region67: #{discriminator_forward.7} parent=43 // pred_region
        %s1175 = ssub.s32 %s22, 1
        %p1176 = scmp.gt.s32.totalorder %s1175, 0
        %s1177 = scalar_select %p1176, %s1175, 0
        %s1178 = smul.u32 6, %s1177
      $region68: #{discriminator_forward.7} parent=43 // pred_fallthru
        _
    $region44: #{discriminator_forward.7} parent=5 // pred_fallthru
      _
    %p1179 = scmp.le.s32.totalorder 2, %s12
    // Predicated region
    $region69: #{discriminator_forward.7} parent=5 // pred_check
      %p1180 = pneg %p1179
    $region70: #{discriminator_forward.7} parent=5 // pred_check_branch
      %1182 = sbr.rel (%p1180) target = $region72
    $region71: #{discriminator_forward.7} parent=5 // pred_region
      %s1183 = ssub.s32 %s12, 2
      // Predicated region
      $region73: #{discriminator_forward.7} parent=71 // pred_check
        %p1184 = pneg %p198
      $region74: #{discriminator_forward.7} parent=71 // pred_check_branch
        %1186 = sbr.rel (%p1184) target = $region76
      $region75: #{discriminator_forward.7} parent=71 // pred_region
        %s1187 = ssub.s32 %s24, 1
        %p1188 = scmp.gt.s32.totalorder %s1187, 0
        %s1189 = scalar_select %p1188, %s1187, 0
        %s1190 = smul.u32 6, %s1189
        %p1191 = scmp.lt.s32.totalorder %s23, 1
        %s1192 = scalar_select %p1191, %s23, 1
        %p1193 = scmp.lt.s32.totalorder %s1190, 5
        %s1194 = scalar_select %p1193, %s1190, 5
        %s1195 = smul.addr %s1192, 6
        %s1196 = sadd.s32 %s1194, %s1195
        %s1197 = smul.addr %s1196, 4
        %s1198 = scalar_lea.vmem %s6, %s1197
      $region76: #{discriminator_forward.7} parent=71 // pred_fallthru
        _
    $region72: #{discriminator_forward.7} parent=5 // pred_fallthru
      _
  $region6: #{discriminator_forward.7} parent=0 // loop_footer
    %s16 = sadd.s32 1, %s12
  $region7: #{discriminator_forward.7} parent=0 // loop_footer_branch
    %11 = sbr.rel target = $region3
  $region8: #{discriminator_forward.7} parent=0 // loop_exit
    _

</llo_original>
